<compile_context>
chip_gen: v7x
topology: tpu7x:2x2x1
jax: 0.10.0
libtpu: 0.0.40
codegen_flags: <defaults>
</compile_context>

<pallas_src>
import functools

import jax
import jax.numpy as jnp
from jax.experimental import pallas as pl
from jax.experimental.pallas import tpu as pltpu
import numpy as np


def atten_encoder_kernel(x_ref, masks_ref, w1_ref, b1_ref, w2_ref, b2_ref,
                         wa1_ref, wa2_ref, o_ref, patches_ref,
                         *, width, hw, imgs):
    """One block of `imgs` images per grid step.

    x_ref      : (C, L)      input, L = imgs*HW, channels x flattened pixels
    masks_ref  : (9, L)      per-tap validity mask (emulates the zero padding)
    w*_ref     : (C, 9*C)    bf16 fused 3x3 conv weights with BN scale folded in,
                             layout [co, (ky*3+kx)*C + ci]
    b*_ref     : (C, 1)      f32 folded BN bias (conv bias + BN shift)
    wa1_ref    : (Cr, C)     CBAM squeeze weight (f32)
    wa2_ref    : (C, Cr)     CBAM excite weight (f32)
    o_ref      : (C, L)      output (lane-dense: HW is a multiple of 128)
    patches_ref: (9*C, L)    bf16 VMEM scratch holding the 9 shifted taps
    """
    C = x_ref.shape[0]
    L = x_ref.shape[1]

    def conv3x3_bn_relu(src, w_ref, b_ref):
        # src: (C, L) f32 -> (C, L) f32
        for ky in range(3):
            for kx in range(3):
                tap = ky * 3 + kx
                dy, dx = ky - 1, kx - 1
                if dy == 0 and dx == 0:
                    # center tap: no shift, no mask
                    patches_ref[tap * C:(tap + 1) * C, :] = src.astype(jnp.bfloat16)
                    continue
                # want shifted[q] = src[q + dy*W + dx]  (0 outside the image);
                # wrap-around (across image boundaries inside the block too)
                # only hits destination pixels the boundary mask zeroes.
                shift = (-(dy * width + dx)) % L
                rolled = pltpu.roll(src, shift=shift, axis=1)
                mask = masks_ref[tap:tap + 1, :]                     # (1, L)
                patches_ref[tap * C:(tap + 1) * C, :] = (
                    rolled * mask).astype(jnp.bfloat16)
        # single fused-tap matmul: (C, 9C) @ (9C, L) -> (C, L), bf16 x bf16,
        # f32 accumulation.  BN scale already folded into the weights.
        y = jnp.dot(w_ref[...], patches_ref[...],
                    preferred_element_type=jnp.float32)
        return jnp.maximum(y + b_ref[...], 0.0)

    x = x_ref[...].astype(jnp.float32)                               # (C, L)
    y1 = conv3x3_bn_relu(x, w1_ref, b1_ref)
    y2 = conv3x3_bn_relu(y1, w2_ref, b2_ref)

    # ---- CBAM channel attention -------------------------------------------
    # Per-image avg & max pooling (static loop over the B images in the block,
    # lane slices are 128-aligned since HW % 128 == 0), then the whole batch of
    # pooled vectors goes through the squeeze/excite MLP in one pass.
    cols_avg, cols_max = [], []
    for b in range(imgs):
        yb = y2[:, b * hw:(b + 1) * hw]                              # (C, HW)
        cols_avg.append(jnp.mean(yb, axis=1, keepdims=True))         # (C, 1)
        cols_max.append(jnp.max(yb, axis=1, keepdims=True))          # (C, 1)
    pooled = jnp.concatenate(cols_avg + cols_max, axis=1)            # (C, 2B)
    h = jnp.maximum(jnp.dot(wa1_ref[...], pooled,
                            preferred_element_type=jnp.float32), 0.0)  # (Cr,2B)
    att = jnp.dot(wa2_ref[...], h,
                  preferred_element_type=jnp.float32)                # (C, 2B)
    weight = jax.nn.sigmoid(att[:, :imgs] + att[:, imgs:])           # (C, B)

    for b in range(imgs):
        wb = weight[:, b:b + 1]                                      # (C, 1)
        o_ref[:, b * hw:(b + 1) * hw] = (
            y2[:, b * hw:(b + 1) * hw] * wb).astype(o_ref.dtype)


def _tap_masks(H, W, imgs):
    """(9, imgs*H*W) f32 validity masks, tap-major (ky*3+kx) order."""
    hh, ww = np.meshgrid(np.arange(H), np.arange(W), indexing="ij")
    rows = []
    for ky in range(3):
        for kx in range(3):
            dy, dx = ky - 1, kx - 1
            valid = ((hh + dy >= 0) & (hh + dy < H) &
                     (ww + dx >= 0) & (ww + dx < W))
            rows.append(valid.reshape(H * W))
    m = np.stack(rows).astype(np.float32)                  # (9, HW)
    return jnp.asarray(np.tile(m, (1, imgs)))              # (9, imgs*HW)


def _pick_images_per_step(N, HW):
    """Largest divisor B of N keeping >=2 grid steps (v7x megacore) and a
    modest per-step lane width (VMEM: re-derive against 64 MiB on v7x)."""
    max_lanes = 16 * 1024
    best = 1
    for B in range(1, N + 1):
        if N % B:
            continue
        if B * HW > max_lanes:
            break
        if N == 1 or N // B >= 2:
            best = B
    return best


def atten_encoder(x_nchw, p, images_per_step=None):
    N, C, H, W = x_nchw.shape
    HW = H * W
    Cr = p["wa1_m"].shape[0]
    assert HW % 128 == 0 and C % 8 == 0, "layout assumes lane/sublane-tiled shapes"

    if images_per_step is None:
        images_per_step = _pick_images_per_step(N, HW)
    B = images_per_step
    assert N % B == 0
    n_steps = N // B
    L = B * HW

    # NCHW -> channel-major (C, N*HW); images contiguous along the lane axis.
    x_cm = jnp.transpose(x_nchw.reshape(N, C, HW), (1, 0, 2)).reshape(C, N * HW)
    x_cm = x_cm.astype(jnp.float32)
    masks = _tap_masks(H, W, B)

    kernel = functools.partial(atten_encoder_kernel, width=W, hw=HW, imgs=B)
    out = pl.pallas_call(
        kernel,
        out_shape=jax.ShapeDtypeStruct((C, N * HW), jnp.float32),
        grid=(n_steps,),
        in_specs=[
            pl.BlockSpec((C, L), lambda s: (0, s)),
            pl.BlockSpec((9, L), lambda s: (0, 0)),
            pl.BlockSpec((C, 9 * C), lambda s: (0, 0)),
            pl.BlockSpec((C, 1), lambda s: (0, 0)),
            pl.BlockSpec((C, 9 * C), lambda s: (0, 0)),
            pl.BlockSpec((C, 1), lambda s: (0, 0)),
            pl.BlockSpec((Cr, C), lambda s: (0, 0)),
            pl.BlockSpec((C, Cr), lambda s: (0, 0)),
        ],
        out_specs=pl.BlockSpec((C, L), lambda s: (0, s)),
        scratch_shapes=[pltpu.VMEM((9 * C, L), jnp.bfloat16)],
        compiler_params=pltpu.CompilerParams(
            dimension_semantics=("parallel",),
            # 48 MiB: generous vs the 16/32 MiB scoped defaults on v5e/v6e,
            # still leaves headroom under v7x's 64 MiB physical VMEM.
            vmem_limit_bytes=48 * 1024 * 1024),
    )(x_cm, masks, p["w1_t"], p["b1"], p["w2_t"], p["b2"],
      p["wa1_m"], p["wa2_m"])

    return jnp.transpose(out.reshape(C, N, HW), (1, 0, 2)).reshape(N, C, H, W)


# ---------------- parameter construction (deterministic, synthetic) ----------
def make_params(C, ratio=8, seed=0):
    Cr = max(C // ratio, 1)
    ks = jax.random.split(jax.random.PRNGKey(seed), 16)
    eps = 1e-5
    p = {}
    # PyTorch-layout raw params (OIHW convs with bias, eval-mode BN)
    p["w1"] = 0.1 * jax.random.normal(ks[0], (C, C, 3, 3), jnp.float32)
    p["cb1"] = 0.1 * jax.random.normal(ks[1], (C,), jnp.float32)
    p["g1"] = 1.0 + 0.1 * jax.random.normal(ks[2], (C,), jnp.float32)
    p["be1"] = 0.1 * jax.random.normal(ks[3], (C,), jnp.float32)
    p["m1"] = 0.1 * jax.random.normal(ks[4], (C,), jnp.float32)
    p["v1"] = 1.0 + 0.5 * jax.random.uniform(ks[5], (C,), jnp.float32)
    p["w2"] = 0.1 * jax.random.normal(ks[6], (C, C, 3, 3), jnp.float32)
    p["cb2"] = 0.1 * jax.random.normal(ks[7], (C,), jnp.float32)
    p["g2"] = 1.0 + 0.1 * jax.random.normal(ks[8], (C,), jnp.float32)
    p["be2"] = 0.1 * jax.random.normal(ks[9], (C,), jnp.float32)
    p["m2"] = 0.1 * jax.random.normal(ks[10], (C,), jnp.float32)
    p["v2"] = 1.0 + 0.5 * jax.random.uniform(ks[11], (C,), jnp.float32)
    p["wa1"] = 0.2 * jax.random.normal(ks[12], (Cr, C, 1, 1), jnp.float32)
    p["wa2"] = 0.2 * jax.random.normal(ks[13], (C, Cr, 1, 1), jnp.float32)

    # kernel-layout params: fused tap-major weights [co, (ky*3+kx)*C + ci]
    # with the BatchNorm scale folded into the weight rows (bf16 operands
    # for native MXU rate); bias stays f32.
    def fold(w, g, be, m, v, cb):
        s = g / jnp.sqrt(v + eps)                                     # (C,)
        w_t = jnp.transpose(w, (0, 2, 3, 1)).reshape(C, 9 * C)        # (C, 9C)
        w_t = (w_t * s[:, None]).astype(jnp.bfloat16)
        b = (be + (cb - m) * s).reshape(C, 1).astype(jnp.float32)
        return w_t, b

    p["w1_t"], p["b1"] = fold(p["w1"], p["g1"], p["be1"], p["m1"], p["v1"], p["cb1"])
    p["w2_t"], p["b2"] = fold(p["w2"], p["g2"], p["be2"], p["m2"], p["v2"], p["cb2"])
    p["wa1_m"] = p["wa1"][:, :, 0, 0]          # (Cr, C) f32
    p["wa2_m"] = p["wa2"][:, :, 0, 0]          # (C, Cr) f32
    return p


# ---------------- pure-JAX reference (mirrors the PyTorch forward) -----------
def ref_forward(x, p):
    eps = 1e-5

    def conv3x3(y, w, cb):
        out = jax.lax.conv_general_dilated(
            y, w, (1, 1), ((1, 1), (1, 1)),
            dimension_numbers=("NCHW", "OIHW", "NCHW"))
        return out + cb[None, :, None, None]

    def bn(y, g, be, m, v):
        s = g / jnp.sqrt(v + eps)
        return y * s[None, :, None, None] + (be - m * s)[None, :, None, None]

    y = jax.nn.relu(bn(conv3x3(x, p["w1"], p["cb1"]),
                       p["g1"], p["be1"], p["m1"], p["v1"]))
    y = jax.nn.relu(bn(conv3x3(y, p["w2"], p["cb2"]),
                       p["g2"], p["be2"], p["m2"], p["v2"]))

    avg = jnp.mean(y, axis=(2, 3))                 # (N, C)
    mx = jnp.max(y, axis=(2, 3))                   # (N, C)
    wa1 = p["wa1"][:, :, 0, 0]                     # (Cr, C)
    wa2 = p["wa2"][:, :, 0, 0]                     # (C, Cr)

    def mlp(v):
        return jax.nn.relu(v @ wa1.T) @ wa2.T

    wgt = jax.nn.sigmoid(mlp(avg) + mlp(mx))       # (N, C)
    return y * wgt[:, :, None, None]


if __name__ == "__main__":
    N, C, H, W = 8, 16, 16, 16
    params = make_params(C, ratio=8, seed=0)
    x = jax.random.normal(jax.random.PRNGKey(0), (N, C, H, W), jnp.float32)

    out = jax.block_until_ready(atten_encoder(x, params))
    ref = jax.block_until_ready(ref_forward(x, params))

    # bf16 MXU operands -> loosened tolerance vs the f32 reference.
    np.testing.assert_allclose(np.asarray(out), np.asarray(ref),
                               rtol=5e-2, atol=5e-2)
    print("KERNEL_OK")
</pallas_src>

<mosaic_0001>
module attributes {stable_mosaic.version = 11 : i64} {
  func.func @atten_encoder_kernel(%arg0: i32, %arg1: memref<16x1024xf32, #tpu.memory_space<vmem>>, %arg2: memref<9x1024xf32, #tpu.memory_space<vmem>>, %arg3: memref<16x144xbf16, #tpu.memory_space<vmem>>, %arg4: memref<16x1xf32, #tpu.memory_space<vmem>>, %arg5: memref<16x144xbf16, #tpu.memory_space<vmem>>, %arg6: memref<16x1xf32, #tpu.memory_space<vmem>>, %arg7: memref<2x16xf32, #tpu.memory_space<vmem>>, %arg8: memref<16x2xf32, #tpu.memory_space<vmem>>, %arg9: memref<16x1024xf32, #tpu.memory_space<vmem>>, %arg10: memref<144x1024xbf16, #tpu.memory_space<vmem>>) attributes {dimension_semantics = [#tpu.dimension_semantics<parallel>], iteration_bounds = array<i64: 2>, scalar_prefetch = 0 : i64, scratch_operands = 1 : i64, tpu.core_type = #tpu.core_type<tc>, window_params = [{transform_indices = @transform_0, window_bounds = array<i64: 16, 1024>}, {pipeline_mode = #tpu.pipeline_mode<synchronous>, transform_indices = @transform_1, window_bounds = array<i64: 9, 1024>}, {pipeline_mode = #tpu.pipeline_mode<synchronous>, transform_indices = @transform_2, window_bounds = array<i64: 16, 144>}, {pipeline_mode = #tpu.pipeline_mode<synchronous>, transform_indices = @transform_3, window_bounds = array<i64: 16, 1>}, {pipeline_mode = #tpu.pipeline_mode<synchronous>, transform_indices = @transform_4, window_bounds = array<i64: 16, 144>}, {pipeline_mode = #tpu.pipeline_mode<synchronous>, transform_indices = @transform_5, window_bounds = array<i64: 16, 1>}, {pipeline_mode = #tpu.pipeline_mode<synchronous>, transform_indices = @transform_6, window_bounds = array<i64: 2, 16>}, {pipeline_mode = #tpu.pipeline_mode<synchronous>, transform_indices = @transform_7, window_bounds = array<i64: 16, 2>}, {transform_indices = @transform_8, window_bounds = array<i64: 16, 1024>}]} {
    %c0 = arith.constant 0 : index
    %c0_0 = arith.constant 0 : index
    %0 = vector.load %arg1[%c0, %c0_0] : memref<16x1024xf32, #tpu.memory_space<vmem>>, vector<16x1024xf32>
    %c17_i32 = arith.constant 17 : i32
    %1 = tpu.dynamic_rotate %0 by %c17_i32 dim 1 : vector<16x1024xf32>, i32 -> vector<16x1024xf32>
    %c0_1 = arith.constant 0 : index
    %c0_2 = arith.constant 0 : index
    %2 = vector.load %arg2[%c0_1, %c0_2] : memref<9x1024xf32, #tpu.memory_space<vmem>>, vector<1x1024xf32>
    %3 = vector.broadcast %2 : vector<1x1024xf32> to vector<16x1024xf32>
    %4 = arith.mulf %1, %3 : vector<16x1024xf32>
    %5 = arith.truncf %4 : vector<16x1024xf32> to vector<16x1024xbf16>
    %c0_3 = arith.constant 0 : index
    %c0_4 = arith.constant 0 : index
    %6 = vector.load %arg10[%c0_3, %c0_4] : memref<144x1024xbf16, #tpu.memory_space<vmem>>, vector<16x1024xbf16>
    tpu.vector_store %arg10[%c0_3, %c0_4], %5 {strides = array<i32>} : memref<144x1024xbf16, #tpu.memory_space<vmem>>, vector<16x1024xbf16>,
    %c16_i32 = arith.constant 16 : i32
    %7 = tpu.dynamic_rotate %0 by %c16_i32 dim 1 : vector<16x1024xf32>, i32 -> vector<16x1024xf32>
    %c1 = arith.constant 1 : index
    %c0_5 = arith.constant 0 : index
    %8 = vector.load %arg2[%c1, %c0_5] : memref<9x1024xf32, #tpu.memory_space<vmem>>, vector<1x1024xf32>
    %9 = vector.broadcast %8 : vector<1x1024xf32> to vector<16x1024xf32>
    %10 = arith.mulf %7, %9 : vector<16x1024xf32>
    %11 = arith.truncf %10 : vector<16x1024xf32> to vector<16x1024xbf16>
    %c16 = arith.constant 16 : index
    %c0_6 = arith.constant 0 : index
    %12 = vector.load %arg10[%c16, %c0_6] : memref<144x1024xbf16, #tpu.memory_space<vmem>>, vector<16x1024xbf16>
    tpu.vector_store %arg10[%c16, %c0_6], %11 {strides = array<i32>} : memref<144x1024xbf16, #tpu.memory_space<vmem>>, vector<16x1024xbf16>,
    %c15_i32 = arith.constant 15 : i32
    %13 = tpu.dynamic_rotate %0 by %c15_i32 dim 1 : vector<16x1024xf32>, i32 -> vector<16x1024xf32>
    %c2 = arith.constant 2 : index
    %c0_7 = arith.constant 0 : index
    %14 = vector.load %arg2[%c2, %c0_7] : memref<9x1024xf32, #tpu.memory_space<vmem>>, vector<1x1024xf32>
    %15 = vector.broadcast %14 : vector<1x1024xf32> to vector<16x1024xf32>
    %16 = arith.mulf %13, %15 : vector<16x1024xf32>
    %17 = arith.truncf %16 : vector<16x1024xf32> to vector<16x1024xbf16>
    %c32 = arith.constant 32 : index
    %c0_8 = arith.constant 0 : index
    %18 = vector.load %arg10[%c32, %c0_8] : memref<144x1024xbf16, #tpu.memory_space<vmem>>, vector<16x1024xbf16>
    tpu.vector_store %arg10[%c32, %c0_8], %17 {strides = array<i32>} : memref<144x1024xbf16, #tpu.memory_space<vmem>>, vector<16x1024xbf16>,
    %c1_i32 = arith.constant 1 : i32
    %19 = tpu.dynamic_rotate %0 by %c1_i32 dim 1 : vector<16x1024xf32>, i32 -> vector<16x1024xf32>
    %c3 = arith.constant 3 : index
    %c0_9 = arith.constant 0 : index
    %20 = vector.load %arg2[%c3, %c0_9] : memref<9x1024xf32, #tpu.memory_space<vmem>>, vector<1x1024xf32>
    %21 = vector.broadcast %20 : vector<1x1024xf32> to vector<16x1024xf32>
    %22 = arith.mulf %19, %21 : vector<16x1024xf32>
    %23 = arith.truncf %22 : vector<16x1024xf32> to vector<16x1024xbf16>
    %c48 = arith.constant 48 : index
    %c0_10 = arith.constant 0 : index
    %24 = vector.load %arg10[%c48, %c0_10] : memref<144x1024xbf16, #tpu.memory_space<vmem>>, vector<16x1024xbf16>
    tpu.vector_store %arg10[%c48, %c0_10], %23 {strides = array<i32>} : memref<144x1024xbf16, #tpu.memory_space<vmem>>, vector<16x1024xbf16>,
    %25 = arith.truncf %0 : vector<16x1024xf32> to vector<16x1024xbf16>
    %c64 = arith.constant 64 : index
    %c0_11 = arith.constant 0 : index
    %26 = vector.load %arg10[%c64, %c0_11] : memref<144x1024xbf16, #tpu.memory_space<vmem>>, vector<16x1024xbf16>
    tpu.vector_store %arg10[%c64, %c0_11], %25 {strides = array<i32>} : memref<144x1024xbf16, #tpu.memory_space<vmem>>, vector<16x1024xbf16>,
    %c1023_i32 = arith.constant 1023 : i32
    %27 = tpu.dynamic_rotate %0 by %c1023_i32 dim 1 : vector<16x1024xf32>, i32 -> vector<16x1024xf32>
    %c5 = arith.constant 5 : index
    %c0_12 = arith.constant 0 : index
    %28 = vector.load %arg2[%c5, %c0_12] : memref<9x1024xf32, #tpu.memory_space<vmem>>, vector<1x1024xf32>
    %29 = vector.broadcast %28 : vector<1x1024xf32> to vector<16x1024xf32>
    %30 = arith.mulf %27, %29 : vector<16x1024xf32>
    %31 = arith.truncf %30 : vector<16x1024xf32> to vector<16x1024xbf16>
    %c80 = arith.constant 80 : index
    %c0_13 = arith.constant 0 : index
    %32 = vector.load %arg10[%c80, %c0_13] : memref<144x1024xbf16, #tpu.memory_space<vmem>>, vector<16x1024xbf16>
    tpu.vector_store %arg10[%c80, %c0_13], %31 {strides = array<i32>} : memref<144x1024xbf16, #tpu.memory_space<vmem>>, vector<16x1024xbf16>,
    %c1009_i32 = arith.constant 1009 : i32
    %33 = tpu.dynamic_rotate %0 by %c1009_i32 dim 1 : vector<16x1024xf32>, i32 -> vector<16x1024xf32>
    %c6 = arith.constant 6 : index
    %c0_14 = arith.constant 0 : index
    %34 = vector.load %arg2[%c6, %c0_14] : memref<9x1024xf32, #tpu.memory_space<vmem>>, vector<1x1024xf32>
    %35 = vector.broadcast %34 : vector<1x1024xf32> to vector<16x1024xf32>
    %36 = arith.mulf %33, %35 : vector<16x1024xf32>
    %37 = arith.truncf %36 : vector<16x1024xf32> to vector<16x1024xbf16>
    %c96 = arith.constant 96 : index
    %c0_15 = arith.constant 0 : index
    %38 = vector.load %arg10[%c96, %c0_15] : memref<144x1024xbf16, #tpu.memory_space<vmem>>, vector<16x1024xbf16>
    tpu.vector_store %arg10[%c96, %c0_15], %37 {strides = array<i32>} : memref<144x1024xbf16, #tpu.memory_space<vmem>>, vector<16x1024xbf16>,
    %c1008_i32 = arith.constant 1008 : i32
    %39 = tpu.dynamic_rotate %0 by %c1008_i32 dim 1 : vector<16x1024xf32>, i32 -> vector<16x1024xf32>
    %c7 = arith.constant 7 : index
    %c0_16 = arith.constant 0 : index
    %40 = vector.load %arg2[%c7, %c0_16] : memref<9x1024xf32, #tpu.memory_space<vmem>>, vector<1x1024xf32>
    %41 = vector.broadcast %40 : vector<1x1024xf32> to vector<16x1024xf32>
    %42 = arith.mulf %39, %41 : vector<16x1024xf32>
    %43 = arith.truncf %42 : vector<16x1024xf32> to vector<16x1024xbf16>
    %c112 = arith.constant 112 : index
    %c0_17 = arith.constant 0 : index
    %44 = vector.load %arg10[%c112, %c0_17] : memref<144x1024xbf16, #tpu.memory_space<vmem>>, vector<16x1024xbf16>
    tpu.vector_store %arg10[%c112, %c0_17], %43 {strides = array<i32>} : memref<144x1024xbf16, #tpu.memory_space<vmem>>, vector<16x1024xbf16>,
    %c1007_i32 = arith.constant 1007 : i32
    %45 = tpu.dynamic_rotate %0 by %c1007_i32 dim 1 : vector<16x1024xf32>, i32 -> vector<16x1024xf32>
    %c8 = arith.constant 8 : index
    %c0_18 = arith.constant 0 : index
    %46 = vector.load %arg2[%c8, %c0_18] : memref<9x1024xf32, #tpu.memory_space<vmem>>, vector<1x1024xf32>
    %47 = vector.broadcast %46 : vector<1x1024xf32> to vector<16x1024xf32>
    %48 = arith.mulf %45, %47 : vector<16x1024xf32>
    %49 = arith.truncf %48 : vector<16x1024xf32> to vector<16x1024xbf16>
    %c128 = arith.constant 128 : index
    %c0_19 = arith.constant 0 : index
    %50 = vector.load %arg10[%c128, %c0_19] : memref<144x1024xbf16, #tpu.memory_space<vmem>>, vector<16x1024xbf16>
    tpu.vector_store %arg10[%c128, %c0_19], %49 {strides = array<i32>} : memref<144x1024xbf16, #tpu.memory_space<vmem>>, vector<16x1024xbf16>,
    %c0_20 = arith.constant 0 : index
    %c0_21 = arith.constant 0 : index
    %51 = vector.load %arg3[%c0_20, %c0_21] : memref<16x144xbf16, #tpu.memory_space<vmem>>, vector<16x144xbf16>
    %c0_22 = arith.constant 0 : index
    %c0_23 = arith.constant 0 : index
    %52 = vector.load %arg10[%c0_22, %c0_23] : memref<144x1024xbf16, #tpu.memory_space<vmem>>, vector<144x1024xbf16>
    %cst = arith.constant dense<0.000000e+00> : vector<16x1024xf32>
    %53 = tpu.matmul %51, %52, %cst {dimension_numbers = #tpu.dot_dimension_numbers<[1], [0], [0], [1], [0, 0, 1, 1], [], []>} : vector<16x144xbf16>, vector<144x1024xbf16>, vector<16x1024xf32> -> vector<16x1024xf32>
    %c0_24 = arith.constant 0 : index
    %c0_25 = arith.constant 0 : index
    %54 = vector.load %arg4[%c0_24, %c0_25] : memref<16x1xf32, #tpu.memory_space<vmem>>, vector<16x1xf32>
    %55 = vector.broadcast %54 : vector<16x1xf32> to vector<16x1024xf32>
    %56 = arith.addf %53, %55 : vector<16x1024xf32>
    %cst_26 = arith.constant 0.000000e+00 : f32
    %57 = vector.broadcast %cst_26 : f32 to vector<16x1024xf32>
    %58 = arith.maximumf %56, %57 : vector<16x1024xf32>
    %c17_i32_27 = arith.constant 17 : i32
    %59 = tpu.dynamic_rotate %58 by %c17_i32_27 dim 1 : vector<16x1024xf32>, i32 -> vector<16x1024xf32>
    %c0_28 = arith.constant 0 : index
    %c0_29 = arith.constant 0 : index
    %60 = vector.load %arg2[%c0_28, %c0_29] : memref<9x1024xf32, #tpu.memory_space<vmem>>, vector<1x1024xf32>
    %61 = vector.broadcast %60 : vector<1x1024xf32> to vector<16x1024xf32>
    %62 = arith.mulf %59, %61 : vector<16x1024xf32>
    %63 = arith.truncf %62 : vector<16x1024xf32> to vector<16x1024xbf16>
    %c0_30 = arith.constant 0 : index
    %c0_31 = arith.constant 0 : index
    %64 = vector.load %arg10[%c0_30, %c0_31] : memref<144x1024xbf16, #tpu.memory_space<vmem>>, vector<16x1024xbf16>
    tpu.vector_store %arg10[%c0_30, %c0_31], %63 {strides = array<i32>} : memref<144x1024xbf16, #tpu.memory_space<vmem>>, vector<16x1024xbf16>,
    %c16_i32_32 = arith.constant 16 : i32
    %65 = tpu.dynamic_rotate %58 by %c16_i32_32 dim 1 : vector<16x1024xf32>, i32 -> vector<16x1024xf32>
    %c1_33 = arith.constant 1 : index
    %c0_34 = arith.constant 0 : index
    %66 = vector.load %arg2[%c1_33, %c0_34] : memref<9x1024xf32, #tpu.memory_space<vmem>>, vector<1x1024xf32>
    %67 = vector.broadcast %66 : vector<1x1024xf32> to vector<16x1024xf32>
    %68 = arith.mulf %65, %67 : vector<16x1024xf32>
    %69 = arith.truncf %68 : vector<16x1024xf32> to vector<16x1024xbf16>
    %c16_35 = arith.constant 16 : index
    %c0_36 = arith.constant 0 : index
    %70 = vector.load %arg10[%c16_35, %c0_36] : memref<144x1024xbf16, #tpu.memory_space<vmem>>, vector<16x1024xbf16>
    tpu.vector_store %arg10[%c16_35, %c0_36], %69 {strides = array<i32>} : memref<144x1024xbf16, #tpu.memory_space<vmem>>, vector<16x1024xbf16>,
    %c15_i32_37 = arith.constant 15 : i32
    %71 = tpu.dynamic_rotate %58 by %c15_i32_37 dim 1 : vector<16x1024xf32>, i32 -> vector<16x1024xf32>
    %c2_38 = arith.constant 2 : index
    %c0_39 = arith.constant 0 : index
    %72 = vector.load %arg2[%c2_38, %c0_39] : memref<9x1024xf32, #tpu.memory_space<vmem>>, vector<1x1024xf32>
    %73 = vector.broadcast %72 : vector<1x1024xf32> to vector<16x1024xf32>
    %74 = arith.mulf %71, %73 : vector<16x1024xf32>
    %75 = arith.truncf %74 : vector<16x1024xf32> to vector<16x1024xbf16>
    %c32_40 = arith.constant 32 : index
    %c0_41 = arith.constant 0 : index
    %76 = vector.load %arg10[%c32_40, %c0_41] : memref<144x1024xbf16, #tpu.memory_space<vmem>>, vector<16x1024xbf16>
    tpu.vector_store %arg10[%c32_40, %c0_41], %75 {strides = array<i32>} : memref<144x1024xbf16, #tpu.memory_space<vmem>>, vector<16x1024xbf16>,
    %c1_i32_42 = arith.constant 1 : i32
    %77 = tpu.dynamic_rotate %58 by %c1_i32_42 dim 1 : vector<16x1024xf32>, i32 -> vector<16x1024xf32>
    %c3_43 = arith.constant 3 : index
    %c0_44 = arith.constant 0 : index
    %78 = vector.load %arg2[%c3_43, %c0_44] : memref<9x1024xf32, #tpu.memory_space<vmem>>, vector<1x1024xf32>
    %79 = vector.broadcast %78 : vector<1x1024xf32> to vector<16x1024xf32>
    %80 = arith.mulf %77, %79 : vector<16x1024xf32>
    %81 = arith.truncf %80 : vector<16x1024xf32> to vector<16x1024xbf16>
    %c48_45 = arith.constant 48 : index
    %c0_46 = arith.constant 0 : index
    %82 = vector.load %arg10[%c48_45, %c0_46] : memref<144x1024xbf16, #tpu.memory_space<vmem>>, vector<16x1024xbf16>
    tpu.vector_store %arg10[%c48_45, %c0_46], %81 {strides = array<i32>} : memref<144x1024xbf16, #tpu.memory_space<vmem>>, vector<16x1024xbf16>,
    %83 = arith.truncf %58 : vector<16x1024xf32> to vector<16x1024xbf16>
    %c64_47 = arith.constant 64 : index
    %c0_48 = arith.constant 0 : index
    %84 = vector.load %arg10[%c64_47, %c0_48] : memref<144x1024xbf16, #tpu.memory_space<vmem>>, vector<16x1024xbf16>
    tpu.vector_store %arg10[%c64_47, %c0_48], %83 {strides = array<i32>} : memref<144x1024xbf16, #tpu.memory_space<vmem>>, vector<16x1024xbf16>,
    %c1023_i32_49 = arith.constant 1023 : i32
    %85 = tpu.dynamic_rotate %58 by %c1023_i32_49 dim 1 : vector<16x1024xf32>, i32 -> vector<16x1024xf32>
    %c5_50 = arith.constant 5 : index
    %c0_51 = arith.constant 0 : index
    %86 = vector.load %arg2[%c5_50, %c0_51] : memref<9x1024xf32, #tpu.memory_space<vmem>>, vector<1x1024xf32>
    %87 = vector.broadcast %86 : vector<1x1024xf32> to vector<16x1024xf32>
    %88 = arith.mulf %85, %87 : vector<16x1024xf32>
    %89 = arith.truncf %88 : vector<16x1024xf32> to vector<16x1024xbf16>
    %c80_52 = arith.constant 80 : index
    %c0_53 = arith.constant 0 : index
    %90 = vector.load %arg10[%c80_52, %c0_53] : memref<144x1024xbf16, #tpu.memory_space<vmem>>, vector<16x1024xbf16>
    tpu.vector_store %arg10[%c80_52, %c0_53], %89 {strides = array<i32>} : memref<144x1024xbf16, #tpu.memory_space<vmem>>, vector<16x1024xbf16>,
    %c1009_i32_54 = arith.constant 1009 : i32
    %91 = tpu.dynamic_rotate %58 by %c1009_i32_54 dim 1 : vector<16x1024xf32>, i32 -> vector<16x1024xf32>
    %c6_55 = arith.constant 6 : index
    %c0_56 = arith.constant 0 : index
    %92 = vector.load %arg2[%c6_55, %c0_56] : memref<9x1024xf32, #tpu.memory_space<vmem>>, vector<1x1024xf32>
    %93 = vector.broadcast %92 : vector<1x1024xf32> to vector<16x1024xf32>
    %94 = arith.mulf %91, %93 : vector<16x1024xf32>
    %95 = arith.truncf %94 : vector<16x1024xf32> to vector<16x1024xbf16>
    %c96_57 = arith.constant 96 : index
    %c0_58 = arith.constant 0 : index
    %96 = vector.load %arg10[%c96_57, %c0_58] : memref<144x1024xbf16, #tpu.memory_space<vmem>>, vector<16x1024xbf16>
    tpu.vector_store %arg10[%c96_57, %c0_58], %95 {strides = array<i32>} : memref<144x1024xbf16, #tpu.memory_space<vmem>>, vector<16x1024xbf16>,
    %c1008_i32_59 = arith.constant 1008 : i32
    %97 = tpu.dynamic_rotate %58 by %c1008_i32_59 dim 1 : vector<16x1024xf32>, i32 -> vector<16x1024xf32>
    %c7_60 = arith.constant 7 : index
    %c0_61 = arith.constant 0 : index
    %98 = vector.load %arg2[%c7_60, %c0_61] : memref<9x1024xf32, #tpu.memory_space<vmem>>, vector<1x1024xf32>
    %99 = vector.broadcast %98 : vector<1x1024xf32> to vector<16x1024xf32>
    %100 = arith.mulf %97, %99 : vector<16x1024xf32>
    %101 = arith.truncf %100 : vector<16x1024xf32> to vector<16x1024xbf16>
    %c112_62 = arith.constant 112 : index
    %c0_63 = arith.constant 0 : index
    %102 = vector.load %arg10[%c112_62, %c0_63] : memref<144x1024xbf16, #tpu.memory_space<vmem>>, vector<16x1024xbf16>
    tpu.vector_store %arg10[%c112_62, %c0_63], %101 {strides = array<i32>} : memref<144x1024xbf16, #tpu.memory_space<vmem>>, vector<16x1024xbf16>,
    %c1007_i32_64 = arith.constant 1007 : i32
    %103 = tpu.dynamic_rotate %58 by %c1007_i32_64 dim 1 : vector<16x1024xf32>, i32 -> vector<16x1024xf32>
    %c8_65 = arith.constant 8 : index
    %c0_66 = arith.constant 0 : index
    %104 = vector.load %arg2[%c8_65, %c0_66] : memref<9x1024xf32, #tpu.memory_space<vmem>>, vector<1x1024xf32>
    %105 = vector.broadcast %104 : vector<1x1024xf32> to vector<16x1024xf32>
    %106 = arith.mulf %103, %105 : vector<16x1024xf32>
    %107 = arith.truncf %106 : vector<16x1024xf32> to vector<16x1024xbf16>
    %c128_67 = arith.constant 128 : index
    %c0_68 = arith.constant 0 : index
    %108 = vector.load %arg10[%c128_67, %c0_68] : memref<144x1024xbf16, #tpu.memory_space<vmem>>, vector<16x1024xbf16>
    tpu.vector_store %arg10[%c128_67, %c0_68], %107 {strides = array<i32>} : memref<144x1024xbf16, #tpu.memory_space<vmem>>, vector<16x1024xbf16>,
    %c0_69 = arith.constant 0 : index
    %c0_70 = arith.constant 0 : index
    %109 = vector.load %arg5[%c0_69, %c0_70] : memref<16x144xbf16, #tpu.memory_space<vmem>>, vector<16x144xbf16>
    %c0_71 = arith.constant 0 : index
    %c0_72 = arith.constant 0 : index
    %110 = vector.load %arg10[%c0_71, %c0_72] : memref<144x1024xbf16, #tpu.memory_space<vmem>>, vector<144x1024xbf16>
    %cst_73 = arith.constant dense<0.000000e+00> : vector<16x1024xf32>
    %111 = tpu.matmul %109, %110, %cst_73 {dimension_numbers = #tpu.dot_dimension_numbers<[1], [0], [0], [1], [0, 0, 1, 1], [], []>} : vector<16x144xbf16>, vector<144x1024xbf16>, vector<16x1024xf32> -> vector<16x1024xf32>
    %c0_74 = arith.constant 0 : index
    %c0_75 = arith.constant 0 : index
    %112 = vector.load %arg6[%c0_74, %c0_75] : memref<16x1xf32, #tpu.memory_space<vmem>>, vector<16x1xf32>
    %113 = vector.broadcast %112 : vector<16x1xf32> to vector<16x1024xf32>
    %114 = arith.addf %111, %113 : vector<16x1024xf32>
    %cst_76 = arith.constant 0.000000e+00 : f32
    %115 = vector.broadcast %cst_76 : f32 to vector<16x1024xf32>
    %116 = arith.maximumf %114, %115 : vector<16x1024xf32>
    %117 = vector.extract_strided_slice %116 {offsets = [0, 0], sizes = [16, 256], strides = [1, 1]} : vector<16x1024xf32> to vector<16x256xf32>
    %cst_77 = arith.constant dense<0.000000e+00> : vector<16xf32>
    %118 = vector.multi_reduction <add>, %117, %cst_77 [1] : vector<16x256xf32> to vector<16xf32>
    %119 = vector.shape_cast %118 : vector<16xf32> to vector<16x1xf32>
    %cst_78 = arith.constant 2.560000e+02 : f32
    %120 = vector.broadcast %cst_78 : f32 to vector<16x1xf32>
    %121 = arith.divf %119, %120 : vector<16x1xf32>
    %cst_79 = arith.constant dense<0xFF800000> : vector<16xf32>
    %122 = vector.multi_reduction <maximumf>, %117, %cst_79 [1] : vector<16x256xf32> to vector<16xf32>
    %123 = vector.shape_cast %122 : vector<16xf32> to vector<16x1xf32>
    %124 = vector.extract_strided_slice %116 {offsets = [0, 256], sizes = [16, 256], strides = [1, 1]} : vector<16x1024xf32> to vector<16x256xf32>
    %cst_80 = arith.constant dense<0.000000e+00> : vector<16xf32>
    %125 = vector.multi_reduction <add>, %124, %cst_80 [1] : vector<16x256xf32> to vector<16xf32>
    %126 = vector.shape_cast %125 : vector<16xf32> to vector<16x1xf32>
    %cst_81 = arith.constant 2.560000e+02 : f32
    %127 = vector.broadcast %cst_81 : f32 to vector<16x1xf32>
    %128 = arith.divf %126, %127 : vector<16x1xf32>
    %cst_82 = arith.constant dense<0xFF800000> : vector<16xf32>
    %129 = vector.multi_reduction <maximumf>, %124, %cst_82 [1] : vector<16x256xf32> to vector<16xf32>
    %130 = vector.shape_cast %129 : vector<16xf32> to vector<16x1xf32>
    %131 = vector.extract_strided_slice %116 {offsets = [0, 512], sizes = [16, 256], strides = [1, 1]} : vector<16x1024xf32> to vector<16x256xf32>
    %cst_83 = arith.constant dense<0.000000e+00> : vector<16xf32>
    %132 = vector.multi_reduction <add>, %131, %cst_83 [1] : vector<16x256xf32> to vector<16xf32>
    %133 = vector.shape_cast %132 : vector<16xf32> to vector<16x1xf32>
    %cst_84 = arith.constant 2.560000e+02 : f32
    %134 = vector.broadcast %cst_84 : f32 to vector<16x1xf32>
    %135 = arith.divf %133, %134 : vector<16x1xf32>
    %cst_85 = arith.constant dense<0xFF800000> : vector<16xf32>
    %136 = vector.multi_reduction <maximumf>, %131, %cst_85 [1] : vector<16x256xf32> to vector<16xf32>
    %137 = vector.shape_cast %136 : vector<16xf32> to vector<16x1xf32>
    %138 = vector.extract_strided_slice %116 {offsets = [0, 768], sizes = [16, 256], strides = [1, 1]} : vector<16x1024xf32> to vector<16x256xf32>
    %cst_86 = arith.constant dense<0.000000e+00> : vector<16xf32>
    %139 = vector.multi_reduction <add>, %138, %cst_86 [1] : vector<16x256xf32> to vector<16xf32>
    %140 = vector.shape_cast %139 : vector<16xf32> to vector<16x1xf32>
    %cst_87 = arith.constant 2.560000e+02 : f32
    %141 = vector.broadcast %cst_87 : f32 to vector<16x1xf32>
    %142 = arith.divf %140, %141 : vector<16x1xf32>
    %cst_88 = arith.constant dense<0xFF800000> : vector<16xf32>
    %143 = vector.multi_reduction <maximumf>, %138, %cst_88 [1] : vector<16x256xf32> to vector<16xf32>
    %144 = vector.shape_cast %143 : vector<16xf32> to vector<16x1xf32>
    %145 = tpu.concatenate %121, %128, %135, %142, %123, %130, %137, %144 in 1 : vector<16x1xf32>, vector<16x1xf32>, vector<16x1xf32>, vector<16x1xf32>, vector<16x1xf32>, vector<16x1xf32>, vector<16x1xf32>, vector<16x1xf32> -> vector<16x8xf32>
    %c0_89 = arith.constant 0 : index
    %c0_90 = arith.constant 0 : index
    %146 = vector.load %arg7[%c0_89, %c0_90] : memref<2x16xf32, #tpu.memory_space<vmem>>, vector<2x16xf32>
    %cst_91 = arith.constant dense<0.000000e+00> : vector<2x8xf32>
    %147 = tpu.matmul %146, %145, %cst_91 {dimension_numbers = #tpu.dot_dimension_numbers<[1], [0], [0], [1], [0, 0, 1, 1], [], []>} : vector<2x16xf32>, vector<16x8xf32>, vector<2x8xf32> -> vector<2x8xf32>
    %cst_92 = arith.constant 0.000000e+00 : f32
    %148 = vector.broadcast %cst_92 : f32 to vector<2x8xf32>
    %149 = arith.maximumf %147, %148 : vector<2x8xf32>
    %c0_93 = arith.constant 0 : index
    %c0_94 = arith.constant 0 : index
    %150 = vector.load %arg8[%c0_93, %c0_94] : memref<16x2xf32, #tpu.memory_space<vmem>>, vector<16x2xf32>
    %cst_95 = arith.constant dense<0.000000e+00> : vector<16x8xf32>
    %151 = tpu.matmul %150, %149, %cst_95 {dimension_numbers = #tpu.dot_dimension_numbers<[1], [0], [0], [1], [0, 0, 1, 1], [], []>} : vector<16x2xf32>, vector<2x8xf32>, vector<16x8xf32> -> vector<16x8xf32>
    %152 = vector.extract_strided_slice %151 {offsets = [0, 0], sizes = [16, 4], strides = [1, 1]} : vector<16x8xf32> to vector<16x4xf32>
    %153 = vector.extract_strided_slice %151 {offsets = [0, 4], sizes = [16, 4], strides = [1, 1]} : vector<16x8xf32> to vector<16x4xf32>
    %154 = arith.addf %152, %153 : vector<16x4xf32>
    %155 = arith.negf %154 : vector<16x4xf32>
    %156 = math.exp %155 : vector<16x4xf32>
    %cst_96 = arith.constant 1.000000e+00 : f32
    %157 = vector.broadcast %cst_96 : f32 to vector<16x4xf32>
    %158 = arith.addf %157, %156 : vector<16x4xf32>
    %159 = arith.divf %157, %158 : vector<16x4xf32>
    %160 = vector.extract_strided_slice %159 {offsets = [0, 0], sizes = [16, 1], strides = [1, 1]} : vector<16x4xf32> to vector<16x1xf32>
    %161 = vector.extract_strided_slice %116 {offsets = [0, 0], sizes = [16, 256], strides = [1, 1]} : vector<16x1024xf32> to vector<16x256xf32>
    %162 = vector.broadcast %160 : vector<16x1xf32> to vector<16x256xf32>
    %163 = arith.mulf %161, %162 : vector<16x256xf32>
    %c0_97 = arith.constant 0 : index
    %c0_98 = arith.constant 0 : index
    %164 = vector.load %arg9[%c0_97, %c0_98] : memref<16x1024xf32, #tpu.memory_space<vmem>>, vector<16x256xf32>
    tpu.vector_store %arg9[%c0_97, %c0_98], %163 {strides = array<i32>} : memref<16x1024xf32, #tpu.memory_space<vmem>>, vector<16x256xf32>,
    %165 = vector.extract_strided_slice %159 {offsets = [0, 1], sizes = [16, 1], strides = [1, 1]} : vector<16x4xf32> to vector<16x1xf32>
    %166 = vector.extract_strided_slice %116 {offsets = [0, 256], sizes = [16, 256], strides = [1, 1]} : vector<16x1024xf32> to vector<16x256xf32>
    %167 = vector.broadcast %165 : vector<16x1xf32> to vector<16x256xf32>
    %168 = arith.mulf %166, %167 : vector<16x256xf32>
    %c0_99 = arith.constant 0 : index
    %c256 = arith.constant 256 : index
    %169 = vector.load %arg9[%c0_99, %c256] : memref<16x1024xf32, #tpu.memory_space<vmem>>, vector<16x256xf32>
    tpu.vector_store %arg9[%c0_99, %c256], %168 {strides = array<i32>} : memref<16x1024xf32, #tpu.memory_space<vmem>>, vector<16x256xf32>,
    %170 = vector.extract_strided_slice %159 {offsets = [0, 2], sizes = [16, 1], strides = [1, 1]} : vector<16x4xf32> to vector<16x1xf32>
    %171 = vector.extract_strided_slice %116 {offsets = [0, 512], sizes = [16, 256], strides = [1, 1]} : vector<16x1024xf32> to vector<16x256xf32>
    %172 = vector.broadcast %170 : vector<16x1xf32> to vector<16x256xf32>
    %173 = arith.mulf %171, %172 : vector<16x256xf32>
    %c0_100 = arith.constant 0 : index
    %c512 = arith.constant 512 : index
    %174 = vector.load %arg9[%c0_100, %c512] : memref<16x1024xf32, #tpu.memory_space<vmem>>, vector<16x256xf32>
    tpu.vector_store %arg9[%c0_100, %c512], %173 {strides = array<i32>} : memref<16x1024xf32, #tpu.memory_space<vmem>>, vector<16x256xf32>,
    %175 = vector.extract_strided_slice %159 {offsets = [0, 3], sizes = [16, 1], strides = [1, 1]} : vector<16x4xf32> to vector<16x1xf32>
    %176 = vector.extract_strided_slice %116 {offsets = [0, 768], sizes = [16, 256], strides = [1, 1]} : vector<16x1024xf32> to vector<16x256xf32>
    %177 = vector.broadcast %175 : vector<16x1xf32> to vector<16x256xf32>
    %178 = arith.mulf %176, %177 : vector<16x256xf32>
    %c0_101 = arith.constant 0 : index
    %c768 = arith.constant 768 : index
    %179 = vector.load %arg9[%c0_101, %c768] : memref<16x1024xf32, #tpu.memory_space<vmem>>, vector<16x256xf32>
    tpu.vector_store %arg9[%c0_101, %c768], %178 {strides = array<i32>} : memref<16x1024xf32, #tpu.memory_space<vmem>>, vector<16x256xf32>,
    return
  }
  func.func @transform_0(%arg0: i32) -> (i32, i32) {
    %c0_i32 = arith.constant 0 : i32
    %c0_i32_0 = arith.constant 0 : i32
    return %c0_i32, %arg0 : i32, i32
  }
  func.func @transform_1(%arg0: i32) -> (i32, i32) {
    %c0_i32 = arith.constant 0 : i32
    %c0_i32_0 = arith.constant 0 : i32
    %c0_i32_1 = arith.constant 0 : i32
    return %c0_i32, %c0_i32_0 : i32, i32
  }
  func.func @transform_2(%arg0: i32) -> (i32, i32) {
    %c0_i32 = arith.constant 0 : i32
    %c0_i32_0 = arith.constant 0 : i32
    %c0_i32_1 = arith.constant 0 : i32
    return %c0_i32, %c0_i32_0 : i32, i32
  }
  func.func @transform_3(%arg0: i32) -> (i32, i32) {
    %c0_i32 = arith.constant 0 : i32
    %c0_i32_0 = arith.constant 0 : i32
    %c0_i32_1 = arith.constant 0 : i32
    return %c0_i32, %c0_i32_0 : i32, i32
  }
  func.func @transform_4(%arg0: i32) -> (i32, i32) {
    %c0_i32 = arith.constant 0 : i32
    %c0_i32_0 = arith.constant 0 : i32
    %c0_i32_1 = arith.constant 0 : i32
    return %c0_i32, %c0_i32_0 : i32, i32
  }
  func.func @transform_5(%arg0: i32) -> (i32, i32) {
    %c0_i32 = arith.constant 0 : i32
    %c0_i32_0 = arith.constant 0 : i32
    %c0_i32_1 = arith.constant 0 : i32
    return %c0_i32, %c0_i32_0 : i32, i32
  }
  func.func @transform_6(%arg0: i32) -> (i32, i32) {
    %c0_i32 = arith.constant 0 : i32
    %c0_i32_0 = arith.constant 0 : i32
    %c0_i32_1 = arith.constant 0 : i32
    return %c0_i32, %c0_i32_0 : i32, i32
  }
  func.func @transform_7(%arg0: i32) -> (i32, i32) {
    %c0_i32 = arith.constant 0 : i32
    %c0_i32_0 = arith.constant 0 : i32
    %c0_i32_1 = arith.constant 0 : i32
    return %c0_i32, %c0_i32_0 : i32, i32
  }
  func.func @transform_8(%arg0: i32) -> (i32, i32) {
    %c0_i32 = arith.constant 0 : i32
    %c0_i32_0 = arith.constant 0 : i32
    return %c0_i32, %arg0 : i32, i32
  }
}

</mosaic_0001>

<llo_original>
// kernel: tpu_custom_call.1
$region0: #{tpu_custom_call.1}
  #allocation0 [shape = 'u32[]', space=smem, size = 0x4, offset = 0x4, fixed_abs, tag = 'smem constant byte address 0x4 - core index']
  #allocation1 [shape = 'u32[144,128]{1,0:T(1,128)}', space=vmem, size = 0x12000, scoped, tag = 'internal scratch']
  #allocation2 [shape = 'bf16[144,1024]{1,0:T(16,128)(2,1)}', space=vmem, size = 0x48000, scoped, tag = 'scratch operand']
  %s0 = inlined_call_operand.hbm [shape: f32[16,2048], index: 0, kind: input, shape index: {}]
  %s1 = inlined_call_operand.hbm [shape: f32[9,1024], index: 1, kind: input, shape index: {}]
  %s2 = inlined_call_operand.vmem [shape: bf16[16,144], index: 2, kind: input, shape index: {}]
  %s3 = inlined_call_operand.vmem [shape: f32[16,1], index: 3, kind: input, shape index: {}]
  %s4 = inlined_call_operand.vmem [shape: bf16[16,144], index: 4, kind: input, shape index: {}]
  %s5 = inlined_call_operand.vmem [shape: f32[16,1], index: 5, kind: input, shape index: {}]
  %s6 = inlined_call_operand.vmem [shape: f32[2,16], index: 6, kind: input, shape index: {}]
  %s7 = inlined_call_operand.vmem [shape: f32[16,2], index: 7, kind: input, shape index: {}]
  %s8 = inlined_call_operand.hbm [shape: f32[16,2048], index: 8, kind: output, shape index: {}]
  %s9 = sld [smem:[#allocation0]]
  $region73: #{tpu_custom_call.1} parent=0
    _
  %s11 = ssub.s32 1, %s9
  %s12 = scalar_select 0, %s11, %s9
  $region1: #{tpu_custom_call.1} parent=0
    #allocation3 [shape = 'u8[131072]{0}', space=vmem, size = 0x20000, scoped, tag = 'input window, operand 0']
    #allocation4 [shape = 's32[2]{0}', space=sflag, size = 0x8, scoped, tag = 'scoped memory for tpu_custom_call.1']
    #allocation5 [shape = 's32[2]{0}', space=sflag, size = 0x8, scoped, tag = 'scoped memory for tpu_custom_call.1']
    #allocation6 [shape = 'u8[65536]{0}', space=vmem, size = 0x10000, scoped, tag = 'input window, operand 1, single buffered']
    #allocation7 [shape = 's32[1]{0}', space=sflag, size = 0x4, scoped, tag = 'scoped memory for tpu_custom_call.1']
    #allocation8 [shape = 'u8[131072]{0}', space=vmem, size = 0x20000, scoped, tag = 'output window, operand 0']
    %13 = vsyncpa [#allocation4], 0
    %s14 = scalar_lea.sflag [#allocation4], 1
    %15 = vsyncpa %s14, 0
    %16 = vsyncpa [#allocation7], 0
    %17 = vsyncpa [#allocation5], 0
    %s18 = scalar_lea.sflag [#allocation5], 1
    %19 = vsyncpa %s18, 0
    loop: start=0, step=1, limit=4
    $region2: #{tpu_custom_call.1} parent=1 // loop_pre_header
      _
    $region3: #{tpu_custom_call.1} parent=1 // loop_header
      %s21 = sphi 0, %s25
      %p22 = scmp.ge.s32.totalorder %s21, 4
      %s31 = sphi 0, %s33
      %s34 = sphi 0, %s31
      %s35 = sphi 0, %s34
      %s51 = sphi 0, %s35
      %s55 = sphi 0, %s55
      %s57 = sphi 0, %s55
      %s58 = sphi 0, %s57
      %s72 = sphi 0, %s58
      %s76 = sphi 0, %s76
      %s78 = sphi 0, %s76
      %s79 = sphi 0, %s78
      %s93 = sphi 0, %s79
      %s97 = sphi 0, %s97
      %s99 = sphi 0, %s97
      %s100 = sphi 0, %s99
      %s114 = sphi 0, %s100
      %s118 = sphi 0, %s118
      %s120 = sphi 0, %s118
      %s121 = sphi 0, %s120
      %s135 = sphi 0, %s121
      %s139 = sphi 0, %s139
      %s141 = sphi 0, %s139
      %s142 = sphi 0, %s141
      %s156 = sphi 0, %s142
      %s160 = sphi 0, %s160
      %s162 = sphi 0, %s160
      %s163 = sphi 0, %s162
      %s177 = sphi 0, %s163
      %s181 = sphi 0, %s181
      %s183 = sphi 0, %s181
      %s184 = sphi 0, %s183
      %s198 = sphi 0, %s184
      %s204 = sphi 0, %s206
      %s207 = sphi 0, %s204
      %s208 = sphi 0, %s207
      %s224 = sphi 0, %s208
    $region4: #{tpu_custom_call.1} parent=1 // loop_header_branch
      %24 = sbr.rel (%p22) target = $region8
    $region5: #{tpu_custom_call.1} parent=1 // loop_body
      %s26 = ssub.s32 %s21, 1
      %s27 = ssub.s32 %s21, 2
      %s28 = sadd.s32 %s21, 1
      %s29 = ssub.s32 %s21, %s28
      %p30 = scmp.eq.s32.totalorder %s29, 0
      %s32 = sadd.s32 %s31, 1
      %s33 = scalar_select %p30, %s31, %s32
      %p36 = pneg %p30
      %p37 = scmp.eq.s32.totalorder %s21, 1
      %p38 = por %p36, %p37
      %p39 = scmp.ne.s32.totalorder %s31, %s34
      %p40 = scmp.eq.s32.totalorder %s21, 0
      %p41 = por %p39, %p40
      %p42 = scmp.ne.s32.totalorder %s31, %s34
      %p43 = scmp.eq.s32.totalorder %s26, 1
      %p44 = por %p42, %p43
      %p45 = scmp.ne.s32.totalorder %s34, %s35
      %p46 = scmp.eq.s32.totalorder %s26, 0
      %p47 = por %p45, %p46
      %p48 = scmp.ne.s32.totalorder %s34, %s35
      %p49 = scmp.eq.s32.totalorder %s27, 1
      %p50 = por %p48, %p49
      %p52 = scmp.ne.s32.totalorder %s35, %s51
      %p53 = scmp.eq.s32.totalorder %s27, 0
      %p54 = por %p52, %p53
      %s56 = sadd.s32 %s55, 1
      %p59 = scmp.eq.s32.totalorder %s21, 1
      %p60 = scmp.ne.s32.totalorder %s55, %s57
      %p61 = scmp.eq.s32.totalorder %s21, 0
      %p62 = por %p60, %p61
      %p63 = scmp.ne.s32.totalorder %s55, %s57
      %p64 = scmp.eq.s32.totalorder %s26, 1
      %p65 = por %p63, %p64
      %p66 = scmp.ne.s32.totalorder %s57, %s58
      %p67 = scmp.eq.s32.totalorder %s26, 0
      %p68 = por %p66, %p67
      %p69 = scmp.ne.s32.totalorder %s57, %s58
      %p70 = scmp.eq.s32.totalorder %s27, 1
      %p71 = por %p69, %p70
      %p73 = scmp.ne.s32.totalorder %s58, %s72
      %p74 = scmp.eq.s32.totalorder %s27, 0
      %p75 = por %p73, %p74
      %s77 = sadd.s32 %s76, 1
      %p80 = scmp.eq.s32.totalorder %s21, 1
      %p81 = scmp.ne.s32.totalorder %s76, %s78
      %p82 = scmp.eq.s32.totalorder %s21, 0
      %p83 = por %p81, %p82
      %p84 = scmp.ne.s32.totalorder %s76, %s78
      %p85 = scmp.eq.s32.totalorder %s26, 1
      %p86 = por %p84, %p85
      %p87 = scmp.ne.s32.totalorder %s78, %s79
      %p88 = scmp.eq.s32.totalorder %s26, 0
      %p89 = por %p87, %p88
      %p90 = scmp.ne.s32.totalorder %s78, %s79
      %p91 = scmp.eq.s32.totalorder %s27, 1
      %p92 = por %p90, %p91
      %p94 = scmp.ne.s32.totalorder %s79, %s93
      %p95 = scmp.eq.s32.totalorder %s27, 0
      %p96 = por %p94, %p95
      %s98 = sadd.s32 %s97, 1
      %p101 = scmp.eq.s32.totalorder %s21, 1
      %p102 = scmp.ne.s32.totalorder %s97, %s99
      %p103 = scmp.eq.s32.totalorder %s21, 0
      %p104 = por %p102, %p103
      %p105 = scmp.ne.s32.totalorder %s97, %s99
      %p106 = scmp.eq.s32.totalorder %s26, 1
      %p107 = por %p105, %p106
      %p108 = scmp.ne.s32.totalorder %s99, %s100
      %p109 = scmp.eq.s32.totalorder %s26, 0
      %p110 = por %p108, %p109
      %p111 = scmp.ne.s32.totalorder %s99, %s100
      %p112 = scmp.eq.s32.totalorder %s27, 1
      %p113 = por %p111, %p112
      %p115 = scmp.ne.s32.totalorder %s100, %s114
      %p116 = scmp.eq.s32.totalorder %s27, 0
      %p117 = por %p115, %p116
      %s119 = sadd.s32 %s118, 1
      %p122 = scmp.eq.s32.totalorder %s21, 1
      %p123 = scmp.ne.s32.totalorder %s118, %s120
      %p124 = scmp.eq.s32.totalorder %s21, 0
      %p125 = por %p123, %p124
      %p126 = scmp.ne.s32.totalorder %s118, %s120
      %p127 = scmp.eq.s32.totalorder %s26, 1
      %p128 = por %p126, %p127
      %p129 = scmp.ne.s32.totalorder %s120, %s121
      %p130 = scmp.eq.s32.totalorder %s26, 0
      %p131 = por %p129, %p130
      %p132 = scmp.ne.s32.totalorder %s120, %s121
      %p133 = scmp.eq.s32.totalorder %s27, 1
      %p134 = por %p132, %p133
      %p136 = scmp.ne.s32.totalorder %s121, %s135
      %p137 = scmp.eq.s32.totalorder %s27, 0
      %p138 = por %p136, %p137
      %s140 = sadd.s32 %s139, 1
      %p143 = scmp.eq.s32.totalorder %s21, 1
      %p144 = scmp.ne.s32.totalorder %s139, %s141
      %p145 = scmp.eq.s32.totalorder %s21, 0
      %p146 = por %p144, %p145
      %p147 = scmp.ne.s32.totalorder %s139, %s141
      %p148 = scmp.eq.s32.totalorder %s26, 1
      %p149 = por %p147, %p148
      %p150 = scmp.ne.s32.totalorder %s141, %s142
      %p151 = scmp.eq.s32.totalorder %s26, 0
      %p152 = por %p150, %p151
      %p153 = scmp.ne.s32.totalorder %s141, %s142
      %p154 = scmp.eq.s32.totalorder %s27, 1
      %p155 = por %p153, %p154
      %p157 = scmp.ne.s32.totalorder %s142, %s156
      %p158 = scmp.eq.s32.totalorder %s27, 0
      %p159 = por %p157, %p158
      %s161 = sadd.s32 %s160, 1
      %p164 = scmp.eq.s32.totalorder %s21, 1
      %p165 = scmp.ne.s32.totalorder %s160, %s162
      %p166 = scmp.eq.s32.totalorder %s21, 0
      %p167 = por %p165, %p166
      %p168 = scmp.ne.s32.totalorder %s160, %s162
      %p169 = scmp.eq.s32.totalorder %s26, 1
      %p170 = por %p168, %p169
      %p171 = scmp.ne.s32.totalorder %s162, %s163
      %p172 = scmp.eq.s32.totalorder %s26, 0
      %p173 = por %p171, %p172
      %p174 = scmp.ne.s32.totalorder %s162, %s163
      %p175 = scmp.eq.s32.totalorder %s27, 1
      %p176 = por %p174, %p175
      %p178 = scmp.ne.s32.totalorder %s163, %s177
      %p179 = scmp.eq.s32.totalorder %s27, 0
      %p180 = por %p178, %p179
      %s182 = sadd.s32 %s181, 1
      %p185 = scmp.eq.s32.totalorder %s21, 1
      %p186 = scmp.ne.s32.totalorder %s181, %s183
      %p187 = scmp.eq.s32.totalorder %s21, 0
      %p188 = por %p186, %p187
      %p189 = scmp.ne.s32.totalorder %s181, %s183
      %p190 = scmp.eq.s32.totalorder %s26, 1
      %p191 = por %p189, %p190
      %p192 = scmp.ne.s32.totalorder %s183, %s184
      %p193 = scmp.eq.s32.totalorder %s26, 0
      %p194 = por %p192, %p193
      %p195 = scmp.ne.s32.totalorder %s183, %s184
      %p196 = scmp.eq.s32.totalorder %s27, 1
      %p197 = por %p195, %p196
      %p199 = scmp.ne.s32.totalorder %s184, %s198
      %p200 = scmp.eq.s32.totalorder %s27, 0
      %p201 = por %p199, %p200
      %s202 = ssub.s32 %s21, %s28
      %p203 = scmp.eq.s32.totalorder %s202, 0
      %s205 = sadd.s32 %s204, 1
      %s206 = scalar_select %p203, %s204, %s205
      %p209 = pneg %p203
      %p210 = scmp.eq.s32.totalorder %s21, 1
      %p211 = por %p209, %p210
      %p212 = scmp.ne.s32.totalorder %s204, %s207
      %p213 = scmp.eq.s32.totalorder %s21, 0
      %p214 = por %p212, %p213
      %p215 = scmp.ne.s32.totalorder %s204, %s207
      %p216 = scmp.eq.s32.totalorder %s26, 1
      %p217 = por %p215, %p216
      %p218 = scmp.ne.s32.totalorder %s207, %s208
      %p219 = scmp.eq.s32.totalorder %s26, 0
      %p220 = por %p218, %p219
      %p221 = scmp.ne.s32.totalorder %s207, %s208
      %p222 = scmp.eq.s32.totalorder %s27, 1
      %p223 = por %p221, %p222
      %p225 = scmp.ne.s32.totalorder %s208, %s224
      %p226 = scmp.eq.s32.totalorder %s27, 0
      %p227 = por %p225, %p226
      %p228 = scmp.le.s32.totalorder 1, %s21
      %p229 = scmp.lt.s32.totalorder %s21, 3
      %p230 = pnand %p228, %p229
      %p231 = pneg %p230
      // Predicated region
      $region9: #{tpu_custom_call.1} parent=5 // pred_check
        _
      $region10: #{tpu_custom_call.1} parent=5 // pred_check_branch
        %233 = sbr.rel (%p230) target = $region12
      $region11: #{tpu_custom_call.1} parent=5 // pred_region
        %s234 = ssub.s32 %s21, 1
        // Predicated region
        $region13: #{tpu_custom_call.1} parent=11 // pred_check
          %p235 = pneg %p68
        $region14: #{tpu_custom_call.1} parent=11 // pred_check_branch
          %237 = sbr.rel (%p235) target = $region16
        $region15: #{tpu_custom_call.1} parent=11 // pred_region
          %s239 = ssub.s32 2048, 2048
          %240 = vsyncadd [#allocation7], %s239
          %s241 = sshll.u32 [#allocation6], 4
          %s242 = int_to_ptr.vmem [resolvable:$true] %s241
          %247 = dma.hbm_to_vmem [thread:$0]  %s1, 2048, %s242, [#allocation7], 1024, 1024, 64
        $region16: #{tpu_custom_call.1} parent=11 // pred_fallthru
          _
        // Predicated region
        $region17: #{tpu_custom_call.1} parent=11 // pred_check
          %p248 = pneg %p89
        $region18: #{tpu_custom_call.1} parent=11 // pred_check_branch
          %250 = sbr.rel (%p248) target = $region20
        $region19: #{tpu_custom_call.1} parent=11 // pred_region
          _
        $region20: #{tpu_custom_call.1} parent=11 // pred_fallthru
          _
        // Predicated region
        $region21: #{tpu_custom_call.1} parent=11 // pred_check
          %p251 = pneg %p110
        $region22: #{tpu_custom_call.1} parent=11 // pred_check_branch
          %253 = sbr.rel (%p251) target = $region24
        $region23: #{tpu_custom_call.1} parent=11 // pred_region
          _
        $region24: #{tpu_custom_call.1} parent=11 // pred_fallthru
          _
        // Predicated region
        $region25: #{tpu_custom_call.1} parent=11 // pred_check
          %p254 = pneg %p131
        $region26: #{tpu_custom_call.1} parent=11 // pred_check_branch
          %256 = sbr.rel (%p254) target = $region28
        $region27: #{tpu_custom_call.1} parent=11 // pred_region
          _
        $region28: #{tpu_custom_call.1} parent=11 // pred_fallthru
          _
        // Predicated region
        $region29: #{tpu_custom_call.1} parent=11 // pred_check
          %p257 = pneg %p152
        $region30: #{tpu_custom_call.1} parent=11 // pred_check_branch
          %259 = sbr.rel (%p257) target = $region32
        $region31: #{tpu_custom_call.1} parent=11 // pred_region
          _
        $region32: #{tpu_custom_call.1} parent=11 // pred_fallthru
          _
        // Predicated region
        $region33: #{tpu_custom_call.1} parent=11 // pred_check
          %p260 = pneg %p173
        $region34: #{tpu_custom_call.1} parent=11 // pred_check_branch
          %262 = sbr.rel (%p260) target = $region36
        $region35: #{tpu_custom_call.1} parent=11 // pred_region
          _
        $region36: #{tpu_custom_call.1} parent=11 // pred_fallthru
          _
        // Predicated region
        $region37: #{tpu_custom_call.1} parent=11 // pred_check
          %p263 = pneg %p194
        $region38: #{tpu_custom_call.1} parent=11 // pred_check_branch
          %265 = sbr.rel (%p263) target = $region40
        $region39: #{tpu_custom_call.1} parent=11 // pred_region
          _
        $region40: #{tpu_custom_call.1} parent=11 // pred_fallthru
          _
      $region12: #{tpu_custom_call.1} parent=5 // pred_fallthru
        _
      %p266 = scmp.lt.s32.totalorder %s21, 2
      // Predicated region
      $region41: #{tpu_custom_call.1} parent=5 // pred_check
        %p267 = pneg %p266
      $region42: #{tpu_custom_call.1} parent=5 // pred_check_branch
        %269 = sbr.rel (%p267) target = $region44
      $region43: #{tpu_custom_call.1} parent=5 // pred_region
        // Predicated region
        $region45: #{tpu_custom_call.1} parent=43 // pred_check
          %p270 = pneg %p41
        $region46: #{tpu_custom_call.1} parent=43 // pred_check_branch
          %272 = sbr.rel (%p270) target = $region48
        $region47: #{tpu_custom_call.1} parent=43 // pred_region
          %s273 = sand.u32 %s31, 1
          %s274 = scalar_lea.sflag [#allocation4], %s273
          %s275 = sand.u32 %s31, 1
          %s276 = smul.addr %s275, 128
          %s277 = scalar_lea.vmem [#allocation3], %s276
          %s278 = smul.u32 8, %s21
          %s280 = ssub.s32 2048, 2048
          %281 = vsyncadd %s274, %s280
          %s282 = smul.addr %s278, 128
          %s283 = scalar_lea.hbm %s0, %s282
          %s284 = sshll.u32 %s277, 4
          %s285 = int_to_ptr.vmem [resolvable:$true] %s284
          %290 = dma.hbm_to_vmem [thread:$0]  %s283, 2048, %s285, %s274, 2048, 1024, 64
        $region48: #{tpu_custom_call.1} parent=43 // pred_fallthru
          _
      $region44: #{tpu_custom_call.1} parent=5 // pred_fallthru
        _
      %p291 = scmp.le.s32.totalorder 1, %s21
      %p292 = scmp.lt.s32.totalorder %s21, 3
      %p293 = pnand %p291, %p292
      %p294 = pneg %p293
      // Predicated region
      $region49: #{tpu_custom_call.1} parent=5 // pred_check
        _
      $region50: #{tpu_custom_call.1} parent=5 // pred_check_branch
        %296 = sbr.rel (%p293) target = $region52
      $region51: #{tpu_custom_call.1} parent=5 // pred_region
        %s297 = ssub.s32 %s21, 1
        %s298 = sand.u32 %s34, 1
        %s299 = scalar_lea.sflag [#allocation4], %s298
        %s300 = sand.u32 %s34, 1
        %s301 = smul.addr %s300, 128
        %s302 = scalar_lea.vmem [#allocation3], %s301
        // Predicated region
        $region53: #{tpu_custom_call.1} parent=51 // pred_check
          %p303 = pneg %p47
        $region54: #{tpu_custom_call.1} parent=51 // pred_check_branch
          %305 = sbr.rel (%p303) target = $region56
        $region55: #{tpu_custom_call.1} parent=51 // pred_region
          %306 = dma.done %s299, 2048
        $region56: #{tpu_custom_call.1} parent=51 // pred_fallthru
          _
        // Predicated region
        $region57: #{tpu_custom_call.1} parent=51 // pred_check
          %p307 = pneg %p68
        $region58: #{tpu_custom_call.1} parent=51 // pred_check_branch
          %309 = sbr.rel (%p307) target = $region60
        $region59: #{tpu_custom_call.1} parent=51 // pred_region
          %310 = dma.done [#allocation7], 2048
        $region60: #{tpu_custom_call.1} parent=51 // pred_fallthru
          _
        %s311 = sand.u32 %s34, 1
        %s312 = scalar_lea.sflag [#allocation4], %s311
        %s313 = sand.u32 %s34, 1
        %s314 = smul.addr %s313, 128
        %s315 = scalar_lea.vmem [#allocation3], %s314
        %p316 = pneg %p47
        %p317 = pneg %p44
        %p318 = pneg %p68
        %p319 = pneg %p65
        %p320 = pneg %p89
        %p321 = pneg %p86
        %p322 = pneg %p110
        %p323 = pneg %p107
        %p324 = pneg %p131
        %p325 = pneg %p128
        %p326 = pneg %p152
        %p327 = pneg %p149
        %p328 = pneg %p173
        %p329 = pneg %p170
        %p330 = pneg %p194
        %p331 = pneg %p191
        %p332 = pneg %p220
        %p333 = pneg %p217
        %s334 = sand.u32 %s207, 1
        %s335 = scalar_lea.sflag [#allocation5], %s334
        %s336 = sand.u32 %s207, 1
        %s337 = smul.addr %s336, 128
        %s338 = scalar_lea.vmem [#allocation8], %s337
        %s339 = smul.u32 8, %s26
        %s340 = smul.u32 8, %s26
        %v342 = vld [vmem:[%s302] sm:$0xff]
        %v343 = vld [vmem:[%s302 + $0x8] sm:$0xff]
        %v344 = vld [vmem:[%s302 + $0x10] sm:$0xff]
        %v345 = vld [vmem:[%s302 + $0x18] sm:$0xff]
        %v346 = vld [vmem:[%s302 + $0x20] sm:$0xff]
        %v347 = vld [vmem:[%s302 + $0x28] sm:$0xff]
        %v348 = vld [vmem:[%s302 + $0x30] sm:$0xff]
        %v349 = vld [vmem:[%s302 + $0x38] sm:$0xff]
        %v350 = vld [vmem:[%s302 + $0x40] sm:$0xff]
        %v351 = vld [vmem:[%s302 + $0x48] sm:$0xff]
        %v352 = vld [vmem:[%s302 + $0x50] sm:$0xff]
        %v353 = vld [vmem:[%s302 + $0x58] sm:$0xff]
        %v354 = vld [vmem:[%s302 + $0x60] sm:$0xff]
        %v355 = vld [vmem:[%s302 + $0x68] sm:$0xff]
        %v356 = vld [vmem:[%s302 + $0x70] sm:$0xff]
        %v357 = vld [vmem:[%s302 + $0x78] sm:$0xff]
        %358 = vrot.lane.b32.xlu0 %v342, 17
        %v359 = vpop.permute.xlu0 %358
        %360 = vrot.lane.b32.xlu0 %v350, 17
        %v361 = vpop.permute.xlu0 %360
        %362 = vrot.lane.b32.xlu0 %v343, 17
        %v363 = vpop.permute.xlu0 %362
        %364 = vrot.lane.b32.xlu0 %v351, 17
        %v365 = vpop.permute.xlu0 %364
        %366 = vrot.lane.b32.xlu0 %v344, 17
        %v367 = vpop.permute.xlu0 %366
        %368 = vrot.lane.b32.xlu0 %v352, 17
        %v369 = vpop.permute.xlu0 %368
        %370 = vrot.lane.b32.xlu0 %v345, 17
        %v371 = vpop.permute.xlu0 %370
        %372 = vrot.lane.b32.xlu0 %v353, 17
        %v373 = vpop.permute.xlu0 %372
        %374 = vrot.lane.b32.xlu0 %v346, 17
        %v375 = vpop.permute.xlu0 %374
        %376 = vrot.lane.b32.xlu0 %v354, 17
        %v377 = vpop.permute.xlu0 %376
        %378 = vrot.lane.b32.xlu0 %v347, 17
        %v379 = vpop.permute.xlu0 %378
        %380 = vrot.lane.b32.xlu0 %v355, 17
        %v381 = vpop.permute.xlu0 %380
        %382 = vrot.lane.b32.xlu0 %v348, 17
        %v383 = vpop.permute.xlu0 %382
        %384 = vrot.lane.b32.xlu0 %v356, 17
        %v385 = vpop.permute.xlu0 %384
        %386 = vrot.lane.b32.xlu0 %v349, 17
        %v387 = vpop.permute.xlu0 %386
        %388 = vrot.lane.b32.xlu0 %v357, 17
        %v389 = vpop.permute.xlu0 %388
        %v390 = vlaneseq
        %v391 = vand.u32 %v390, 127
        %vm392 = vcmp.lt.s32.totalorder %v391, 17
        %v393 = vsel %vm392, %v383, %v387
        %v394 = vsel %vm392, %v385, %v389
        %v395 = vsel %vm392, %v379, %v383
        %v396 = vsel %vm392, %v381, %v385
        %v397 = vsel %vm392, %v375, %v379
        %v398 = vsel %vm392, %v377, %v381
        %v399 = vsel %vm392, %v371, %v375
        %v400 = vsel %vm392, %v373, %v377
        %v401 = vsel %vm392, %v367, %v371
        %v402 = vsel %vm392, %v369, %v373
        %v403 = vsel %vm392, %v363, %v367
        %v404 = vsel %vm392, %v365, %v369
        %v405 = vsel %vm392, %v359, %v363
        %v406 = vsel %vm392, %v361, %v365
        %v407 = vsel %vm392, %v387, %v359
        %v408 = vsel %vm392, %v389, %v361
        %v409 = vld [vmem:[#allocation6] ss:$8 sm:$0xf]
        %v410 = vld [vmem:[#allocation6] ss:$8 sm:$0xf0]
        %v411 = vor.u32 %v409, %v410
        %v413 = vlaneseq
        %v414 = vshrl.u32 %v413, 7
        %v415 = vsub.s32 0, %v414
        %v416 = vrot.slane %v411, %v415
        %v417 = vlaneseq
        %v418 = vshrl.u32 %v417, 7
        %v419 = vsub.s32 1, %v418
        %v420 = vrot.slane %v411, %v419
        %v421 = vlaneseq
        %v422 = vshrl.u32 %v421, 7
        %v423 = vsub.s32 2, %v422
        %v424 = vrot.slane %v411, %v423
        %v425 = vlaneseq
        %v426 = vshrl.u32 %v425, 7
        %v427 = vsub.s32 3, %v426
        %v428 = vrot.slane %v411, %v427
        %v429 = vlaneseq
        %v430 = vshrl.u32 %v429, 7
        %v431 = vsub.s32 4, %v430
        %v432 = vrot.slane %v411, %v431
        %v433 = vlaneseq
        %v434 = vshrl.u32 %v433, 7
        %v435 = vsub.s32 5, %v434
        %v436 = vrot.slane %v411, %v435
        %v437 = vlaneseq
        %v438 = vshrl.u32 %v437, 7
        %v439 = vsub.s32 6, %v438
        %v440 = vrot.slane %v411, %v439
        %v441 = vlaneseq
        %v442 = vshrl.u32 %v441, 7
        %v443 = vsub.s32 7, %v442
        %v444 = vrot.slane %v411, %v443
        %v453 = vmul.f32 %v407, %v416
        %v454 = vmul.f32 %v405, %v420
        %v455 = vmul.f32 %v403, %v424
        %v456 = vmul.f32 %v401, %v428
        %v457 = vmul.f32 %v399, %v432
        %v458 = vmul.f32 %v397, %v436
        %v459 = vmul.f32 %v395, %v440
        %v460 = vmul.f32 %v393, %v444
        %v461 = vmul.f32 %v408, %v416
        %v462 = vmul.f32 %v406, %v420
        %v463 = vmul.f32 %v404, %v424
        %v464 = vmul.f32 %v402, %v428
        %v465 = vmul.f32 %v400, %v432
        %v466 = vmul.f32 %v398, %v436
        %v467 = vmul.f32 %v396, %v440
        %v468 = vmul.f32 %v394, %v444
        %v469 = vpack.c.bf16 %v461, %v453
        %v470 = vpack.c.bf16 %v462, %v454
        %v471 = vpack.c.bf16 %v463, %v455
        %v472 = vpack.c.bf16 %v464, %v456
        %v473 = vpack.c.bf16 %v465, %v457
        %v474 = vpack.c.bf16 %v466, %v458
        %v475 = vpack.c.bf16 %v467, %v459
        %v476 = vpack.c.bf16 %v468, %v460
        %477 = vst [vmem:[#allocation2] sm:$0xff] %v469
        %478 = vst [vmem:[#allocation2 + $0x8] sm:$0xff] %v470
        %479 = vst [vmem:[#allocation2 + $0x10] sm:$0xff] %v471
        %480 = vst [vmem:[#allocation2 + $0x18] sm:$0xff] %v472
        %481 = vst [vmem:[#allocation2 + $0x20] sm:$0xff] %v473
        %482 = vst [vmem:[#allocation2 + $0x28] sm:$0xff] %v474
        %483 = vst [vmem:[#allocation2 + $0x30] sm:$0xff] %v475
        %484 = vst [vmem:[#allocation2 + $0x38] sm:$0xff] %v476
        %485 = vrot.lane.b32.xlu0 %v342, 16
        %v486 = vpop.permute.xlu0 %485
        %487 = vrot.lane.b32.xlu0 %v350, 16
        %v488 = vpop.permute.xlu0 %487
        %489 = vrot.lane.b32.xlu0 %v343, 16
        %v490 = vpop.permute.xlu0 %489
        %491 = vrot.lane.b32.xlu0 %v351, 16
        %v492 = vpop.permute.xlu0 %491
        %493 = vrot.lane.b32.xlu0 %v344, 16
        %v494 = vpop.permute.xlu0 %493
        %495 = vrot.lane.b32.xlu0 %v352, 16
        %v496 = vpop.permute.xlu0 %495
        %497 = vrot.lane.b32.xlu0 %v345, 16
        %v498 = vpop.permute.xlu0 %497
        %499 = vrot.lane.b32.xlu0 %v353, 16
        %v500 = vpop.permute.xlu0 %499
        %501 = vrot.lane.b32.xlu0 %v346, 16
        %v502 = vpop.permute.xlu0 %501
        %503 = vrot.lane.b32.xlu0 %v354, 16
        %v504 = vpop.permute.xlu0 %503
        %505 = vrot.lane.b32.xlu0 %v347, 16
        %v506 = vpop.permute.xlu0 %505
        %507 = vrot.lane.b32.xlu0 %v355, 16
        %v508 = vpop.permute.xlu0 %507
        %509 = vrot.lane.b32.xlu0 %v348, 16
        %v510 = vpop.permute.xlu0 %509
        %511 = vrot.lane.b32.xlu0 %v356, 16
        %v512 = vpop.permute.xlu0 %511
        %513 = vrot.lane.b32.xlu0 %v349, 16
        %v514 = vpop.permute.xlu0 %513
        %515 = vrot.lane.b32.xlu0 %v357, 16
        %v516 = vpop.permute.xlu0 %515
        %vm517 = vcmp.lt.s32.totalorder %v391, 16
        %v518 = vsel %vm517, %v510, %v514
        %v519 = vsel %vm517, %v512, %v516
        %v520 = vsel %vm517, %v506, %v510
        %v521 = vsel %vm517, %v508, %v512
        %v522 = vsel %vm517, %v502, %v506
        %v523 = vsel %vm517, %v504, %v508
        %v524 = vsel %vm517, %v498, %v502
        %v525 = vsel %vm517, %v500, %v504
        %v526 = vsel %vm517, %v494, %v498
        %v527 = vsel %vm517, %v496, %v500
        %v528 = vsel %vm517, %v490, %v494
        %v529 = vsel %vm517, %v492, %v496
        %v530 = vsel %vm517, %v486, %v490
        %v531 = vsel %vm517, %v488, %v492
        %v532 = vsel %vm517, %v514, %v486
        %v533 = vsel %vm517, %v516, %v488
        %s534 = scalar_lea.vmem [#allocation6], 1
        %v535 = vld [vmem:[%s534] ss:$8 sm:$0xf]
        %v536 = vld [vmem:[%s534] ss:$8 sm:$0xf0]
        %v537 = vor.u32 %v535, %v536
        %v539 = vlaneseq
        %v540 = vshrl.u32 %v539, 7
        %v541 = vsub.s32 0, %v540
        %v542 = vrot.slane %v537, %v541
        %v543 = vlaneseq
        %v544 = vshrl.u32 %v543, 7
        %v545 = vsub.s32 1, %v544
        %v546 = vrot.slane %v537, %v545
        %v547 = vlaneseq
        %v548 = vshrl.u32 %v547, 7
        %v549 = vsub.s32 2, %v548
        %v550 = vrot.slane %v537, %v549
        %v551 = vlaneseq
        %v552 = vshrl.u32 %v551, 7
        %v553 = vsub.s32 3, %v552
        %v554 = vrot.slane %v537, %v553
        %v555 = vlaneseq
        %v556 = vshrl.u32 %v555, 7
        %v557 = vsub.s32 4, %v556
        %v558 = vrot.slane %v537, %v557
        %v559 = vlaneseq
        %v560 = vshrl.u32 %v559, 7
        %v561 = vsub.s32 5, %v560
        %v562 = vrot.slane %v537, %v561
        %v563 = vlaneseq
        %v564 = vshrl.u32 %v563, 7
        %v565 = vsub.s32 6, %v564
        %v566 = vrot.slane %v537, %v565
        %v567 = vlaneseq
        %v568 = vshrl.u32 %v567, 7
        %v569 = vsub.s32 7, %v568
        %v570 = vrot.slane %v537, %v569
        %v579 = vmul.f32 %v532, %v542
        %v580 = vmul.f32 %v530, %v546
        %v581 = vmul.f32 %v528, %v550
        %v582 = vmul.f32 %v526, %v554
        %v583 = vmul.f32 %v524, %v558
        %v584 = vmul.f32 %v522, %v562
        %v585 = vmul.f32 %v520, %v566
        %v586 = vmul.f32 %v518, %v570
        %v587 = vmul.f32 %v533, %v542
        %v588 = vmul.f32 %v531, %v546
        %v589 = vmul.f32 %v529, %v550
        %v590 = vmul.f32 %v527, %v554
        %v591 = vmul.f32 %v525, %v558
        %v592 = vmul.f32 %v523, %v562
        %v593 = vmul.f32 %v521, %v566
        %v594 = vmul.f32 %v519, %v570
        %v595 = vpack.c.bf16 %v587, %v579
        %v596 = vpack.c.bf16 %v588, %v580
        %v597 = vpack.c.bf16 %v589, %v581
        %v598 = vpack.c.bf16 %v590, %v582
        %v599 = vpack.c.bf16 %v591, %v583
        %v600 = vpack.c.bf16 %v592, %v584
        %v601 = vpack.c.bf16 %v593, %v585
        %v602 = vpack.c.bf16 %v594, %v586
        %603 = vst [vmem:[#allocation2 + $0x40] sm:$0xff] %v595
        %604 = vst [vmem:[#allocation2 + $0x48] sm:$0xff] %v596
        %605 = vst [vmem:[#allocation2 + $0x50] sm:$0xff] %v597
        %606 = vst [vmem:[#allocation2 + $0x58] sm:$0xff] %v598
        %607 = vst [vmem:[#allocation2 + $0x60] sm:$0xff] %v599
        %608 = vst [vmem:[#allocation2 + $0x68] sm:$0xff] %v600
        %609 = vst [vmem:[#allocation2 + $0x70] sm:$0xff] %v601
        %610 = vst [vmem:[#allocation2 + $0x78] sm:$0xff] %v602
        %611 = vrot.lane.b32.xlu0 %v342, 15
        %v612 = vpop.permute.xlu0 %611
        %613 = vrot.lane.b32.xlu0 %v350, 15
        %v614 = vpop.permute.xlu0 %613
        %615 = vrot.lane.b32.xlu0 %v343, 15
        %v616 = vpop.permute.xlu0 %615
        %617 = vrot.lane.b32.xlu0 %v351, 15
        %v618 = vpop.permute.xlu0 %617
        %619 = vrot.lane.b32.xlu0 %v344, 15
        %v620 = vpop.permute.xlu0 %619
        %621 = vrot.lane.b32.xlu0 %v352, 15
        %v622 = vpop.permute.xlu0 %621
        %623 = vrot.lane.b32.xlu0 %v345, 15
        %v624 = vpop.permute.xlu0 %623
        %625 = vrot.lane.b32.xlu0 %v353, 15
        %v626 = vpop.permute.xlu0 %625
        %627 = vrot.lane.b32.xlu0 %v346, 15
        %v628 = vpop.permute.xlu0 %627
        %629 = vrot.lane.b32.xlu0 %v354, 15
        %v630 = vpop.permute.xlu0 %629
        %631 = vrot.lane.b32.xlu0 %v347, 15
        %v632 = vpop.permute.xlu0 %631
        %633 = vrot.lane.b32.xlu0 %v355, 15
        %v634 = vpop.permute.xlu0 %633
        %635 = vrot.lane.b32.xlu0 %v348, 15
        %v636 = vpop.permute.xlu0 %635
        %637 = vrot.lane.b32.xlu0 %v356, 15
        %v638 = vpop.permute.xlu0 %637
        %639 = vrot.lane.b32.xlu0 %v349, 15
        %v640 = vpop.permute.xlu0 %639
        %641 = vrot.lane.b32.xlu0 %v357, 15
        %v642 = vpop.permute.xlu0 %641
        %vm643 = vcmp.lt.s32.totalorder %v391, 15
        %v644 = vsel %vm643, %v636, %v640
        %v645 = vsel %vm643, %v638, %v642
        %v646 = vsel %vm643, %v632, %v636
        %v647 = vsel %vm643, %v634, %v638
        %v648 = vsel %vm643, %v628, %v632
        %v649 = vsel %vm643, %v630, %v634
        %v650 = vsel %vm643, %v624, %v628
        %v651 = vsel %vm643, %v626, %v630
        %v652 = vsel %vm643, %v620, %v624
        %v653 = vsel %vm643, %v622, %v626
        %v654 = vsel %vm643, %v616, %v620
        %v655 = vsel %vm643, %v618, %v622
        %v656 = vsel %vm643, %v612, %v616
        %v657 = vsel %vm643, %v614, %v618
        %v658 = vsel %vm643, %v640, %v612
        %v659 = vsel %vm643, %v642, %v614
        %s660 = scalar_lea.vmem [#allocation6], 2
        %v661 = vld [vmem:[%s660] ss:$8 sm:$0xf]
        %v662 = vld [vmem:[%s660] ss:$8 sm:$0xf0]
        %v663 = vor.u32 %v661, %v662
        %v665 = vlaneseq
        %v666 = vshrl.u32 %v665, 7
        %v667 = vsub.s32 0, %v666
        %v668 = vrot.slane %v663, %v667
        %v669 = vlaneseq
        %v670 = vshrl.u32 %v669, 7
        %v671 = vsub.s32 1, %v670
        %v672 = vrot.slane %v663, %v671
        %v673 = vlaneseq
        %v674 = vshrl.u32 %v673, 7
        %v675 = vsub.s32 2, %v674
        %v676 = vrot.slane %v663, %v675
        %v677 = vlaneseq
        %v678 = vshrl.u32 %v677, 7
        %v679 = vsub.s32 3, %v678
        %v680 = vrot.slane %v663, %v679
        %v681 = vlaneseq
        %v682 = vshrl.u32 %v681, 7
        %v683 = vsub.s32 4, %v682
        %v684 = vrot.slane %v663, %v683
        %v685 = vlaneseq
        %v686 = vshrl.u32 %v685, 7
        %v687 = vsub.s32 5, %v686
        %v688 = vrot.slane %v663, %v687
        %v689 = vlaneseq
        %v690 = vshrl.u32 %v689, 7
        %v691 = vsub.s32 6, %v690
        %v692 = vrot.slane %v663, %v691
        %v693 = vlaneseq
        %v694 = vshrl.u32 %v693, 7
        %v695 = vsub.s32 7, %v694
        %v696 = vrot.slane %v663, %v695
        %v705 = vmul.f32 %v658, %v668
        %v706 = vmul.f32 %v656, %v672
        %v707 = vmul.f32 %v654, %v676
        %v708 = vmul.f32 %v652, %v680
        %v709 = vmul.f32 %v650, %v684
        %v710 = vmul.f32 %v648, %v688
        %v711 = vmul.f32 %v646, %v692
        %v712 = vmul.f32 %v644, %v696
        %v713 = vmul.f32 %v659, %v668
        %v714 = vmul.f32 %v657, %v672
        %v715 = vmul.f32 %v655, %v676
        %v716 = vmul.f32 %v653, %v680
        %v717 = vmul.f32 %v651, %v684
        %v718 = vmul.f32 %v649, %v688
        %v719 = vmul.f32 %v647, %v692
        %v720 = vmul.f32 %v645, %v696
        %v721 = vpack.c.bf16 %v713, %v705
        %v722 = vpack.c.bf16 %v714, %v706
        %v723 = vpack.c.bf16 %v715, %v707
        %v724 = vpack.c.bf16 %v716, %v708
        %v725 = vpack.c.bf16 %v717, %v709
        %v726 = vpack.c.bf16 %v718, %v710
        %v727 = vpack.c.bf16 %v719, %v711
        %v728 = vpack.c.bf16 %v720, %v712
        %729 = vst [vmem:[#allocation2 + $0x80] sm:$0xff] %v721
        %730 = vst [vmem:[#allocation2 + $0x88] sm:$0xff] %v722
        %731 = vst [vmem:[#allocation2 + $0x90] sm:$0xff] %v723
        %732 = vst [vmem:[#allocation2 + $0x98] sm:$0xff] %v724
        %733 = vst [vmem:[#allocation2 + $0xa0] sm:$0xff] %v725
        %734 = vst [vmem:[#allocation2 + $0xa8] sm:$0xff] %v726
        %735 = vst [vmem:[#allocation2 + $0xb0] sm:$0xff] %v727
        %736 = vst [vmem:[#allocation2 + $0xb8] sm:$0xff] %v728
        %737 = vrot.lane.b32.xlu0 %v342, 1
        %v738 = vpop.permute.xlu0 %737
        %739 = vrot.lane.b32.xlu0 %v350, 1
        %v740 = vpop.permute.xlu0 %739
        %741 = vrot.lane.b32.xlu0 %v343, 1
        %v742 = vpop.permute.xlu0 %741
        %743 = vrot.lane.b32.xlu0 %v351, 1
        %v744 = vpop.permute.xlu0 %743
        %745 = vrot.lane.b32.xlu0 %v344, 1
        %v746 = vpop.permute.xlu0 %745
        %747 = vrot.lane.b32.xlu0 %v352, 1
        %v748 = vpop.permute.xlu0 %747
        %749 = vrot.lane.b32.xlu0 %v345, 1
        %v750 = vpop.permute.xlu0 %749
        %751 = vrot.lane.b32.xlu0 %v353, 1
        %v752 = vpop.permute.xlu0 %751
        %753 = vrot.lane.b32.xlu0 %v346, 1
        %v754 = vpop.permute.xlu0 %753
        %755 = vrot.lane.b32.xlu0 %v354, 1
        %v756 = vpop.permute.xlu0 %755
        %757 = vrot.lane.b32.xlu0 %v347, 1
        %v758 = vpop.permute.xlu0 %757
        %759 = vrot.lane.b32.xlu0 %v355, 1
        %v760 = vpop.permute.xlu0 %759
        %761 = vrot.lane.b32.xlu0 %v348, 1
        %v762 = vpop.permute.xlu0 %761
        %763 = vrot.lane.b32.xlu0 %v356, 1
        %v764 = vpop.permute.xlu0 %763
        %765 = vrot.lane.b32.xlu0 %v349, 1
        %v766 = vpop.permute.xlu0 %765
        %767 = vrot.lane.b32.xlu0 %v357, 1
        %v768 = vpop.permute.xlu0 %767
        %vm769 = vcmp.lt.s32.totalorder %v391, 1
        %v770 = vsel %vm769, %v762, %v766
        %v771 = vsel %vm769, %v764, %v768
        %v772 = vsel %vm769, %v758, %v762
        %v773 = vsel %vm769, %v760, %v764
        %v774 = vsel %vm769, %v754, %v758
        %v775 = vsel %vm769, %v756, %v760
        %v776 = vsel %vm769, %v750, %v754
        %v777 = vsel %vm769, %v752, %v756
        %v778 = vsel %vm769, %v746, %v750
        %v779 = vsel %vm769, %v748, %v752
        %v780 = vsel %vm769, %v742, %v746
        %v781 = vsel %vm769, %v744, %v748
        %v782 = vsel %vm769, %v738, %v742
        %v783 = vsel %vm769, %v740, %v744
        %v784 = vsel %vm769, %v766, %v738
        %v785 = vsel %vm769, %v768, %v740
        %s786 = scalar_lea.vmem [#allocation6], 3
        %v787 = vld [vmem:[%s786] ss:$8 sm:$0xf]
        %v788 = vld [vmem:[%s786] ss:$8 sm:$0xf0]
        %v789 = vor.u32 %v787, %v788
        %v791 = vlaneseq
        %v792 = vshrl.u32 %v791, 7
        %v793 = vsub.s32 0, %v792
        %v794 = vrot.slane %v789, %v793
        %v795 = vlaneseq
        %v796 = vshrl.u32 %v795, 7
        %v797 = vsub.s32 1, %v796
        %v798 = vrot.slane %v789, %v797
        %v799 = vlaneseq
        %v800 = vshrl.u32 %v799, 7
        %v801 = vsub.s32 2, %v800
        %v802 = vrot.slane %v789, %v801
        %v803 = vlaneseq
        %v804 = vshrl.u32 %v803, 7
        %v805 = vsub.s32 3, %v804
        %v806 = vrot.slane %v789, %v805
        %v807 = vlaneseq
        %v808 = vshrl.u32 %v807, 7
        %v809 = vsub.s32 4, %v808
        %v810 = vrot.slane %v789, %v809
        %v811 = vlaneseq
        %v812 = vshrl.u32 %v811, 7
        %v813 = vsub.s32 5, %v812
        %v814 = vrot.slane %v789, %v813
        %v815 = vlaneseq
        %v816 = vshrl.u32 %v815, 7
        %v817 = vsub.s32 6, %v816
        %v818 = vrot.slane %v789, %v817
        %v819 = vlaneseq
        %v820 = vshrl.u32 %v819, 7
        %v821 = vsub.s32 7, %v820
        %v822 = vrot.slane %v789, %v821
        %v831 = vmul.f32 %v784, %v794
        %v832 = vmul.f32 %v782, %v798
        %v833 = vmul.f32 %v780, %v802
        %v834 = vmul.f32 %v778, %v806
        %v835 = vmul.f32 %v776, %v810
        %v836 = vmul.f32 %v774, %v814
        %v837 = vmul.f32 %v772, %v818
        %v838 = vmul.f32 %v770, %v822
        %v839 = vmul.f32 %v785, %v794
        %v840 = vmul.f32 %v783, %v798
        %v841 = vmul.f32 %v781, %v802
        %v842 = vmul.f32 %v779, %v806
        %v843 = vmul.f32 %v777, %v810
        %v844 = vmul.f32 %v775, %v814
        %v845 = vmul.f32 %v773, %v818
        %v846 = vmul.f32 %v771, %v822
        %v847 = vpack.c.bf16 %v839, %v831
        %v848 = vpack.c.bf16 %v840, %v832
        %v849 = vpack.c.bf16 %v841, %v833
        %v850 = vpack.c.bf16 %v842, %v834
        %v851 = vpack.c.bf16 %v843, %v835
        %v852 = vpack.c.bf16 %v844, %v836
        %v853 = vpack.c.bf16 %v845, %v837
        %v854 = vpack.c.bf16 %v846, %v838
        %855 = vst [vmem:[#allocation2 + $0xc0] sm:$0xff] %v847
        %856 = vst [vmem:[#allocation2 + $0xc8] sm:$0xff] %v848
        %857 = vst [vmem:[#allocation2 + $0xd0] sm:$0xff] %v849
        %858 = vst [vmem:[#allocation2 + $0xd8] sm:$0xff] %v850
        %859 = vst [vmem:[#allocation2 + $0xe0] sm:$0xff] %v851
        %860 = vst [vmem:[#allocation2 + $0xe8] sm:$0xff] %v852
        %861 = vst [vmem:[#allocation2 + $0xf0] sm:$0xff] %v853
        %862 = vst [vmem:[#allocation2 + $0xf8] sm:$0xff] %v854
        %v863 = vpack.c.bf16 %v350, %v342
        %v864 = vpack.c.bf16 %v351, %v343
        %v865 = vpack.c.bf16 %v352, %v344
        %v866 = vpack.c.bf16 %v353, %v345
        %v867 = vpack.c.bf16 %v354, %v346
        %v868 = vpack.c.bf16 %v355, %v347
        %v869 = vpack.c.bf16 %v356, %v348
        %v870 = vpack.c.bf16 %v357, %v349
        %871 = vst [vmem:[#allocation2 + $0x100] sm:$0xff] %v863
        %872 = vst [vmem:[#allocation2 + $0x108] sm:$0xff] %v864
        %873 = vst [vmem:[#allocation2 + $0x110] sm:$0xff] %v865
        %874 = vst [vmem:[#allocation2 + $0x118] sm:$0xff] %v866
        %875 = vst [vmem:[#allocation2 + $0x120] sm:$0xff] %v867
        %876 = vst [vmem:[#allocation2 + $0x128] sm:$0xff] %v868
        %877 = vst [vmem:[#allocation2 + $0x130] sm:$0xff] %v869
        %878 = vst [vmem:[#allocation2 + $0x138] sm:$0xff] %v870
        %879 = vrot.lane.b32.xlu0 %v342, 127
        %v880 = vpop.permute.xlu0 %879
        %881 = vrot.lane.b32.xlu0 %v350, 127
        %v882 = vpop.permute.xlu0 %881
        %883 = vrot.lane.b32.xlu0 %v343, 127
        %v884 = vpop.permute.xlu0 %883
        %885 = vrot.lane.b32.xlu0 %v351, 127
        %v886 = vpop.permute.xlu0 %885
        %887 = vrot.lane.b32.xlu0 %v344, 127
        %v888 = vpop.permute.xlu0 %887
        %889 = vrot.lane.b32.xlu0 %v352, 127
        %v890 = vpop.permute.xlu0 %889
        %891 = vrot.lane.b32.xlu0 %v345, 127
        %v892 = vpop.permute.xlu0 %891
        %893 = vrot.lane.b32.xlu0 %v353, 127
        %v894 = vpop.permute.xlu0 %893
        %895 = vrot.lane.b32.xlu0 %v346, 127
        %v896 = vpop.permute.xlu0 %895
        %897 = vrot.lane.b32.xlu0 %v354, 127
        %v898 = vpop.permute.xlu0 %897
        %899 = vrot.lane.b32.xlu0 %v347, 127
        %v900 = vpop.permute.xlu0 %899
        %901 = vrot.lane.b32.xlu0 %v355, 127
        %v902 = vpop.permute.xlu0 %901
        %903 = vrot.lane.b32.xlu0 %v348, 127
        %v904 = vpop.permute.xlu0 %903
        %905 = vrot.lane.b32.xlu0 %v356, 127
        %v906 = vpop.permute.xlu0 %905
        %907 = vrot.lane.b32.xlu0 %v349, 127
        %v908 = vpop.permute.xlu0 %907
        %909 = vrot.lane.b32.xlu0 %v357, 127
        %v910 = vpop.permute.xlu0 %909
        %vm911 = vcmp.lt.s32.totalorder %v391, 127
        %v912 = vsel %vm911, %v904, %v908
        %v913 = vsel %vm911, %v906, %v910
        %v914 = vsel %vm911, %v900, %v904
        %v915 = vsel %vm911, %v902, %v906
        %v916 = vsel %vm911, %v896, %v900
        %v917 = vsel %vm911, %v898, %v902
        %v918 = vsel %vm911, %v892, %v896
        %v919 = vsel %vm911, %v894, %v898
        %v920 = vsel %vm911, %v888, %v892
        %v921 = vsel %vm911, %v890, %v894
        %v922 = vsel %vm911, %v884, %v888
        %v923 = vsel %vm911, %v886, %v890
        %v924 = vsel %vm911, %v880, %v884
        %v925 = vsel %vm911, %v882, %v886
        %v926 = vsel %vm911, %v908, %v880
        %v927 = vsel %vm911, %v910, %v882
        %s928 = scalar_lea.vmem [#allocation6], 5
        %v929 = vld [vmem:[%s928] ss:$8 sm:$0xf]
        %v930 = vld [vmem:[%s928] ss:$8 sm:$0xf0]
        %v931 = vor.u32 %v929, %v930
        %v933 = vlaneseq
        %v934 = vshrl.u32 %v933, 7
        %v935 = vsub.s32 0, %v934
        %v936 = vrot.slane %v931, %v935
        %v937 = vlaneseq
        %v938 = vshrl.u32 %v937, 7
        %v939 = vsub.s32 1, %v938
        %v940 = vrot.slane %v931, %v939
        %v941 = vlaneseq
        %v942 = vshrl.u32 %v941, 7
        %v943 = vsub.s32 2, %v942
        %v944 = vrot.slane %v931, %v943
        %v945 = vlaneseq
        %v946 = vshrl.u32 %v945, 7
        %v947 = vsub.s32 3, %v946
        %v948 = vrot.slane %v931, %v947
        %v949 = vlaneseq
        %v950 = vshrl.u32 %v949, 7
        %v951 = vsub.s32 4, %v950
        %v952 = vrot.slane %v931, %v951
        %v953 = vlaneseq
        %v954 = vshrl.u32 %v953, 7
        %v955 = vsub.s32 5, %v954
        %v956 = vrot.slane %v931, %v955
        %v957 = vlaneseq
        %v958 = vshrl.u32 %v957, 7
        %v959 = vsub.s32 6, %v958
        %v960 = vrot.slane %v931, %v959
        %v961 = vlaneseq
        %v962 = vshrl.u32 %v961, 7
        %v963 = vsub.s32 7, %v962
        %v964 = vrot.slane %v931, %v963
        %v973 = vmul.f32 %v924, %v936
        %v974 = vmul.f32 %v922, %v940
        %v975 = vmul.f32 %v920, %v944
        %v976 = vmul.f32 %v918, %v948
        %v977 = vmul.f32 %v916, %v952
        %v978 = vmul.f32 %v914, %v956
        %v979 = vmul.f32 %v912, %v960
        %v980 = vmul.f32 %v926, %v964
        %v981 = vmul.f32 %v925, %v936
        %v982 = vmul.f32 %v923, %v940
        %v983 = vmul.f32 %v921, %v944
        %v984 = vmul.f32 %v919, %v948
        %v985 = vmul.f32 %v917, %v952
        %v986 = vmul.f32 %v915, %v956
        %v987 = vmul.f32 %v913, %v960
        %v988 = vmul.f32 %v927, %v964
        %v989 = vpack.c.bf16 %v981, %v973
        %v990 = vpack.c.bf16 %v982, %v974
        %v991 = vpack.c.bf16 %v983, %v975
        %v992 = vpack.c.bf16 %v984, %v976
        %v993 = vpack.c.bf16 %v985, %v977
        %v994 = vpack.c.bf16 %v986, %v978
        %v995 = vpack.c.bf16 %v987, %v979
        %v996 = vpack.c.bf16 %v988, %v980
        %997 = vst [vmem:[#allocation2 + $0x140] sm:$0xff] %v989
        %998 = vst [vmem:[#allocation2 + $0x148] sm:$0xff] %v990
        %999 = vst [vmem:[#allocation2 + $0x150] sm:$0xff] %v991
        %1000 = vst [vmem:[#allocation2 + $0x158] sm:$0xff] %v992
        %1001 = vst [vmem:[#allocation2 + $0x160] sm:$0xff] %v993
        %1002 = vst [vmem:[#allocation2 + $0x168] sm:$0xff] %v994
        %1003 = vst [vmem:[#allocation2 + $0x170] sm:$0xff] %v995
        %1004 = vst [vmem:[#allocation2 + $0x178] sm:$0xff] %v996
        %1005 = vrot.lane.b32.xlu0 %v342, 113
        %v1006 = vpop.permute.xlu0 %1005
        %1007 = vrot.lane.b32.xlu0 %v350, 113
        %v1008 = vpop.permute.xlu0 %1007
        %1009 = vrot.lane.b32.xlu0 %v343, 113
        %v1010 = vpop.permute.xlu0 %1009
        %1011 = vrot.lane.b32.xlu0 %v351, 113
        %v1012 = vpop.permute.xlu0 %1011
        %1013 = vrot.lane.b32.xlu0 %v344, 113
        %v1014 = vpop.permute.xlu0 %1013
        %1015 = vrot.lane.b32.xlu0 %v352, 113
        %v1016 = vpop.permute.xlu0 %1015
        %1017 = vrot.lane.b32.xlu0 %v345, 113
        %v1018 = vpop.permute.xlu0 %1017
        %1019 = vrot.lane.b32.xlu0 %v353, 113
        %v1020 = vpop.permute.xlu0 %1019
        %1021 = vrot.lane.b32.xlu0 %v346, 113
        %v1022 = vpop.permute.xlu0 %1021
        %1023 = vrot.lane.b32.xlu0 %v354, 113
        %v1024 = vpop.permute.xlu0 %1023
        %1025 = vrot.lane.b32.xlu0 %v347, 113
        %v1026 = vpop.permute.xlu0 %1025
        %1027 = vrot.lane.b32.xlu0 %v355, 113
        %v1028 = vpop.permute.xlu0 %1027
        %1029 = vrot.lane.b32.xlu0 %v348, 113
        %v1030 = vpop.permute.xlu0 %1029
        %1031 = vrot.lane.b32.xlu0 %v356, 113
        %v1032 = vpop.permute.xlu0 %1031
        %1033 = vrot.lane.b32.xlu0 %v349, 113
        %v1034 = vpop.permute.xlu0 %1033
        %1035 = vrot.lane.b32.xlu0 %v357, 113
        %v1036 = vpop.permute.xlu0 %1035
        %vm1037 = vcmp.lt.s32.totalorder %v391, 113
        %v1038 = vsel %vm1037, %v1030, %v1034
        %v1039 = vsel %vm1037, %v1032, %v1036
        %v1040 = vsel %vm1037, %v1026, %v1030
        %v1041 = vsel %vm1037, %v1028, %v1032
        %v1042 = vsel %vm1037, %v1022, %v1026
        %v1043 = vsel %vm1037, %v1024, %v1028
        %v1044 = vsel %vm1037, %v1018, %v1022
        %v1045 = vsel %vm1037, %v1020, %v1024
        %v1046 = vsel %vm1037, %v1014, %v1018
        %v1047 = vsel %vm1037, %v1016, %v1020
        %v1048 = vsel %vm1037, %v1010, %v1014
        %v1049 = vsel %vm1037, %v1012, %v1016
        %v1050 = vsel %vm1037, %v1006, %v1010
        %v1051 = vsel %vm1037, %v1008, %v1012
        %v1052 = vsel %vm1037, %v1034, %v1006
        %v1053 = vsel %vm1037, %v1036, %v1008
        %s1054 = scalar_lea.vmem [#allocation6], 6
        %v1055 = vld [vmem:[%s1054] ss:$8 sm:$0xf]
        %v1056 = vld [vmem:[%s1054] ss:$8 sm:$0xf0]
        %v1057 = vor.u32 %v1055, %v1056
        %v1059 = vlaneseq
        %v1060 = vshrl.u32 %v1059, 7
        %v1061 = vsub.s32 0, %v1060
        %v1062 = vrot.slane %v1057, %v1061
        %v1063 = vlaneseq
        %v1064 = vshrl.u32 %v1063, 7
        %v1065 = vsub.s32 1, %v1064
        %v1066 = vrot.slane %v1057, %v1065
        %v1067 = vlaneseq
        %v1068 = vshrl.u32 %v1067, 7
        %v1069 = vsub.s32 2, %v1068
        %v1070 = vrot.slane %v1057, %v1069
        %v1071 = vlaneseq
        %v1072 = vshrl.u32 %v1071, 7
        %v1073 = vsub.s32 3, %v1072
        %v1074 = vrot.slane %v1057, %v1073
        %v1075 = vlaneseq
        %v1076 = vshrl.u32 %v1075, 7
        %v1077 = vsub.s32 4, %v1076
        %v1078 = vrot.slane %v1057, %v1077
        %v1079 = vlaneseq
        %v1080 = vshrl.u32 %v1079, 7
        %v1081 = vsub.s32 5, %v1080
        %v1082 = vrot.slane %v1057, %v1081
        %v1083 = vlaneseq
        %v1084 = vshrl.u32 %v1083, 7
        %v1085 = vsub.s32 6, %v1084
        %v1086 = vrot.slane %v1057, %v1085
        %v1087 = vlaneseq
        %v1088 = vshrl.u32 %v1087, 7
        %v1089 = vsub.s32 7, %v1088
        %v1090 = vrot.slane %v1057, %v1089
        %v1099 = vmul.f32 %v1050, %v1062
        %v1100 = vmul.f32 %v1048, %v1066
        %v1101 = vmul.f32 %v1046, %v1070
        %v1102 = vmul.f32 %v1044, %v1074
        %v1103 = vmul.f32 %v1042, %v1078
        %v1104 = vmul.f32 %v1040, %v1082
        %v1105 = vmul.f32 %v1038, %v1086
        %v1106 = vmul.f32 %v1052, %v1090
        %v1107 = vmul.f32 %v1051, %v1062
        %v1108 = vmul.f32 %v1049, %v1066
        %v1109 = vmul.f32 %v1047, %v1070
        %v1110 = vmul.f32 %v1045, %v1074
        %v1111 = vmul.f32 %v1043, %v1078
        %v1112 = vmul.f32 %v1041, %v1082
        %v1113 = vmul.f32 %v1039, %v1086
        %v1114 = vmul.f32 %v1053, %v1090
        %v1115 = vpack.c.bf16 %v1107, %v1099
        %v1116 = vpack.c.bf16 %v1108, %v1100
        %v1117 = vpack.c.bf16 %v1109, %v1101
        %v1118 = vpack.c.bf16 %v1110, %v1102
        %v1119 = vpack.c.bf16 %v1111, %v1103
        %v1120 = vpack.c.bf16 %v1112, %v1104
        %v1121 = vpack.c.bf16 %v1113, %v1105
        %v1122 = vpack.c.bf16 %v1114, %v1106
        %1123 = vst [vmem:[#allocation2 + $0x180] sm:$0xff] %v1115
        %1124 = vst [vmem:[#allocation2 + $0x188] sm:$0xff] %v1116
        %1125 = vst [vmem:[#allocation2 + $0x190] sm:$0xff] %v1117
        %1126 = vst [vmem:[#allocation2 + $0x198] sm:$0xff] %v1118
        %1127 = vst [vmem:[#allocation2 + $0x1a0] sm:$0xff] %v1119
        %1128 = vst [vmem:[#allocation2 + $0x1a8] sm:$0xff] %v1120
        %1129 = vst [vmem:[#allocation2 + $0x1b0] sm:$0xff] %v1121
        %1130 = vst [vmem:[#allocation2 + $0x1b8] sm:$0xff] %v1122
        %1131 = vrot.lane.b32.xlu0 %v342, 112
        %v1132 = vpop.permute.xlu0 %1131
        %1133 = vrot.lane.b32.xlu0 %v350, 112
        %v1134 = vpop.permute.xlu0 %1133
        %1135 = vrot.lane.b32.xlu0 %v343, 112
        %v1136 = vpop.permute.xlu0 %1135
        %1137 = vrot.lane.b32.xlu0 %v351, 112
        %v1138 = vpop.permute.xlu0 %1137
        %1139 = vrot.lane.b32.xlu0 %v344, 112
        %v1140 = vpop.permute.xlu0 %1139
        %1141 = vrot.lane.b32.xlu0 %v352, 112
        %v1142 = vpop.permute.xlu0 %1141
        %1143 = vrot.lane.b32.xlu0 %v345, 112
        %v1144 = vpop.permute.xlu0 %1143
        %1145 = vrot.lane.b32.xlu0 %v353, 112
        %v1146 = vpop.permute.xlu0 %1145
        %1147 = vrot.lane.b32.xlu0 %v346, 112
        %v1148 = vpop.permute.xlu0 %1147
        %1149 = vrot.lane.b32.xlu0 %v354, 112
        %v1150 = vpop.permute.xlu0 %1149
        %1151 = vrot.lane.b32.xlu0 %v347, 112
        %v1152 = vpop.permute.xlu0 %1151
        %1153 = vrot.lane.b32.xlu0 %v355, 112
        %v1154 = vpop.permute.xlu0 %1153
        %1155 = vrot.lane.b32.xlu0 %v348, 112
        %v1156 = vpop.permute.xlu0 %1155
        %1157 = vrot.lane.b32.xlu0 %v356, 112
        %v1158 = vpop.permute.xlu0 %1157
        %1159 = vrot.lane.b32.xlu0 %v349, 112
        %v1160 = vpop.permute.xlu0 %1159
        %1161 = vrot.lane.b32.xlu0 %v357, 112
        %v1162 = vpop.permute.xlu0 %1161
        %vm1163 = vcmp.lt.s32.totalorder %v391, 112
        %v1164 = vsel %vm1163, %v1156, %v1160
        %v1165 = vsel %vm1163, %v1158, %v1162
        %v1166 = vsel %vm1163, %v1152, %v1156
        %v1167 = vsel %vm1163, %v1154, %v1158
        %v1168 = vsel %vm1163, %v1148, %v1152
        %v1169 = vsel %vm1163, %v1150, %v1154
        %v1170 = vsel %vm1163, %v1144, %v1148
        %v1171 = vsel %vm1163, %v1146, %v1150
        %v1172 = vsel %vm1163, %v1140, %v1144
        %v1173 = vsel %vm1163, %v1142, %v1146
        %v1174 = vsel %vm1163, %v1136, %v1140
        %v1175 = vsel %vm1163, %v1138, %v1142
        %v1176 = vsel %vm1163, %v1132, %v1136
        %v1177 = vsel %vm1163, %v1134, %v1138
        %v1178 = vsel %vm1163, %v1160, %v1132
        %v1179 = vsel %vm1163, %v1162, %v1134
        %s1180 = scalar_lea.vmem [#allocation6], 7
        %v1181 = vld [vmem:[%s1180] ss:$8 sm:$0xf]
        %v1182 = vld [vmem:[%s1180] ss:$8 sm:$0xf0]
        %v1183 = vor.u32 %v1181, %v1182
        %v1185 = vlaneseq
        %v1186 = vshrl.u32 %v1185, 7
        %v1187 = vsub.s32 0, %v1186
        %v1188 = vrot.slane %v1183, %v1187
        %v1189 = vlaneseq
        %v1190 = vshrl.u32 %v1189, 7
        %v1191 = vsub.s32 1, %v1190
        %v1192 = vrot.slane %v1183, %v1191
        %v1193 = vlaneseq
        %v1194 = vshrl.u32 %v1193, 7
        %v1195 = vsub.s32 2, %v1194
        %v1196 = vrot.slane %v1183, %v1195
        %v1197 = vlaneseq
        %v1198 = vshrl.u32 %v1197, 7
        %v1199 = vsub.s32 3, %v1198
        %v1200 = vrot.slane %v1183, %v1199
        %v1201 = vlaneseq
        %v1202 = vshrl.u32 %v1201, 7
        %v1203 = vsub.s32 4, %v1202
        %v1204 = vrot.slane %v1183, %v1203
        %v1205 = vlaneseq
        %v1206 = vshrl.u32 %v1205, 7
        %v1207 = vsub.s32 5, %v1206
        %v1208 = vrot.slane %v1183, %v1207
        %v1209 = vlaneseq
        %v1210 = vshrl.u32 %v1209, 7
        %v1211 = vsub.s32 6, %v1210
        %v1212 = vrot.slane %v1183, %v1211
        %v1213 = vlaneseq
        %v1214 = vshrl.u32 %v1213, 7
        %v1215 = vsub.s32 7, %v1214
        %v1216 = vrot.slane %v1183, %v1215
        %v1225 = vmul.f32 %v1176, %v1188
        %v1226 = vmul.f32 %v1174, %v1192
        %v1227 = vmul.f32 %v1172, %v1196
        %v1228 = vmul.f32 %v1170, %v1200
        %v1229 = vmul.f32 %v1168, %v1204
        %v1230 = vmul.f32 %v1166, %v1208
        %v1231 = vmul.f32 %v1164, %v1212
        %v1232 = vmul.f32 %v1178, %v1216
        %v1233 = vmul.f32 %v1177, %v1188
        %v1234 = vmul.f32 %v1175, %v1192
        %v1235 = vmul.f32 %v1173, %v1196
        %v1236 = vmul.f32 %v1171, %v1200
        %v1237 = vmul.f32 %v1169, %v1204
        %v1238 = vmul.f32 %v1167, %v1208
        %v1239 = vmul.f32 %v1165, %v1212
        %v1240 = vmul.f32 %v1179, %v1216
        %v1241 = vpack.c.bf16 %v1233, %v1225
        %v1242 = vpack.c.bf16 %v1234, %v1226
        %v1243 = vpack.c.bf16 %v1235, %v1227
        %v1244 = vpack.c.bf16 %v1236, %v1228
        %v1245 = vpack.c.bf16 %v1237, %v1229
        %v1246 = vpack.c.bf16 %v1238, %v1230
        %v1247 = vpack.c.bf16 %v1239, %v1231
        %v1248 = vpack.c.bf16 %v1240, %v1232
        %1249 = vst [vmem:[#allocation2 + $0x1c0] sm:$0xff] %v1241
        %1250 = vst [vmem:[#allocation2 + $0x1c8] sm:$0xff] %v1242
        %1251 = vst [vmem:[#allocation2 + $0x1d0] sm:$0xff] %v1243
        %1252 = vst [vmem:[#allocation2 + $0x1d8] sm:$0xff] %v1244
        %1253 = vst [vmem:[#allocation2 + $0x1e0] sm:$0xff] %v1245
        %1254 = vst [vmem:[#allocation2 + $0x1e8] sm:$0xff] %v1246
        %1255 = vst [vmem:[#allocation2 + $0x1f0] sm:$0xff] %v1247
        %1256 = vst [vmem:[#allocation2 + $0x1f8] sm:$0xff] %v1248
        %1257 = vrot.lane.b32.xlu0 %v342, 111
        %v1258 = vpop.permute.xlu0 %1257
        %1259 = vrot.lane.b32.xlu0 %v350, 111
        %v1260 = vpop.permute.xlu0 %1259
        %1261 = vrot.lane.b32.xlu0 %v343, 111
        %v1262 = vpop.permute.xlu0 %1261
        %1263 = vrot.lane.b32.xlu0 %v351, 111
        %v1264 = vpop.permute.xlu0 %1263
        %1265 = vrot.lane.b32.xlu0 %v344, 111
        %v1266 = vpop.permute.xlu0 %1265
        %1267 = vrot.lane.b32.xlu0 %v352, 111
        %v1268 = vpop.permute.xlu0 %1267
        %1269 = vrot.lane.b32.xlu0 %v345, 111
        %v1270 = vpop.permute.xlu0 %1269
        %1271 = vrot.lane.b32.xlu0 %v353, 111
        %v1272 = vpop.permute.xlu0 %1271
        %1273 = vrot.lane.b32.xlu0 %v346, 111
        %v1274 = vpop.permute.xlu0 %1273
        %1275 = vrot.lane.b32.xlu0 %v354, 111
        %v1276 = vpop.permute.xlu0 %1275
        %1277 = vrot.lane.b32.xlu0 %v347, 111
        %v1278 = vpop.permute.xlu0 %1277
        %1279 = vrot.lane.b32.xlu0 %v355, 111
        %v1280 = vpop.permute.xlu0 %1279
        %1281 = vrot.lane.b32.xlu0 %v348, 111
        %v1282 = vpop.permute.xlu0 %1281
        %1283 = vrot.lane.b32.xlu0 %v356, 111
        %v1284 = vpop.permute.xlu0 %1283
        %1285 = vrot.lane.b32.xlu0 %v349, 111
        %v1286 = vpop.permute.xlu0 %1285
        %1287 = vrot.lane.b32.xlu0 %v357, 111
        %v1288 = vpop.permute.xlu0 %1287
        %vm1289 = vcmp.lt.s32.totalorder %v391, 111
        %v1290 = vsel %vm1289, %v1282, %v1286
        %v1291 = vsel %vm1289, %v1284, %v1288
        %v1292 = vsel %vm1289, %v1278, %v1282
        %v1293 = vsel %vm1289, %v1280, %v1284
        %v1294 = vsel %vm1289, %v1274, %v1278
        %v1295 = vsel %vm1289, %v1276, %v1280
        %v1296 = vsel %vm1289, %v1270, %v1274
        %v1297 = vsel %vm1289, %v1272, %v1276
        %v1298 = vsel %vm1289, %v1266, %v1270
        %v1299 = vsel %vm1289, %v1268, %v1272
        %v1300 = vsel %vm1289, %v1262, %v1266
        %v1301 = vsel %vm1289, %v1264, %v1268
        %v1302 = vsel %vm1289, %v1258, %v1262
        %v1303 = vsel %vm1289, %v1260, %v1264
        %v1304 = vsel %vm1289, %v1286, %v1258
        %v1305 = vsel %vm1289, %v1288, %v1260
        %s1306 = scalar_lea.vmem [#allocation6], 64
        %v1307 = vld [vmem:[%s1306] ss:$8 sm:$0xf]
        %v1308 = vld [vmem:[%s1306] ss:$8 sm:$0xf0]
        %v1309 = vor.u32 %v1307, %v1308
        %v1311 = vlaneseq
        %v1312 = vshrl.u32 %v1311, 7
        %v1313 = vsub.s32 0, %v1312
        %v1314 = vrot.slane %v1309, %v1313
        %v1315 = vlaneseq
        %v1316 = vshrl.u32 %v1315, 7
        %v1317 = vsub.s32 1, %v1316
        %v1318 = vrot.slane %v1309, %v1317
        %v1319 = vlaneseq
        %v1320 = vshrl.u32 %v1319, 7
        %v1321 = vsub.s32 2, %v1320
        %v1322 = vrot.slane %v1309, %v1321
        %v1323 = vlaneseq
        %v1324 = vshrl.u32 %v1323, 7
        %v1325 = vsub.s32 3, %v1324
        %v1326 = vrot.slane %v1309, %v1325
        %v1327 = vlaneseq
        %v1328 = vshrl.u32 %v1327, 7
        %v1329 = vsub.s32 4, %v1328
        %v1330 = vrot.slane %v1309, %v1329
        %v1331 = vlaneseq
        %v1332 = vshrl.u32 %v1331, 7
        %v1333 = vsub.s32 5, %v1332
        %v1334 = vrot.slane %v1309, %v1333
        %v1335 = vlaneseq
        %v1336 = vshrl.u32 %v1335, 7
        %v1337 = vsub.s32 6, %v1336
        %v1338 = vrot.slane %v1309, %v1337
        %v1339 = vlaneseq
        %v1340 = vshrl.u32 %v1339, 7
        %v1341 = vsub.s32 7, %v1340
        %v1342 = vrot.slane %v1309, %v1341
        %v1351 = vmul.f32 %v1302, %v1314
        %v1352 = vmul.f32 %v1300, %v1318
        %v1353 = vmul.f32 %v1298, %v1322
        %v1354 = vmul.f32 %v1296, %v1326
        %v1355 = vmul.f32 %v1294, %v1330
        %v1356 = vmul.f32 %v1292, %v1334
        %v1357 = vmul.f32 %v1290, %v1338
        %v1358 = vmul.f32 %v1304, %v1342
        %v1359 = vmul.f32 %v1303, %v1314
        %v1360 = vmul.f32 %v1301, %v1318
        %v1361 = vmul.f32 %v1299, %v1322
        %v1362 = vmul.f32 %v1297, %v1326
        %v1363 = vmul.f32 %v1295, %v1330
        %v1364 = vmul.f32 %v1293, %v1334
        %v1365 = vmul.f32 %v1291, %v1338
        %v1366 = vmul.f32 %v1305, %v1342
        %v1367 = vpack.c.bf16 %v1359, %v1351
        %v1368 = vpack.c.bf16 %v1360, %v1352
        %v1369 = vpack.c.bf16 %v1361, %v1353
        %v1370 = vpack.c.bf16 %v1362, %v1354
        %v1371 = vpack.c.bf16 %v1363, %v1355
        %v1372 = vpack.c.bf16 %v1364, %v1356
        %v1373 = vpack.c.bf16 %v1365, %v1357
        %v1374 = vpack.c.bf16 %v1366, %v1358
        %1375 = vst [vmem:[#allocation2 + $0x200] sm:$0xff] %v1367
        %1376 = vst [vmem:[#allocation2 + $0x208] sm:$0xff] %v1368
        %1377 = vst [vmem:[#allocation2 + $0x210] sm:$0xff] %v1369
        %1378 = vst [vmem:[#allocation2 + $0x218] sm:$0xff] %v1370
        %1379 = vst [vmem:[#allocation2 + $0x220] sm:$0xff] %v1371
        %1380 = vst [vmem:[#allocation2 + $0x228] sm:$0xff] %v1372
        %1381 = vst [vmem:[#allocation2 + $0x230] sm:$0xff] %v1373
        %1382 = vst [vmem:[#allocation2 + $0x238] sm:$0xff] %v1374
        %v1383 = vld [vmem:[%s2] sm:$0xff]
        %v1384 = vld [vmem:[%s2 + $0x8] sm:$0xff]
        %v1385 = vld [vmem:[#allocation2] sm:$0xff]
        %v1386 = vld [vmem:[#allocation2 + $0x8] sm:$0xff]
        %v1387 = vld [vmem:[#allocation2 + $0x10] sm:$0xff]
        %v1388 = vld [vmem:[#allocation2 + $0x18] sm:$0xff]
        %v1389 = vld [vmem:[#allocation2 + $0x20] sm:$0xff]
        %v1390 = vld [vmem:[#allocation2 + $0x28] sm:$0xff]
        %v1391 = vld [vmem:[#allocation2 + $0x30] sm:$0xff]
        %v1392 = vld [vmem:[#allocation2 + $0x38] sm:$0xff]
        %v1393 = vld [vmem:[#allocation2 + $0x40] sm:$0xff]
        %v1394 = vld [vmem:[#allocation2 + $0x48] sm:$0xff]
        %v1395 = vld [vmem:[#allocation2 + $0x50] sm:$0xff]
        %v1396 = vld [vmem:[#allocation2 + $0x58] sm:$0xff]
        %v1397 = vld [vmem:[#allocation2 + $0x60] sm:$0xff]
        %v1398 = vld [vmem:[#allocation2 + $0x68] sm:$0xff]
        %v1399 = vld [vmem:[#allocation2 + $0x70] sm:$0xff]
        %v1400 = vld [vmem:[#allocation2 + $0x78] sm:$0xff]
        %v1401 = vld [vmem:[#allocation2 + $0x80] sm:$0xff]
        %v1402 = vld [vmem:[#allocation2 + $0x88] sm:$0xff]
        %v1403 = vld [vmem:[#allocation2 + $0x90] sm:$0xff]
        %v1404 = vld [vmem:[#allocation2 + $0x98] sm:$0xff]
        %v1405 = vld [vmem:[#allocation2 + $0xa0] sm:$0xff]
        %v1406 = vld [vmem:[#allocation2 + $0xa8] sm:$0xff]
        %v1407 = vld [vmem:[#allocation2 + $0xb0] sm:$0xff]
        %v1408 = vld [vmem:[#allocation2 + $0xb8] sm:$0xff]
        %v1409 = vld [vmem:[#allocation2 + $0xc0] sm:$0xff]
        %v1410 = vld [vmem:[#allocation2 + $0xc8] sm:$0xff]
        %v1411 = vld [vmem:[#allocation2 + $0xd0] sm:$0xff]
        %v1412 = vld [vmem:[#allocation2 + $0xd8] sm:$0xff]
        %v1413 = vld [vmem:[#allocation2 + $0xe0] sm:$0xff]
        %v1414 = vld [vmem:[#allocation2 + $0xe8] sm:$0xff]
        %v1415 = vld [vmem:[#allocation2 + $0xf0] sm:$0xff]
        %v1416 = vld [vmem:[#allocation2 + $0xf8] sm:$0xff]
        %v1417 = vld [vmem:[#allocation2 + $0x100] sm:$0xff]
        %v1418 = vld [vmem:[#allocation2 + $0x108] sm:$0xff]
        %v1419 = vld [vmem:[#allocation2 + $0x110] sm:$0xff]
        %v1420 = vld [vmem:[#allocation2 + $0x118] sm:$0xff]
        %v1421 = vld [vmem:[#allocation2 + $0x120] sm:$0xff]
        %v1422 = vld [vmem:[#allocation2 + $0x128] sm:$0xff]
        %v1423 = vld [vmem:[#allocation2 + $0x130] sm:$0xff]
        %v1424 = vld [vmem:[#allocation2 + $0x138] sm:$0xff]
        %v1425 = vld [vmem:[#allocation2 + $0x140] sm:$0xff]
        %v1426 = vld [vmem:[#allocation2 + $0x148] sm:$0xff]
        %v1427 = vld [vmem:[#allocation2 + $0x150] sm:$0xff]
        %v1428 = vld [vmem:[#allocation2 + $0x158] sm:$0xff]
        %v1429 = vld [vmem:[#allocation2 + $0x160] sm:$0xff]
        %v1430 = vld [vmem:[#allocation2 + $0x168] sm:$0xff]
        %v1431 = vld [vmem:[#allocation2 + $0x170] sm:$0xff]
        %v1432 = vld [vmem:[#allocation2 + $0x178] sm:$0xff]
        %v1433 = vld [vmem:[#allocation2 + $0x180] sm:$0xff]
        %v1434 = vld [vmem:[#allocation2 + $0x188] sm:$0xff]
        %v1435 = vld [vmem:[#allocation2 + $0x190] sm:$0xff]
        %v1436 = vld [vmem:[#allocation2 + $0x198] sm:$0xff]
        %v1437 = vld [vmem:[#allocation2 + $0x1a0] sm:$0xff]
        %v1438 = vld [vmem:[#allocation2 + $0x1a8] sm:$0xff]
        %v1439 = vld [vmem:[#allocation2 + $0x1b0] sm:$0xff]
        %v1440 = vld [vmem:[#allocation2 + $0x1b8] sm:$0xff]
        %v1441 = vld [vmem:[#allocation2 + $0x1c0] sm:$0xff]
        %v1442 = vld [vmem:[#allocation2 + $0x1c8] sm:$0xff]
        %v1443 = vld [vmem:[#allocation2 + $0x1d0] sm:$0xff]
        %v1444 = vld [vmem:[#allocation2 + $0x1d8] sm:$0xff]
        %v1445 = vld [vmem:[#allocation2 + $0x1e0] sm:$0xff]
        %v1446 = vld [vmem:[#allocation2 + $0x1e8] sm:$0xff]
        %v1447 = vld [vmem:[#allocation2 + $0x1f0] sm:$0xff]
        %v1448 = vld [vmem:[#allocation2 + $0x1f8] sm:$0xff]
        %v1449 = vld [vmem:[#allocation2 + $0x200] sm:$0xff]
        %v1450 = vld [vmem:[#allocation2 + $0x208] sm:$0xff]
        %v1451 = vld [vmem:[#allocation2 + $0x210] sm:$0xff]
        %v1452 = vld [vmem:[#allocation2 + $0x218] sm:$0xff]
        %v1453 = vld [vmem:[#allocation2 + $0x220] sm:$0xff]
        %v1454 = vld [vmem:[#allocation2 + $0x228] sm:$0xff]
        %v1455 = vld [vmem:[#allocation2 + $0x230] sm:$0xff]
        %v1456 = vld [vmem:[#allocation2 + $0x238] sm:$0xff]
        %v1457 = vld [vmem:[%s3] sm:$0xff]
        %v1458 = vld [vmem:[%s3 + $0x8] sm:$0xff]
        %1460 = vset.pattern.permute.xlu0 0
        %1461 = vperm.xlu0 %1460, %v1457
        %v1462 = vpop.permute.xlu0 %1461
        %1465 = vset.pattern.permute.xlu0 0
        %1466 = vperm.xlu0 %1465, %v1458
        %v1467 = vpop.permute.xlu0 %1466
        %v1471 = vunpack.c.l.b16 %v1383
        %v1472 = vunpack.c.h.b16 %v1383
        %v1473 = vunpack.c.l.b16 %v1384
        %v1474 = vunpack.c.h.b16 %v1384
        %v1475 = vpack.c.b16 %v1473, %v1471
        %v1476 = vpack.c.b16 %v1474, %v1472
        %vm1478 = vcmask 130048
        %v1480 = vsel %vm1478, %v1476, 0
        %1482 = vmatprep.subr.bf16.mxu0 %v1386
        %1483 = vmatpush1.bf16.msra.mxu0 %v1385
        %1484 = vmatprep.subr.bf16.mxu0 %v1394
        %1485 = vmatpush1.bf16.msra.mxu0 %v1393
        %1486 = vmatprep.subr.bf16.mxu0 %v1402
        %1487 = vmatpush1.bf16.msra.mxu0 %v1401
        %1488 = vmatprep.subr.bf16.mxu0 %v1410
        %1489 = vmatpush1.bf16.msra.mxu0 %v1409
        %1490 = vmatprep.subr.bf16.mxu0 %v1418
        %1491 = vmatpush1.bf16.msra.mxu0 %v1417
        %1492 = vmatprep.subr.bf16.mxu0 %v1426
        %1493 = vmatpush1.bf16.msra.mxu0 %v1425
        %1494 = vmatprep.subr.bf16.mxu0 %v1434
        %1495 = vmatpush1.bf16.msra.mxu0 %v1433
        %1496 = vmatprep.subr.bf16.mxu0 %v1442
        %1497 = vmatpush1.bf16.msra.mxu0 %v1441
        %1498 = vmatprep.subr.bf16.mxu0 %v1450
        %1499 = vmatpush1.bf16.msra.mxu0 %v1449
        %1500 = vmatprep.subr.bf16.mxu0 0
        %1501 = vmatpush1.bf16.msra.mxu0 0
        %1502 = vmatprep.subr.bf16.mxu0 0
        %1503 = vmatpush1.bf16.msra.mxu0 0
        %1504 = vmatprep.subr.bf16.mxu0 0
        %1505 = vmatpush1.bf16.msra.mxu0 0
        %1506 = vmatprep.subr.bf16.mxu0 0
        %1507 = vmatpush1.bf16.msra.mxu0 0
        %1508 = vmatprep.subr.bf16.mxu0 0
        %1509 = vmatpush1.bf16.msra.mxu0 0
        %1510 = vmatprep.subr.bf16.mxu0 0
        %1511 = vmatpush1.bf16.msra.mxu0 0
        %1512 = vmatprep.subr.bf16.mxu0 0
        %1513 = vmatpush1.bf16.msra.mxu0 0
        %1514 = vmatprep.mubr.bf16.mxu0 %v1480
        %1515 = vmatmul.mubr.bf16.gmra.mrb[0].mxu0 %v1475
        %v1516 = vpop.f32.mrb[0].mxu0
        %v1517 = vadd.f32 %v1462, %v1516
        %v1518 = vpop.f32.mrb[0].mxu0
        %v1519 = vadd.f32 %v1462, %v1518
        %v1520 = vpop.f32.mrb[0].mxu0
        %v1521 = vadd.f32 %v1467, %v1520
        %v1522 = vpop.f32.mrb[0].mxu0
        %v1523 = vadd.f32 %v1467, %v1522
        %1524 = vdwg.mxu0
        %1525 = vmatprep.subr.bf16.mxu0 %v1388
        %1526 = vmatpush1.bf16.msra.mxu0 %v1387
        %1527 = vmatprep.subr.bf16.mxu0 %v1396
        %1528 = vmatpush1.bf16.msra.mxu0 %v1395
        %1529 = vmatprep.subr.bf16.mxu0 %v1404
        %1530 = vmatpush1.bf16.msra.mxu0 %v1403
        %1531 = vmatprep.subr.bf16.mxu0 %v1412
        %1532 = vmatpush1.bf16.msra.mxu0 %v1411
        %1533 = vmatprep.subr.bf16.mxu0 %v1420
        %1534 = vmatpush1.bf16.msra.mxu0 %v1419
        %1535 = vmatprep.subr.bf16.mxu0 %v1428
        %1536 = vmatpush1.bf16.msra.mxu0 %v1427
        %1537 = vmatprep.subr.bf16.mxu0 %v1436
        %1538 = vmatpush1.bf16.msra.mxu0 %v1435
        %1539 = vmatprep.subr.bf16.mxu0 %v1444
        %1540 = vmatpush1.bf16.msra.mxu0 %v1443
        %1541 = vmatprep.subr.bf16.mxu0 %v1452
        %1542 = vmatpush1.bf16.msra.mxu0 %v1451
        %1543 = vmatprep.subr.bf16.mxu0 0
        %1544 = vmatpush1.bf16.msra.mxu0 0
        %1545 = vmatprep.subr.bf16.mxu0 0
        %1546 = vmatpush1.bf16.msra.mxu0 0
        %1547 = vmatprep.subr.bf16.mxu0 0
        %1548 = vmatpush1.bf16.msra.mxu0 0
        %1549 = vmatprep.subr.bf16.mxu0 0
        %1550 = vmatpush1.bf16.msra.mxu0 0
        %1551 = vmatprep.subr.bf16.mxu0 0
        %1552 = vmatpush1.bf16.msra.mxu0 0
        %1553 = vmatprep.subr.bf16.mxu0 0
        %1554 = vmatpush1.bf16.msra.mxu0 0
        %1555 = vmatprep.subr.bf16.mxu0 0
        %1556 = vmatpush1.bf16.msra.mxu0 0
        %1557 = vmatprep.mubr.bf16.mxu0 %v1480
        %1558 = vmatmul.mubr.bf16.gmra.mrb[0].mxu0 %v1475
        %v1559 = vpop.f32.mrb[0].mxu0
        %v1560 = vadd.f32 %v1462, %v1559
        %v1561 = vpop.f32.mrb[0].mxu0
        %v1562 = vadd.f32 %v1462, %v1561
        %v1563 = vpop.f32.mrb[0].mxu0
        %v1564 = vadd.f32 %v1467, %v1563
        %v1565 = vpop.f32.mrb[0].mxu0
        %v1566 = vadd.f32 %v1467, %v1565
        %1567 = vdwg.mxu0
        %1568 = vmatprep.subr.bf16.mxu0 %v1390
        %1569 = vmatpush1.bf16.msra.mxu0 %v1389
        %1570 = vmatprep.subr.bf16.mxu0 %v1398
        %1571 = vmatpush1.bf16.msra.mxu0 %v1397
        %1572 = vmatprep.subr.bf16.mxu0 %v1406
        %1573 = vmatpush1.bf16.msra.mxu0 %v1405
        %1574 = vmatprep.subr.bf16.mxu0 %v1414
        %1575 = vmatpush1.bf16.msra.mxu0 %v1413
        %1576 = vmatprep.subr.bf16.mxu0 %v1422
        %1577 = vmatpush1.bf16.msra.mxu0 %v1421
        %1578 = vmatprep.subr.bf16.mxu0 %v1430
        %1579 = vmatpush1.bf16.msra.mxu0 %v1429
        %1580 = vmatprep.subr.bf16.mxu0 %v1438
        %1581 = vmatpush1.bf16.msra.mxu0 %v1437
        %1582 = vmatprep.subr.bf16.mxu0 %v1446
        %1583 = vmatpush1.bf16.msra.mxu0 %v1445
        %1584 = vmatprep.subr.bf16.mxu0 %v1454
        %1585 = vmatpush1.bf16.msra.mxu0 %v1453
        %1586 = vmatprep.subr.bf16.mxu0 0
        %1587 = vmatpush1.bf16.msra.mxu0 0
        %1588 = vmatprep.subr.bf16.mxu0 0
        %1589 = vmatpush1.bf16.msra.mxu0 0
        %1590 = vmatprep.subr.bf16.mxu0 0
        %1591 = vmatpush1.bf16.msra.mxu0 0
        %1592 = vmatprep.subr.bf16.mxu0 0
        %1593 = vmatpush1.bf16.msra.mxu0 0
        %1594 = vmatprep.subr.bf16.mxu0 0
        %1595 = vmatpush1.bf16.msra.mxu0 0
        %1596 = vmatprep.subr.bf16.mxu0 0
        %1597 = vmatpush1.bf16.msra.mxu0 0
        %1598 = vmatprep.subr.bf16.mxu0 0
        %1599 = vmatpush1.bf16.msra.mxu0 0
        %1600 = vmatprep.mubr.bf16.mxu0 %v1480
        %1601 = vmatmul.mubr.bf16.gmra.mrb[0].mxu0 %v1475
        %v1602 = vpop.f32.mrb[0].mxu0
        %v1603 = vadd.f32 %v1462, %v1602
        %v1604 = vpop.f32.mrb[0].mxu0
        %v1605 = vadd.f32 %v1462, %v1604
        %v1606 = vpop.f32.mrb[0].mxu0
        %v1607 = vadd.f32 %v1467, %v1606
        %v1608 = vpop.f32.mrb[0].mxu0
        %v1609 = vadd.f32 %v1467, %v1608
        %1610 = vdwg.mxu0
        %1611 = vmatprep.subr.bf16.mxu0 %v1392
        %1612 = vmatpush1.bf16.msra.mxu0 %v1391
        %1613 = vmatprep.subr.bf16.mxu0 %v1400
        %1614 = vmatpush1.bf16.msra.mxu0 %v1399
        %1615 = vmatprep.subr.bf16.mxu0 %v1408
        %1616 = vmatpush1.bf16.msra.mxu0 %v1407
        %1617 = vmatprep.subr.bf16.mxu0 %v1416
        %1618 = vmatpush1.bf16.msra.mxu0 %v1415
        %1619 = vmatprep.subr.bf16.mxu0 %v1424
        %1620 = vmatpush1.bf16.msra.mxu0 %v1423
        %1621 = vmatprep.subr.bf16.mxu0 %v1432
        %1622 = vmatpush1.bf16.msra.mxu0 %v1431
        %1623 = vmatprep.subr.bf16.mxu0 %v1440
        %1624 = vmatpush1.bf16.msra.mxu0 %v1439
        %1625 = vmatprep.subr.bf16.mxu0 %v1448
        %1626 = vmatpush1.bf16.msra.mxu0 %v1447
        %1627 = vmatprep.subr.bf16.mxu0 %v1456
        %1628 = vmatpush1.bf16.msra.mxu0 %v1455
        %1629 = vmatprep.subr.bf16.mxu0 0
        %1630 = vmatpush1.bf16.msra.mxu0 0
        %1631 = vmatprep.subr.bf16.mxu0 0
        %1632 = vmatpush1.bf16.msra.mxu0 0
        %1633 = vmatprep.subr.bf16.mxu0 0
        %1634 = vmatpush1.bf16.msra.mxu0 0
        %1635 = vmatprep.subr.bf16.mxu0 0
        %1636 = vmatpush1.bf16.msra.mxu0 0
        %1637 = vmatprep.subr.bf16.mxu0 0
        %1638 = vmatpush1.bf16.msra.mxu0 0
        %1639 = vmatprep.subr.bf16.mxu0 0
        %1640 = vmatpush1.bf16.msra.mxu0 0
        %1641 = vmatprep.subr.bf16.mxu0 0
        %1642 = vmatpush1.bf16.msra.mxu0 0
        %1643 = vmatprep.mubr.bf16.mxu0 %v1480
        %1644 = vmatmul.mubr.bf16.gmra.mrb[0].mxu0 %v1475
        %v1645 = vpop.f32.mrb[0].mxu0
        %v1646 = vadd.f32 %v1462, %v1645
        %v1647 = vpop.f32.mrb[0].mxu0
        %v1648 = vadd.f32 %v1462, %v1647
        %v1649 = vpop.f32.mrb[0].mxu0
        %v1650 = vadd.f32 %v1467, %v1649
        %v1651 = vpop.f32.mrb[0].mxu0
        %v1652 = vadd.f32 %v1467, %v1651
        %1653 = vdwg.mxu0
        %v1654 = vmax.f32 %v1517, 0.0
        %v1655 = vmax.f32 %v1519, 0.0
        %v1656 = vmax.f32 %v1560, 0.0
        %v1657 = vmax.f32 %v1562, 0.0
        %v1658 = vmax.f32 %v1603, 0.0
        %v1659 = vmax.f32 %v1605, 0.0
        %v1660 = vmax.f32 %v1646, 0.0
        %v1661 = vmax.f32 %v1648, 0.0
        %v1662 = vmax.f32 %v1521, 0.0
        %v1663 = vmax.f32 %v1523, 0.0
        %v1664 = vmax.f32 %v1564, 0.0
        %v1665 = vmax.f32 %v1566, 0.0
        %v1666 = vmax.f32 %v1607, 0.0
        %v1667 = vmax.f32 %v1609, 0.0
        %v1668 = vmax.f32 %v1650, 0.0
        %v1669 = vmax.f32 %v1652, 0.0
        %1670 = vrot.lane.b32.xlu0 %v1654, 17
        %v1671 = vpop.permute.xlu0 %1670
        %1672 = vrot.lane.b32.xlu0 %v1662, 17
        %v1673 = vpop.permute.xlu0 %1672
        %1674 = vrot.lane.b32.xlu0 %v1655, 17
        %v1675 = vpop.permute.xlu0 %1674
        %1676 = vrot.lane.b32.xlu0 %v1663, 17
        %v1677 = vpop.permute.xlu0 %1676
        %1678 = vrot.lane.b32.xlu0 %v1656, 17
        %v1679 = vpop.permute.xlu0 %1678
        %1680 = vrot.lane.b32.xlu0 %v1664, 17
        %v1681 = vpop.permute.xlu0 %1680
        %1682 = vrot.lane.b32.xlu0 %v1657, 17
        %v1683 = vpop.permute.xlu0 %1682
        %1684 = vrot.lane.b32.xlu0 %v1665, 17
        %v1685 = vpop.permute.xlu0 %1684
        %1686 = vrot.lane.b32.xlu0 %v1658, 17
        %v1687 = vpop.permute.xlu0 %1686
        %1688 = vrot.lane.b32.xlu0 %v1666, 17
        %v1689 = vpop.permute.xlu0 %1688
        %1690 = vrot.lane.b32.xlu0 %v1659, 17
        %v1691 = vpop.permute.xlu0 %1690
        %1692 = vrot.lane.b32.xlu0 %v1667, 17
        %v1693 = vpop.permute.xlu0 %1692
        %1694 = vrot.lane.b32.xlu0 %v1660, 17
        %v1695 = vpop.permute.xlu0 %1694
        %1696 = vrot.lane.b32.xlu0 %v1668, 17
        %v1697 = vpop.permute.xlu0 %1696
        %1698 = vrot.lane.b32.xlu0 %v1661, 17
        %v1699 = vpop.permute.xlu0 %1698
        %1700 = vrot.lane.b32.xlu0 %v1669, 17
        %v1701 = vpop.permute.xlu0 %1700
        %v1702 = vsel %vm392, %v1695, %v1699
        %v1703 = vsel %vm392, %v1697, %v1701
        %v1704 = vsel %vm392, %v1691, %v1695
        %v1705 = vsel %vm392, %v1693, %v1697
        %v1706 = vsel %vm392, %v1687, %v1691
        %v1707 = vsel %vm392, %v1689, %v1693
        %v1708 = vsel %vm392, %v1683, %v1687
        %v1709 = vsel %vm392, %v1685, %v1689
        %v1710 = vsel %vm392, %v1679, %v1683
        %v1711 = vsel %vm392, %v1681, %v1685
        %v1712 = vsel %vm392, %v1675, %v1679
        %v1713 = vsel %vm392, %v1677, %v1681
        %v1714 = vsel %vm392, %v1671, %v1675
        %v1715 = vsel %vm392, %v1673, %v1677
        %v1716 = vsel %vm392, %v1699, %v1671
        %v1717 = vsel %vm392, %v1701, %v1673
        %v1718 = vld [vmem:[#allocation6] ss:$8 sm:$0xf]
        %v1719 = vld [vmem:[#allocation6] ss:$8 sm:$0xf0]
        %v1720 = vor.u32 %v1718, %v1719
        %v1722 = vlaneseq
        %v1723 = vshrl.u32 %v1722, 7
        %v1724 = vsub.s32 0, %v1723
        %v1725 = vrot.slane %v1720, %v1724
        %v1726 = vlaneseq
        %v1727 = vshrl.u32 %v1726, 7
        %v1728 = vsub.s32 1, %v1727
        %v1729 = vrot.slane %v1720, %v1728
        %v1730 = vlaneseq
        %v1731 = vshrl.u32 %v1730, 7
        %v1732 = vsub.s32 2, %v1731
        %v1733 = vrot.slane %v1720, %v1732
        %v1734 = vlaneseq
        %v1735 = vshrl.u32 %v1734, 7
        %v1736 = vsub.s32 3, %v1735
        %v1737 = vrot.slane %v1720, %v1736
        %v1738 = vlaneseq
        %v1739 = vshrl.u32 %v1738, 7
        %v1740 = vsub.s32 4, %v1739
        %v1741 = vrot.slane %v1720, %v1740
        %v1742 = vlaneseq
        %v1743 = vshrl.u32 %v1742, 7
        %v1744 = vsub.s32 5, %v1743
        %v1745 = vrot.slane %v1720, %v1744
        %v1746 = vlaneseq
        %v1747 = vshrl.u32 %v1746, 7
        %v1748 = vsub.s32 6, %v1747
        %v1749 = vrot.slane %v1720, %v1748
        %v1750 = vlaneseq
        %v1751 = vshrl.u32 %v1750, 7
        %v1752 = vsub.s32 7, %v1751
        %v1753 = vrot.slane %v1720, %v1752
        %v1762 = vmul.f32 %v1716, %v1725
        %v1763 = vmul.f32 %v1714, %v1729
        %v1764 = vmul.f32 %v1712, %v1733
        %v1765 = vmul.f32 %v1710, %v1737
        %v1766 = vmul.f32 %v1708, %v1741
        %v1767 = vmul.f32 %v1706, %v1745
        %v1768 = vmul.f32 %v1704, %v1749
        %v1769 = vmul.f32 %v1702, %v1753
        %v1770 = vmul.f32 %v1717, %v1725
        %v1771 = vmul.f32 %v1715, %v1729
        %v1772 = vmul.f32 %v1713, %v1733
        %v1773 = vmul.f32 %v1711, %v1737
        %v1774 = vmul.f32 %v1709, %v1741
        %v1775 = vmul.f32 %v1707, %v1745
        %v1776 = vmul.f32 %v1705, %v1749
        %v1777 = vmul.f32 %v1703, %v1753
        %v1778 = vpack.c.bf16 %v1770, %v1762
        %v1779 = vpack.c.bf16 %v1771, %v1763
        %v1780 = vpack.c.bf16 %v1772, %v1764
        %v1781 = vpack.c.bf16 %v1773, %v1765
        %v1782 = vpack.c.bf16 %v1774, %v1766
        %v1783 = vpack.c.bf16 %v1775, %v1767
        %v1784 = vpack.c.bf16 %v1776, %v1768
        %v1785 = vpack.c.bf16 %v1777, %v1769
        %1786 = vst [vmem:[#allocation2] sm:$0xff] %v1778
        %1787 = vst [vmem:[#allocation2 + $0x8] sm:$0xff] %v1779
        %1788 = vst [vmem:[#allocation2 + $0x10] sm:$0xff] %v1780
        %1789 = vst [vmem:[#allocation2 + $0x18] sm:$0xff] %v1781
        %1790 = vst [vmem:[#allocation2 + $0x20] sm:$0xff] %v1782
        %1791 = vst [vmem:[#allocation2 + $0x28] sm:$0xff] %v1783
        %1792 = vst [vmem:[#allocation2 + $0x30] sm:$0xff] %v1784
        %1793 = vst [vmem:[#allocation2 + $0x38] sm:$0xff] %v1785
        %1794 = vrot.lane.b32.xlu0 %v1654, 16
        %v1795 = vpop.permute.xlu0 %1794
        %1796 = vrot.lane.b32.xlu0 %v1662, 16
        %v1797 = vpop.permute.xlu0 %1796
        %1798 = vrot.lane.b32.xlu0 %v1655, 16
        %v1799 = vpop.permute.xlu0 %1798
        %1800 = vrot.lane.b32.xlu0 %v1663, 16
        %v1801 = vpop.permute.xlu0 %1800
        %1802 = vrot.lane.b32.xlu0 %v1656, 16
        %v1803 = vpop.permute.xlu0 %1802
        %1804 = vrot.lane.b32.xlu0 %v1664, 16
        %v1805 = vpop.permute.xlu0 %1804
        %1806 = vrot.lane.b32.xlu0 %v1657, 16
        %v1807 = vpop.permute.xlu0 %1806
        %1808 = vrot.lane.b32.xlu0 %v1665, 16
        %v1809 = vpop.permute.xlu0 %1808
        %1810 = vrot.lane.b32.xlu0 %v1658, 16
        %v1811 = vpop.permute.xlu0 %1810
        %1812 = vrot.lane.b32.xlu0 %v1666, 16
        %v1813 = vpop.permute.xlu0 %1812
        %1814 = vrot.lane.b32.xlu0 %v1659, 16
        %v1815 = vpop.permute.xlu0 %1814
        %1816 = vrot.lane.b32.xlu0 %v1667, 16
        %v1817 = vpop.permute.xlu0 %1816
        %1818 = vrot.lane.b32.xlu0 %v1660, 16
        %v1819 = vpop.permute.xlu0 %1818
        %1820 = vrot.lane.b32.xlu0 %v1668, 16
        %v1821 = vpop.permute.xlu0 %1820
        %1822 = vrot.lane.b32.xlu0 %v1661, 16
        %v1823 = vpop.permute.xlu0 %1822
        %1824 = vrot.lane.b32.xlu0 %v1669, 16
        %v1825 = vpop.permute.xlu0 %1824
        %v1826 = vsel %vm517, %v1819, %v1823
        %v1827 = vsel %vm517, %v1821, %v1825
        %v1828 = vsel %vm517, %v1815, %v1819
        %v1829 = vsel %vm517, %v1817, %v1821
        %v1830 = vsel %vm517, %v1811, %v1815
        %v1831 = vsel %vm517, %v1813, %v1817
        %v1832 = vsel %vm517, %v1807, %v1811
        %v1833 = vsel %vm517, %v1809, %v1813
        %v1834 = vsel %vm517, %v1803, %v1807
        %v1835 = vsel %vm517, %v1805, %v1809
        %v1836 = vsel %vm517, %v1799, %v1803
        %v1837 = vsel %vm517, %v1801, %v1805
        %v1838 = vsel %vm517, %v1795, %v1799
        %v1839 = vsel %vm517, %v1797, %v1801
        %v1840 = vsel %vm517, %v1823, %v1795
        %v1841 = vsel %vm517, %v1825, %v1797
        %v1842 = vld [vmem:[%s534] ss:$8 sm:$0xf]
        %v1843 = vld [vmem:[%s534] ss:$8 sm:$0xf0]
        %v1844 = vor.u32 %v1842, %v1843
        %v1846 = vlaneseq
        %v1847 = vshrl.u32 %v1846, 7
        %v1848 = vsub.s32 0, %v1847
        %v1849 = vrot.slane %v1844, %v1848
        %v1850 = vlaneseq
        %v1851 = vshrl.u32 %v1850, 7
        %v1852 = vsub.s32 1, %v1851
        %v1853 = vrot.slane %v1844, %v1852
        %v1854 = vlaneseq
        %v1855 = vshrl.u32 %v1854, 7
        %v1856 = vsub.s32 2, %v1855
        %v1857 = vrot.slane %v1844, %v1856
        %v1858 = vlaneseq
        %v1859 = vshrl.u32 %v1858, 7
        %v1860 = vsub.s32 3, %v1859
        %v1861 = vrot.slane %v1844, %v1860
        %v1862 = vlaneseq
        %v1863 = vshrl.u32 %v1862, 7
        %v1864 = vsub.s32 4, %v1863
        %v1865 = vrot.slane %v1844, %v1864
        %v1866 = vlaneseq
        %v1867 = vshrl.u32 %v1866, 7
        %v1868 = vsub.s32 5, %v1867
        %v1869 = vrot.slane %v1844, %v1868
        %v1870 = vlaneseq
        %v1871 = vshrl.u32 %v1870, 7
        %v1872 = vsub.s32 6, %v1871
        %v1873 = vrot.slane %v1844, %v1872
        %v1874 = vlaneseq
        %v1875 = vshrl.u32 %v1874, 7
        %v1876 = vsub.s32 7, %v1875
        %v1877 = vrot.slane %v1844, %v1876
        %v1886 = vmul.f32 %v1840, %v1849
        %v1887 = vmul.f32 %v1838, %v1853
        %v1888 = vmul.f32 %v1836, %v1857
        %v1889 = vmul.f32 %v1834, %v1861
        %v1890 = vmul.f32 %v1832, %v1865
        %v1891 = vmul.f32 %v1830, %v1869
        %v1892 = vmul.f32 %v1828, %v1873
        %v1893 = vmul.f32 %v1826, %v1877
        %v1894 = vmul.f32 %v1841, %v1849
        %v1895 = vmul.f32 %v1839, %v1853
        %v1896 = vmul.f32 %v1837, %v1857
        %v1897 = vmul.f32 %v1835, %v1861
        %v1898 = vmul.f32 %v1833, %v1865
        %v1899 = vmul.f32 %v1831, %v1869
        %v1900 = vmul.f32 %v1829, %v1873
        %v1901 = vmul.f32 %v1827, %v1877
        %v1902 = vpack.c.bf16 %v1894, %v1886
        %v1903 = vpack.c.bf16 %v1895, %v1887
        %v1904 = vpack.c.bf16 %v1896, %v1888
        %v1905 = vpack.c.bf16 %v1897, %v1889
        %v1906 = vpack.c.bf16 %v1898, %v1890
        %v1907 = vpack.c.bf16 %v1899, %v1891
        %v1908 = vpack.c.bf16 %v1900, %v1892
        %v1909 = vpack.c.bf16 %v1901, %v1893
        %1910 = vst [vmem:[#allocation2 + $0x40] sm:$0xff] %v1902
        %1911 = vst [vmem:[#allocation2 + $0x48] sm:$0xff] %v1903
        %1912 = vst [vmem:[#allocation2 + $0x50] sm:$0xff] %v1904
        %1913 = vst [vmem:[#allocation2 + $0x58] sm:$0xff] %v1905
        %1914 = vst [vmem:[#allocation2 + $0x60] sm:$0xff] %v1906
        %1915 = vst [vmem:[#allocation2 + $0x68] sm:$0xff] %v1907
        %1916 = vst [vmem:[#allocation2 + $0x70] sm:$0xff] %v1908
        %1917 = vst [vmem:[#allocation2 + $0x78] sm:$0xff] %v1909
        %1918 = vrot.lane.b32.xlu0 %v1654, 15
        %v1919 = vpop.permute.xlu0 %1918
        %1920 = vrot.lane.b32.xlu0 %v1662, 15
        %v1921 = vpop.permute.xlu0 %1920
        %1922 = vrot.lane.b32.xlu0 %v1655, 15
        %v1923 = vpop.permute.xlu0 %1922
        %1924 = vrot.lane.b32.xlu0 %v1663, 15
        %v1925 = vpop.permute.xlu0 %1924
        %1926 = vrot.lane.b32.xlu0 %v1656, 15
        %v1927 = vpop.permute.xlu0 %1926
        %1928 = vrot.lane.b32.xlu0 %v1664, 15
        %v1929 = vpop.permute.xlu0 %1928
        %1930 = vrot.lane.b32.xlu0 %v1657, 15
        %v1931 = vpop.permute.xlu0 %1930
        %1932 = vrot.lane.b32.xlu0 %v1665, 15
        %v1933 = vpop.permute.xlu0 %1932
        %1934 = vrot.lane.b32.xlu0 %v1658, 15
        %v1935 = vpop.permute.xlu0 %1934
        %1936 = vrot.lane.b32.xlu0 %v1666, 15
        %v1937 = vpop.permute.xlu0 %1936
        %1938 = vrot.lane.b32.xlu0 %v1659, 15
        %v1939 = vpop.permute.xlu0 %1938
        %1940 = vrot.lane.b32.xlu0 %v1667, 15
        %v1941 = vpop.permute.xlu0 %1940
        %1942 = vrot.lane.b32.xlu0 %v1660, 15
        %v1943 = vpop.permute.xlu0 %1942
        %1944 = vrot.lane.b32.xlu0 %v1668, 15
        %v1945 = vpop.permute.xlu0 %1944
        %1946 = vrot.lane.b32.xlu0 %v1661, 15
        %v1947 = vpop.permute.xlu0 %1946
        %1948 = vrot.lane.b32.xlu0 %v1669, 15
        %v1949 = vpop.permute.xlu0 %1948
        %v1950 = vsel %vm643, %v1943, %v1947
        %v1951 = vsel %vm643, %v1945, %v1949
        %v1952 = vsel %vm643, %v1939, %v1943
        %v1953 = vsel %vm643, %v1941, %v1945
        %v1954 = vsel %vm643, %v1935, %v1939
        %v1955 = vsel %vm643, %v1937, %v1941
        %v1956 = vsel %vm643, %v1931, %v1935
        %v1957 = vsel %vm643, %v1933, %v1937
        %v1958 = vsel %vm643, %v1927, %v1931
        %v1959 = vsel %vm643, %v1929, %v1933
        %v1960 = vsel %vm643, %v1923, %v1927
        %v1961 = vsel %vm643, %v1925, %v1929
        %v1962 = vsel %vm643, %v1919, %v1923
        %v1963 = vsel %vm643, %v1921, %v1925
        %v1964 = vsel %vm643, %v1947, %v1919
        %v1965 = vsel %vm643, %v1949, %v1921
        %v1966 = vld [vmem:[%s660] ss:$8 sm:$0xf]
        %v1967 = vld [vmem:[%s660] ss:$8 sm:$0xf0]
        %v1968 = vor.u32 %v1966, %v1967
        %v1970 = vlaneseq
        %v1971 = vshrl.u32 %v1970, 7
        %v1972 = vsub.s32 0, %v1971
        %v1973 = vrot.slane %v1968, %v1972
        %v1974 = vlaneseq
        %v1975 = vshrl.u32 %v1974, 7
        %v1976 = vsub.s32 1, %v1975
        %v1977 = vrot.slane %v1968, %v1976
        %v1978 = vlaneseq
        %v1979 = vshrl.u32 %v1978, 7
        %v1980 = vsub.s32 2, %v1979
        %v1981 = vrot.slane %v1968, %v1980
        %v1982 = vlaneseq
        %v1983 = vshrl.u32 %v1982, 7
        %v1984 = vsub.s32 3, %v1983
        %v1985 = vrot.slane %v1968, %v1984
        %v1986 = vlaneseq
        %v1987 = vshrl.u32 %v1986, 7
        %v1988 = vsub.s32 4, %v1987
        %v1989 = vrot.slane %v1968, %v1988
        %v1990 = vlaneseq
        %v1991 = vshrl.u32 %v1990, 7
        %v1992 = vsub.s32 5, %v1991
        %v1993 = vrot.slane %v1968, %v1992
        %v1994 = vlaneseq
        %v1995 = vshrl.u32 %v1994, 7
        %v1996 = vsub.s32 6, %v1995
        %v1997 = vrot.slane %v1968, %v1996
        %v1998 = vlaneseq
        %v1999 = vshrl.u32 %v1998, 7
        %v2000 = vsub.s32 7, %v1999
        %v2001 = vrot.slane %v1968, %v2000
        %v2010 = vmul.f32 %v1964, %v1973
        %v2011 = vmul.f32 %v1962, %v1977
        %v2012 = vmul.f32 %v1960, %v1981
        %v2013 = vmul.f32 %v1958, %v1985
        %v2014 = vmul.f32 %v1956, %v1989
        %v2015 = vmul.f32 %v1954, %v1993
        %v2016 = vmul.f32 %v1952, %v1997
        %v2017 = vmul.f32 %v1950, %v2001
        %v2018 = vmul.f32 %v1965, %v1973
        %v2019 = vmul.f32 %v1963, %v1977
        %v2020 = vmul.f32 %v1961, %v1981
        %v2021 = vmul.f32 %v1959, %v1985
        %v2022 = vmul.f32 %v1957, %v1989
        %v2023 = vmul.f32 %v1955, %v1993
        %v2024 = vmul.f32 %v1953, %v1997
        %v2025 = vmul.f32 %v1951, %v2001
        %v2026 = vpack.c.bf16 %v2018, %v2010
        %v2027 = vpack.c.bf16 %v2019, %v2011
        %v2028 = vpack.c.bf16 %v2020, %v2012
        %v2029 = vpack.c.bf16 %v2021, %v2013
        %v2030 = vpack.c.bf16 %v2022, %v2014
        %v2031 = vpack.c.bf16 %v2023, %v2015
        %v2032 = vpack.c.bf16 %v2024, %v2016
        %v2033 = vpack.c.bf16 %v2025, %v2017
        %2034 = vst [vmem:[#allocation2 + $0x80] sm:$0xff] %v2026
        %2035 = vst [vmem:[#allocation2 + $0x88] sm:$0xff] %v2027
        %2036 = vst [vmem:[#allocation2 + $0x90] sm:$0xff] %v2028
        %2037 = vst [vmem:[#allocation2 + $0x98] sm:$0xff] %v2029
        %2038 = vst [vmem:[#allocation2 + $0xa0] sm:$0xff] %v2030
        %2039 = vst [vmem:[#allocation2 + $0xa8] sm:$0xff] %v2031
        %2040 = vst [vmem:[#allocation2 + $0xb0] sm:$0xff] %v2032
        %2041 = vst [vmem:[#allocation2 + $0xb8] sm:$0xff] %v2033
        %2042 = vrot.lane.b32.xlu0 %v1654, 1
        %v2043 = vpop.permute.xlu0 %2042
        %2044 = vrot.lane.b32.xlu0 %v1662, 1
        %v2045 = vpop.permute.xlu0 %2044
        %2046 = vrot.lane.b32.xlu0 %v1655, 1
        %v2047 = vpop.permute.xlu0 %2046
        %2048 = vrot.lane.b32.xlu0 %v1663, 1
        %v2049 = vpop.permute.xlu0 %2048
        %2050 = vrot.lane.b32.xlu0 %v1656, 1
        %v2051 = vpop.permute.xlu0 %2050
        %2052 = vrot.lane.b32.xlu0 %v1664, 1
        %v2053 = vpop.permute.xlu0 %2052
        %2054 = vrot.lane.b32.xlu0 %v1657, 1
        %v2055 = vpop.permute.xlu0 %2054
        %2056 = vrot.lane.b32.xlu0 %v1665, 1
        %v2057 = vpop.permute.xlu0 %2056
        %2058 = vrot.lane.b32.xlu0 %v1658, 1
        %v2059 = vpop.permute.xlu0 %2058
        %2060 = vrot.lane.b32.xlu0 %v1666, 1
        %v2061 = vpop.permute.xlu0 %2060
        %2062 = vrot.lane.b32.xlu0 %v1659, 1
        %v2063 = vpop.permute.xlu0 %2062
        %2064 = vrot.lane.b32.xlu0 %v1667, 1
        %v2065 = vpop.permute.xlu0 %2064
        %2066 = vrot.lane.b32.xlu0 %v1660, 1
        %v2067 = vpop.permute.xlu0 %2066
        %2068 = vrot.lane.b32.xlu0 %v1668, 1
        %v2069 = vpop.permute.xlu0 %2068
        %2070 = vrot.lane.b32.xlu0 %v1661, 1
        %v2071 = vpop.permute.xlu0 %2070
        %2072 = vrot.lane.b32.xlu0 %v1669, 1
        %v2073 = vpop.permute.xlu0 %2072
        %v2074 = vsel %vm769, %v2067, %v2071
        %v2075 = vsel %vm769, %v2069, %v2073
        %v2076 = vsel %vm769, %v2063, %v2067
        %v2077 = vsel %vm769, %v2065, %v2069
        %v2078 = vsel %vm769, %v2059, %v2063
        %v2079 = vsel %vm769, %v2061, %v2065
        %v2080 = vsel %vm769, %v2055, %v2059
        %v2081 = vsel %vm769, %v2057, %v2061
        %v2082 = vsel %vm769, %v2051, %v2055
        %v2083 = vsel %vm769, %v2053, %v2057
        %v2084 = vsel %vm769, %v2047, %v2051
        %v2085 = vsel %vm769, %v2049, %v2053
        %v2086 = vsel %vm769, %v2043, %v2047
        %v2087 = vsel %vm769, %v2045, %v2049
        %v2088 = vsel %vm769, %v2071, %v2043
        %v2089 = vsel %vm769, %v2073, %v2045
        %v2090 = vld [vmem:[%s786] ss:$8 sm:$0xf]
        %v2091 = vld [vmem:[%s786] ss:$8 sm:$0xf0]
        %v2092 = vor.u32 %v2090, %v2091
        %v2094 = vlaneseq
        %v2095 = vshrl.u32 %v2094, 7
        %v2096 = vsub.s32 0, %v2095
        %v2097 = vrot.slane %v2092, %v2096
        %v2098 = vlaneseq
        %v2099 = vshrl.u32 %v2098, 7
        %v2100 = vsub.s32 1, %v2099
        %v2101 = vrot.slane %v2092, %v2100
        %v2102 = vlaneseq
        %v2103 = vshrl.u32 %v2102, 7
        %v2104 = vsub.s32 2, %v2103
        %v2105 = vrot.slane %v2092, %v2104
        %v2106 = vlaneseq
        %v2107 = vshrl.u32 %v2106, 7
        %v2108 = vsub.s32 3, %v2107
        %v2109 = vrot.slane %v2092, %v2108
        %v2110 = vlaneseq
        %v2111 = vshrl.u32 %v2110, 7
        %v2112 = vsub.s32 4, %v2111
        %v2113 = vrot.slane %v2092, %v2112
        %v2114 = vlaneseq
        %v2115 = vshrl.u32 %v2114, 7
        %v2116 = vsub.s32 5, %v2115
        %v2117 = vrot.slane %v2092, %v2116
        %v2118 = vlaneseq
        %v2119 = vshrl.u32 %v2118, 7
        %v2120 = vsub.s32 6, %v2119
        %v2121 = vrot.slane %v2092, %v2120
        %v2122 = vlaneseq
        %v2123 = vshrl.u32 %v2122, 7
        %v2124 = vsub.s32 7, %v2123
        %v2125 = vrot.slane %v2092, %v2124
        %v2134 = vmul.f32 %v2088, %v2097
        %v2135 = vmul.f32 %v2086, %v2101
        %v2136 = vmul.f32 %v2084, %v2105
        %v2137 = vmul.f32 %v2082, %v2109
        %v2138 = vmul.f32 %v2080, %v2113
        %v2139 = vmul.f32 %v2078, %v2117
        %v2140 = vmul.f32 %v2076, %v2121
        %v2141 = vmul.f32 %v2074, %v2125
        %v2142 = vmul.f32 %v2089, %v2097
        %v2143 = vmul.f32 %v2087, %v2101
        %v2144 = vmul.f32 %v2085, %v2105
        %v2145 = vmul.f32 %v2083, %v2109
        %v2146 = vmul.f32 %v2081, %v2113
        %v2147 = vmul.f32 %v2079, %v2117
        %v2148 = vmul.f32 %v2077, %v2121
        %v2149 = vmul.f32 %v2075, %v2125
        %v2150 = vpack.c.bf16 %v2142, %v2134
        %v2151 = vpack.c.bf16 %v2143, %v2135
        %v2152 = vpack.c.bf16 %v2144, %v2136
        %v2153 = vpack.c.bf16 %v2145, %v2137
        %v2154 = vpack.c.bf16 %v2146, %v2138
        %v2155 = vpack.c.bf16 %v2147, %v2139
        %v2156 = vpack.c.bf16 %v2148, %v2140
        %v2157 = vpack.c.bf16 %v2149, %v2141
        %2158 = vst [vmem:[#allocation2 + $0xc0] sm:$0xff] %v2150
        %2159 = vst [vmem:[#allocation2 + $0xc8] sm:$0xff] %v2151
        %2160 = vst [vmem:[#allocation2 + $0xd0] sm:$0xff] %v2152
        %2161 = vst [vmem:[#allocation2 + $0xd8] sm:$0xff] %v2153
        %2162 = vst [vmem:[#allocation2 + $0xe0] sm:$0xff] %v2154
        %2163 = vst [vmem:[#allocation2 + $0xe8] sm:$0xff] %v2155
        %2164 = vst [vmem:[#allocation2 + $0xf0] sm:$0xff] %v2156
        %2165 = vst [vmem:[#allocation2 + $0xf8] sm:$0xff] %v2157
        %v2166 = vpack.c.bf16 %v1662, %v1654
        %v2167 = vpack.c.bf16 %v1663, %v1655
        %v2168 = vpack.c.bf16 %v1664, %v1656
        %v2169 = vpack.c.bf16 %v1665, %v1657
        %v2170 = vpack.c.bf16 %v1666, %v1658
        %v2171 = vpack.c.bf16 %v1667, %v1659
        %v2172 = vpack.c.bf16 %v1668, %v1660
        %v2173 = vpack.c.bf16 %v1669, %v1661
        %2174 = vst [vmem:[#allocation2 + $0x100] sm:$0xff] %v2166
        %2175 = vst [vmem:[#allocation2 + $0x108] sm:$0xff] %v2167
        %2176 = vst [vmem:[#allocation2 + $0x110] sm:$0xff] %v2168
        %2177 = vst [vmem:[#allocation2 + $0x118] sm:$0xff] %v2169
        %2178 = vst [vmem:[#allocation2 + $0x120] sm:$0xff] %v2170
        %2179 = vst [vmem:[#allocation2 + $0x128] sm:$0xff] %v2171
        %2180 = vst [vmem:[#allocation2 + $0x130] sm:$0xff] %v2172
        %2181 = vst [vmem:[#allocation2 + $0x138] sm:$0xff] %v2173
        %2182 = vrot.lane.b32.xlu0 %v1654, 127
        %v2183 = vpop.permute.xlu0 %2182
        %2184 = vrot.lane.b32.xlu0 %v1662, 127
        %v2185 = vpop.permute.xlu0 %2184
        %2186 = vrot.lane.b32.xlu0 %v1655, 127
        %v2187 = vpop.permute.xlu0 %2186
        %2188 = vrot.lane.b32.xlu0 %v1663, 127
        %v2189 = vpop.permute.xlu0 %2188
        %2190 = vrot.lane.b32.xlu0 %v1656, 127
        %v2191 = vpop.permute.xlu0 %2190
        %2192 = vrot.lane.b32.xlu0 %v1664, 127
        %v2193 = vpop.permute.xlu0 %2192
        %2194 = vrot.lane.b32.xlu0 %v1657, 127
        %v2195 = vpop.permute.xlu0 %2194
        %2196 = vrot.lane.b32.xlu0 %v1665, 127
        %v2197 = vpop.permute.xlu0 %2196
        %2198 = vrot.lane.b32.xlu0 %v1658, 127
        %v2199 = vpop.permute.xlu0 %2198
        %2200 = vrot.lane.b32.xlu0 %v1666, 127
        %v2201 = vpop.permute.xlu0 %2200
        %2202 = vrot.lane.b32.xlu0 %v1659, 127
        %v2203 = vpop.permute.xlu0 %2202
        %2204 = vrot.lane.b32.xlu0 %v1667, 127
        %v2205 = vpop.permute.xlu0 %2204
        %2206 = vrot.lane.b32.xlu0 %v1660, 127
        %v2207 = vpop.permute.xlu0 %2206
        %2208 = vrot.lane.b32.xlu0 %v1668, 127
        %v2209 = vpop.permute.xlu0 %2208
        %2210 = vrot.lane.b32.xlu0 %v1661, 127
        %v2211 = vpop.permute.xlu0 %2210
        %2212 = vrot.lane.b32.xlu0 %v1669, 127
        %v2213 = vpop.permute.xlu0 %2212
        %v2214 = vsel %vm911, %v2207, %v2211
        %v2215 = vsel %vm911, %v2209, %v2213
        %v2216 = vsel %vm911, %v2203, %v2207
        %v2217 = vsel %vm911, %v2205, %v2209
        %v2218 = vsel %vm911, %v2199, %v2203
        %v2219 = vsel %vm911, %v2201, %v2205
        %v2220 = vsel %vm911, %v2195, %v2199
        %v2221 = vsel %vm911, %v2197, %v2201
        %v2222 = vsel %vm911, %v2191, %v2195
        %v2223 = vsel %vm911, %v2193, %v2197
        %v2224 = vsel %vm911, %v2187, %v2191
        %v2225 = vsel %vm911, %v2189, %v2193
        %v2226 = vsel %vm911, %v2183, %v2187
        %v2227 = vsel %vm911, %v2185, %v2189
        %v2228 = vsel %vm911, %v2211, %v2183
        %v2229 = vsel %vm911, %v2213, %v2185
        %v2230 = vld [vmem:[%s928] ss:$8 sm:$0xf]
        %v2231 = vld [vmem:[%s928] ss:$8 sm:$0xf0]
        %v2232 = vor.u32 %v2230, %v2231
        %v2234 = vlaneseq
        %v2235 = vshrl.u32 %v2234, 7
        %v2236 = vsub.s32 0, %v2235
        %v2237 = vrot.slane %v2232, %v2236
        %v2238 = vlaneseq
        %v2239 = vshrl.u32 %v2238, 7
        %v2240 = vsub.s32 1, %v2239
        %v2241 = vrot.slane %v2232, %v2240
        %v2242 = vlaneseq
        %v2243 = vshrl.u32 %v2242, 7
        %v2244 = vsub.s32 2, %v2243
        %v2245 = vrot.slane %v2232, %v2244
        %v2246 = vlaneseq
        %v2247 = vshrl.u32 %v2246, 7
        %v2248 = vsub.s32 3, %v2247
        %v2249 = vrot.slane %v2232, %v2248
        %v2250 = vlaneseq
        %v2251 = vshrl.u32 %v2250, 7
        %v2252 = vsub.s32 4, %v2251
        %v2253 = vrot.slane %v2232, %v2252
        %v2254 = vlaneseq
        %v2255 = vshrl.u32 %v2254, 7
        %v2256 = vsub.s32 5, %v2255
        %v2257 = vrot.slane %v2232, %v2256
        %v2258 = vlaneseq
        %v2259 = vshrl.u32 %v2258, 7
        %v2260 = vsub.s32 6, %v2259
        %v2261 = vrot.slane %v2232, %v2260
        %v2262 = vlaneseq
        %v2263 = vshrl.u32 %v2262, 7
        %v2264 = vsub.s32 7, %v2263
        %v2265 = vrot.slane %v2232, %v2264
        %v2274 = vmul.f32 %v2226, %v2237
        %v2275 = vmul.f32 %v2224, %v2241
        %v2276 = vmul.f32 %v2222, %v2245
        %v2277 = vmul.f32 %v2220, %v2249
        %v2278 = vmul.f32 %v2218, %v2253
        %v2279 = vmul.f32 %v2216, %v2257
        %v2280 = vmul.f32 %v2214, %v2261
        %v2281 = vmul.f32 %v2228, %v2265
        %v2282 = vmul.f32 %v2227, %v2237
        %v2283 = vmul.f32 %v2225, %v2241
        %v2284 = vmul.f32 %v2223, %v2245
        %v2285 = vmul.f32 %v2221, %v2249
        %v2286 = vmul.f32 %v2219, %v2253
        %v2287 = vmul.f32 %v2217, %v2257
        %v2288 = vmul.f32 %v2215, %v2261
        %v2289 = vmul.f32 %v2229, %v2265
        %v2290 = vpack.c.bf16 %v2282, %v2274
        %v2291 = vpack.c.bf16 %v2283, %v2275
        %v2292 = vpack.c.bf16 %v2284, %v2276
        %v2293 = vpack.c.bf16 %v2285, %v2277
        %v2294 = vpack.c.bf16 %v2286, %v2278
        %v2295 = vpack.c.bf16 %v2287, %v2279
        %v2296 = vpack.c.bf16 %v2288, %v2280
        %v2297 = vpack.c.bf16 %v2289, %v2281
        %2298 = vst [vmem:[#allocation2 + $0x140] sm:$0xff] %v2290
        %2299 = vst [vmem:[#allocation2 + $0x148] sm:$0xff] %v2291
        %2300 = vst [vmem:[#allocation2 + $0x150] sm:$0xff] %v2292
        %2301 = vst [vmem:[#allocation2 + $0x158] sm:$0xff] %v2293
        %2302 = vst [vmem:[#allocation2 + $0x160] sm:$0xff] %v2294
        %2303 = vst [vmem:[#allocation2 + $0x168] sm:$0xff] %v2295
        %2304 = vst [vmem:[#allocation2 + $0x170] sm:$0xff] %v2296
        %2305 = vst [vmem:[#allocation2 + $0x178] sm:$0xff] %v2297
        %2306 = vrot.lane.b32.xlu0 %v1654, 113
        %v2307 = vpop.permute.xlu0 %2306
        %2308 = vrot.lane.b32.xlu0 %v1662, 113
        %v2309 = vpop.permute.xlu0 %2308
        %2310 = vrot.lane.b32.xlu0 %v1655, 113
        %v2311 = vpop.permute.xlu0 %2310
        %2312 = vrot.lane.b32.xlu0 %v1663, 113
        %v2313 = vpop.permute.xlu0 %2312
        %2314 = vrot.lane.b32.xlu0 %v1656, 113
        %v2315 = vpop.permute.xlu0 %2314
        %2316 = vrot.lane.b32.xlu0 %v1664, 113
        %v2317 = vpop.permute.xlu0 %2316
        %2318 = vrot.lane.b32.xlu0 %v1657, 113
        %v2319 = vpop.permute.xlu0 %2318
        %2320 = vrot.lane.b32.xlu0 %v1665, 113
        %v2321 = vpop.permute.xlu0 %2320
        %2322 = vrot.lane.b32.xlu0 %v1658, 113
        %v2323 = vpop.permute.xlu0 %2322
        %2324 = vrot.lane.b32.xlu0 %v1666, 113
        %v2325 = vpop.permute.xlu0 %2324
        %2326 = vrot.lane.b32.xlu0 %v1659, 113
        %v2327 = vpop.permute.xlu0 %2326
        %2328 = vrot.lane.b32.xlu0 %v1667, 113
        %v2329 = vpop.permute.xlu0 %2328
        %2330 = vrot.lane.b32.xlu0 %v1660, 113
        %v2331 = vpop.permute.xlu0 %2330
        %2332 = vrot.lane.b32.xlu0 %v1668, 113
        %v2333 = vpop.permute.xlu0 %2332
        %2334 = vrot.lane.b32.xlu0 %v1661, 113
        %v2335 = vpop.permute.xlu0 %2334
        %2336 = vrot.lane.b32.xlu0 %v1669, 113
        %v2337 = vpop.permute.xlu0 %2336
        %v2338 = vsel %vm1037, %v2331, %v2335
        %v2339 = vsel %vm1037, %v2333, %v2337
        %v2340 = vsel %vm1037, %v2327, %v2331
        %v2341 = vsel %vm1037, %v2329, %v2333
        %v2342 = vsel %vm1037, %v2323, %v2327
        %v2343 = vsel %vm1037, %v2325, %v2329
        %v2344 = vsel %vm1037, %v2319, %v2323
        %v2345 = vsel %vm1037, %v2321, %v2325
        %v2346 = vsel %vm1037, %v2315, %v2319
        %v2347 = vsel %vm1037, %v2317, %v2321
        %v2348 = vsel %vm1037, %v2311, %v2315
        %v2349 = vsel %vm1037, %v2313, %v2317
        %v2350 = vsel %vm1037, %v2307, %v2311
        %v2351 = vsel %vm1037, %v2309, %v2313
        %v2352 = vsel %vm1037, %v2335, %v2307
        %v2353 = vsel %vm1037, %v2337, %v2309
        %v2354 = vld [vmem:[%s1054] ss:$8 sm:$0xf]
        %v2355 = vld [vmem:[%s1054] ss:$8 sm:$0xf0]
        %v2356 = vor.u32 %v2354, %v2355
        %v2358 = vlaneseq
        %v2359 = vshrl.u32 %v2358, 7
        %v2360 = vsub.s32 0, %v2359
        %v2361 = vrot.slane %v2356, %v2360
        %v2362 = vlaneseq
        %v2363 = vshrl.u32 %v2362, 7
        %v2364 = vsub.s32 1, %v2363
        %v2365 = vrot.slane %v2356, %v2364
        %v2366 = vlaneseq
        %v2367 = vshrl.u32 %v2366, 7
        %v2368 = vsub.s32 2, %v2367
        %v2369 = vrot.slane %v2356, %v2368
        %v2370 = vlaneseq
        %v2371 = vshrl.u32 %v2370, 7
        %v2372 = vsub.s32 3, %v2371
        %v2373 = vrot.slane %v2356, %v2372
        %v2374 = vlaneseq
        %v2375 = vshrl.u32 %v2374, 7
        %v2376 = vsub.s32 4, %v2375
        %v2377 = vrot.slane %v2356, %v2376
        %v2378 = vlaneseq
        %v2379 = vshrl.u32 %v2378, 7
        %v2380 = vsub.s32 5, %v2379
        %v2381 = vrot.slane %v2356, %v2380
        %v2382 = vlaneseq
        %v2383 = vshrl.u32 %v2382, 7
        %v2384 = vsub.s32 6, %v2383
        %v2385 = vrot.slane %v2356, %v2384
        %v2386 = vlaneseq
        %v2387 = vshrl.u32 %v2386, 7
        %v2388 = vsub.s32 7, %v2387
        %v2389 = vrot.slane %v2356, %v2388
        %v2398 = vmul.f32 %v2350, %v2361
        %v2399 = vmul.f32 %v2348, %v2365
        %v2400 = vmul.f32 %v2346, %v2369
        %v2401 = vmul.f32 %v2344, %v2373
        %v2402 = vmul.f32 %v2342, %v2377
        %v2403 = vmul.f32 %v2340, %v2381
        %v2404 = vmul.f32 %v2338, %v2385
        %v2405 = vmul.f32 %v2352, %v2389
        %v2406 = vmul.f32 %v2351, %v2361
        %v2407 = vmul.f32 %v2349, %v2365
        %v2408 = vmul.f32 %v2347, %v2369
        %v2409 = vmul.f32 %v2345, %v2373
        %v2410 = vmul.f32 %v2343, %v2377
        %v2411 = vmul.f32 %v2341, %v2381
        %v2412 = vmul.f32 %v2339, %v2385
        %v2413 = vmul.f32 %v2353, %v2389
        %v2414 = vpack.c.bf16 %v2406, %v2398
        %v2415 = vpack.c.bf16 %v2407, %v2399
        %v2416 = vpack.c.bf16 %v2408, %v2400
        %v2417 = vpack.c.bf16 %v2409, %v2401
        %v2418 = vpack.c.bf16 %v2410, %v2402
        %v2419 = vpack.c.bf16 %v2411, %v2403
        %v2420 = vpack.c.bf16 %v2412, %v2404
        %v2421 = vpack.c.bf16 %v2413, %v2405
        %2422 = vst [vmem:[#allocation2 + $0x180] sm:$0xff] %v2414
        %2423 = vst [vmem:[#allocation2 + $0x188] sm:$0xff] %v2415
        %2424 = vst [vmem:[#allocation2 + $0x190] sm:$0xff] %v2416
        %2425 = vst [vmem:[#allocation2 + $0x198] sm:$0xff] %v2417
        %2426 = vst [vmem:[#allocation2 + $0x1a0] sm:$0xff] %v2418
        %2427 = vst [vmem:[#allocation2 + $0x1a8] sm:$0xff] %v2419
        %2428 = vst [vmem:[#allocation2 + $0x1b0] sm:$0xff] %v2420
        %2429 = vst [vmem:[#allocation2 + $0x1b8] sm:$0xff] %v2421
        %2430 = vrot.lane.b32.xlu0 %v1654, 112
        %v2431 = vpop.permute.xlu0 %2430
        %2432 = vrot.lane.b32.xlu0 %v1662, 112
        %v2433 = vpop.permute.xlu0 %2432
        %2434 = vrot.lane.b32.xlu0 %v1655, 112
        %v2435 = vpop.permute.xlu0 %2434
        %2436 = vrot.lane.b32.xlu0 %v1663, 112
        %v2437 = vpop.permute.xlu0 %2436
        %2438 = vrot.lane.b32.xlu0 %v1656, 112
        %v2439 = vpop.permute.xlu0 %2438
        %2440 = vrot.lane.b32.xlu0 %v1664, 112
        %v2441 = vpop.permute.xlu0 %2440
        %2442 = vrot.lane.b32.xlu0 %v1657, 112
        %v2443 = vpop.permute.xlu0 %2442
        %2444 = vrot.lane.b32.xlu0 %v1665, 112
        %v2445 = vpop.permute.xlu0 %2444
        %2446 = vrot.lane.b32.xlu0 %v1658, 112
        %v2447 = vpop.permute.xlu0 %2446
        %2448 = vrot.lane.b32.xlu0 %v1666, 112
        %v2449 = vpop.permute.xlu0 %2448
        %2450 = vrot.lane.b32.xlu0 %v1659, 112
        %v2451 = vpop.permute.xlu0 %2450
        %2452 = vrot.lane.b32.xlu0 %v1667, 112
        %v2453 = vpop.permute.xlu0 %2452
        %2454 = vrot.lane.b32.xlu0 %v1660, 112
        %v2455 = vpop.permute.xlu0 %2454
        %2456 = vrot.lane.b32.xlu0 %v1668, 112
        %v2457 = vpop.permute.xlu0 %2456
        %2458 = vrot.lane.b32.xlu0 %v1661, 112
        %v2459 = vpop.permute.xlu0 %2458
        %2460 = vrot.lane.b32.xlu0 %v1669, 112
        %v2461 = vpop.permute.xlu0 %2460
        %v2462 = vsel %vm1163, %v2455, %v2459
        %v2463 = vsel %vm1163, %v2457, %v2461
        %v2464 = vsel %vm1163, %v2451, %v2455
        %v2465 = vsel %vm1163, %v2453, %v2457
        %v2466 = vsel %vm1163, %v2447, %v2451
        %v2467 = vsel %vm1163, %v2449, %v2453
        %v2468 = vsel %vm1163, %v2443, %v2447
        %v2469 = vsel %vm1163, %v2445, %v2449
        %v2470 = vsel %vm1163, %v2439, %v2443
        %v2471 = vsel %vm1163, %v2441, %v2445
        %v2472 = vsel %vm1163, %v2435, %v2439
        %v2473 = vsel %vm1163, %v2437, %v2441
        %v2474 = vsel %vm1163, %v2431, %v2435
        %v2475 = vsel %vm1163, %v2433, %v2437
        %v2476 = vsel %vm1163, %v2459, %v2431
        %v2477 = vsel %vm1163, %v2461, %v2433
        %v2478 = vld [vmem:[%s1180] ss:$8 sm:$0xf]
        %v2479 = vld [vmem:[%s1180] ss:$8 sm:$0xf0]
        %v2480 = vor.u32 %v2478, %v2479
        %v2482 = vlaneseq
        %v2483 = vshrl.u32 %v2482, 7
        %v2484 = vsub.s32 0, %v2483
        %v2485 = vrot.slane %v2480, %v2484
        %v2486 = vlaneseq
        %v2487 = vshrl.u32 %v2486, 7
        %v2488 = vsub.s32 1, %v2487
        %v2489 = vrot.slane %v2480, %v2488
        %v2490 = vlaneseq
        %v2491 = vshrl.u32 %v2490, 7
        %v2492 = vsub.s32 2, %v2491
        %v2493 = vrot.slane %v2480, %v2492
        %v2494 = vlaneseq
        %v2495 = vshrl.u32 %v2494, 7
        %v2496 = vsub.s32 3, %v2495
        %v2497 = vrot.slane %v2480, %v2496
        %v2498 = vlaneseq
        %v2499 = vshrl.u32 %v2498, 7
        %v2500 = vsub.s32 4, %v2499
        %v2501 = vrot.slane %v2480, %v2500
        %v2502 = vlaneseq
        %v2503 = vshrl.u32 %v2502, 7
        %v2504 = vsub.s32 5, %v2503
        %v2505 = vrot.slane %v2480, %v2504
        %v2506 = vlaneseq
        %v2507 = vshrl.u32 %v2506, 7
        %v2508 = vsub.s32 6, %v2507
        %v2509 = vrot.slane %v2480, %v2508
        %v2510 = vlaneseq
        %v2511 = vshrl.u32 %v2510, 7
        %v2512 = vsub.s32 7, %v2511
        %v2513 = vrot.slane %v2480, %v2512
        %v2522 = vmul.f32 %v2474, %v2485
        %v2523 = vmul.f32 %v2472, %v2489
        %v2524 = vmul.f32 %v2470, %v2493
        %v2525 = vmul.f32 %v2468, %v2497
        %v2526 = vmul.f32 %v2466, %v2501
        %v2527 = vmul.f32 %v2464, %v2505
        %v2528 = vmul.f32 %v2462, %v2509
        %v2529 = vmul.f32 %v2476, %v2513
        %v2530 = vmul.f32 %v2475, %v2485
        %v2531 = vmul.f32 %v2473, %v2489
        %v2532 = vmul.f32 %v2471, %v2493
        %v2533 = vmul.f32 %v2469, %v2497
        %v2534 = vmul.f32 %v2467, %v2501
        %v2535 = vmul.f32 %v2465, %v2505
        %v2536 = vmul.f32 %v2463, %v2509
        %v2537 = vmul.f32 %v2477, %v2513
        %v2538 = vpack.c.bf16 %v2530, %v2522
        %v2539 = vpack.c.bf16 %v2531, %v2523
        %v2540 = vpack.c.bf16 %v2532, %v2524
        %v2541 = vpack.c.bf16 %v2533, %v2525
        %v2542 = vpack.c.bf16 %v2534, %v2526
        %v2543 = vpack.c.bf16 %v2535, %v2527
        %v2544 = vpack.c.bf16 %v2536, %v2528
        %v2545 = vpack.c.bf16 %v2537, %v2529
        %2546 = vst [vmem:[#allocation2 + $0x1c0] sm:$0xff] %v2538
        %2547 = vst [vmem:[#allocation2 + $0x1c8] sm:$0xff] %v2539
        %2548 = vst [vmem:[#allocation2 + $0x1d0] sm:$0xff] %v2540
        %2549 = vst [vmem:[#allocation2 + $0x1d8] sm:$0xff] %v2541
        %2550 = vst [vmem:[#allocation2 + $0x1e0] sm:$0xff] %v2542
        %2551 = vst [vmem:[#allocation2 + $0x1e8] sm:$0xff] %v2543
        %2552 = vst [vmem:[#allocation2 + $0x1f0] sm:$0xff] %v2544
        %2553 = vst [vmem:[#allocation2 + $0x1f8] sm:$0xff] %v2545
        %2554 = vrot.lane.b32.xlu0 %v1654, 111
        %v2555 = vpop.permute.xlu0 %2554
        %2556 = vrot.lane.b32.xlu0 %v1662, 111
        %v2557 = vpop.permute.xlu0 %2556
        %2558 = vrot.lane.b32.xlu0 %v1655, 111
        %v2559 = vpop.permute.xlu0 %2558
        %2560 = vrot.lane.b32.xlu0 %v1663, 111
        %v2561 = vpop.permute.xlu0 %2560
        %2562 = vrot.lane.b32.xlu0 %v1656, 111
        %v2563 = vpop.permute.xlu0 %2562
        %2564 = vrot.lane.b32.xlu0 %v1664, 111
        %v2565 = vpop.permute.xlu0 %2564
        %2566 = vrot.lane.b32.xlu0 %v1657, 111
        %v2567 = vpop.permute.xlu0 %2566
        %2568 = vrot.lane.b32.xlu0 %v1665, 111
        %v2569 = vpop.permute.xlu0 %2568
        %2570 = vrot.lane.b32.xlu0 %v1658, 111
        %v2571 = vpop.permute.xlu0 %2570
        %2572 = vrot.lane.b32.xlu0 %v1666, 111
        %v2573 = vpop.permute.xlu0 %2572
        %2574 = vrot.lane.b32.xlu0 %v1659, 111
        %v2575 = vpop.permute.xlu0 %2574
        %2576 = vrot.lane.b32.xlu0 %v1667, 111
        %v2577 = vpop.permute.xlu0 %2576
        %2578 = vrot.lane.b32.xlu0 %v1660, 111
        %v2579 = vpop.permute.xlu0 %2578
        %2580 = vrot.lane.b32.xlu0 %v1668, 111
        %v2581 = vpop.permute.xlu0 %2580
        %2582 = vrot.lane.b32.xlu0 %v1661, 111
        %v2583 = vpop.permute.xlu0 %2582
        %2584 = vrot.lane.b32.xlu0 %v1669, 111
        %v2585 = vpop.permute.xlu0 %2584
        %v2586 = vsel %vm1289, %v2579, %v2583
        %v2587 = vsel %vm1289, %v2581, %v2585
        %v2588 = vsel %vm1289, %v2575, %v2579
        %v2589 = vsel %vm1289, %v2577, %v2581
        %v2590 = vsel %vm1289, %v2571, %v2575
        %v2591 = vsel %vm1289, %v2573, %v2577
        %v2592 = vsel %vm1289, %v2567, %v2571
        %v2593 = vsel %vm1289, %v2569, %v2573
        %v2594 = vsel %vm1289, %v2563, %v2567
        %v2595 = vsel %vm1289, %v2565, %v2569
        %v2596 = vsel %vm1289, %v2559, %v2563
        %v2597 = vsel %vm1289, %v2561, %v2565
        %v2598 = vsel %vm1289, %v2555, %v2559
        %v2599 = vsel %vm1289, %v2557, %v2561
        %v2600 = vsel %vm1289, %v2583, %v2555
        %v2601 = vsel %vm1289, %v2585, %v2557
        %v2602 = vld [vmem:[%s1306] ss:$8 sm:$0xf]
        %v2603 = vld [vmem:[%s1306] ss:$8 sm:$0xf0]
        %v2604 = vor.u32 %v2602, %v2603
        %v2606 = vlaneseq
        %v2607 = vshrl.u32 %v2606, 7
        %v2608 = vsub.s32 0, %v2607
        %v2609 = vrot.slane %v2604, %v2608
        %v2610 = vlaneseq
        %v2611 = vshrl.u32 %v2610, 7
        %v2612 = vsub.s32 1, %v2611
        %v2613 = vrot.slane %v2604, %v2612
        %v2614 = vlaneseq
        %v2615 = vshrl.u32 %v2614, 7
        %v2616 = vsub.s32 2, %v2615
        %v2617 = vrot.slane %v2604, %v2616
        %v2618 = vlaneseq
        %v2619 = vshrl.u32 %v2618, 7
        %v2620 = vsub.s32 3, %v2619
        %v2621 = vrot.slane %v2604, %v2620
        %v2622 = vlaneseq
        %v2623 = vshrl.u32 %v2622, 7
        %v2624 = vsub.s32 4, %v2623
        %v2625 = vrot.slane %v2604, %v2624
        %v2626 = vlaneseq
        %v2627 = vshrl.u32 %v2626, 7
        %v2628 = vsub.s32 5, %v2627
        %v2629 = vrot.slane %v2604, %v2628
        %v2630 = vlaneseq
        %v2631 = vshrl.u32 %v2630, 7
        %v2632 = vsub.s32 6, %v2631
        %v2633 = vrot.slane %v2604, %v2632
        %v2634 = vlaneseq
        %v2635 = vshrl.u32 %v2634, 7
        %v2636 = vsub.s32 7, %v2635
        %v2637 = vrot.slane %v2604, %v2636
        %v2646 = vmul.f32 %v2598, %v2609
        %v2647 = vmul.f32 %v2596, %v2613
        %v2648 = vmul.f32 %v2594, %v2617
        %v2649 = vmul.f32 %v2592, %v2621
        %v2650 = vmul.f32 %v2590, %v2625
        %v2651 = vmul.f32 %v2588, %v2629
        %v2652 = vmul.f32 %v2586, %v2633
        %v2653 = vmul.f32 %v2600, %v2637
        %v2654 = vmul.f32 %v2599, %v2609
        %v2655 = vmul.f32 %v2597, %v2613
        %v2656 = vmul.f32 %v2595, %v2617
        %v2657 = vmul.f32 %v2593, %v2621
        %v2658 = vmul.f32 %v2591, %v2625
        %v2659 = vmul.f32 %v2589, %v2629
        %v2660 = vmul.f32 %v2587, %v2633
        %v2661 = vmul.f32 %v2601, %v2637
        %v2662 = vpack.c.bf16 %v2654, %v2646
        %v2663 = vpack.c.bf16 %v2655, %v2647
        %v2664 = vpack.c.bf16 %v2656, %v2648
        %v2665 = vpack.c.bf16 %v2657, %v2649
        %v2666 = vpack.c.bf16 %v2658, %v2650
        %v2667 = vpack.c.bf16 %v2659, %v2651
        %v2668 = vpack.c.bf16 %v2660, %v2652
        %v2669 = vpack.c.bf16 %v2661, %v2653
        %2670 = vst [vmem:[#allocation2 + $0x200] sm:$0xff] %v2662
        %2671 = vst [vmem:[#allocation2 + $0x208] sm:$0xff] %v2663
        %2672 = vst [vmem:[#allocation2 + $0x210] sm:$0xff] %v2664
        %2673 = vst [vmem:[#allocation2 + $0x218] sm:$0xff] %v2665
        %2674 = vst [vmem:[#allocation2 + $0x220] sm:$0xff] %v2666
        %2675 = vst [vmem:[#allocation2 + $0x228] sm:$0xff] %v2667
        %2676 = vst [vmem:[#allocation2 + $0x230] sm:$0xff] %v2668
        %2677 = vst [vmem:[#allocation2 + $0x238] sm:$0xff] %v2669
        %v2678 = vld [vmem:[%s4] sm:$0xff]
        %v2679 = vld [vmem:[%s4 + $0x8] sm:$0xff]
        %v2680 = vld [vmem:[#allocation2] sm:$0xff]
        %v2681 = vld [vmem:[#allocation2 + $0x8] sm:$0xff]
        %v2682 = vld [vmem:[#allocation2 + $0x10] sm:$0xff]
        %v2683 = vld [vmem:[#allocation2 + $0x18] sm:$0xff]
        %v2684 = vld [vmem:[#allocation2 + $0x20] sm:$0xff]
        %v2685 = vld [vmem:[#allocation2 + $0x28] sm:$0xff]
        %v2686 = vld [vmem:[#allocation2 + $0x30] sm:$0xff]
        %v2687 = vld [vmem:[#allocation2 + $0x38] sm:$0xff]
        %v2688 = vld [vmem:[#allocation2 + $0x40] sm:$0xff]
        %v2689 = vld [vmem:[#allocation2 + $0x48] sm:$0xff]
        %v2690 = vld [vmem:[#allocation2 + $0x50] sm:$0xff]
        %v2691 = vld [vmem:[#allocation2 + $0x58] sm:$0xff]
        %v2692 = vld [vmem:[#allocation2 + $0x60] sm:$0xff]
        %v2693 = vld [vmem:[#allocation2 + $0x68] sm:$0xff]
        %v2694 = vld [vmem:[#allocation2 + $0x70] sm:$0xff]
        %v2695 = vld [vmem:[#allocation2 + $0x78] sm:$0xff]
        %v2696 = vld [vmem:[#allocation2 + $0x80] sm:$0xff]
        %v2697 = vld [vmem:[#allocation2 + $0x88] sm:$0xff]
        %v2698 = vld [vmem:[#allocation2 + $0x90] sm:$0xff]
        %v2699 = vld [vmem:[#allocation2 + $0x98] sm:$0xff]
        %v2700 = vld [vmem:[#allocation2 + $0xa0] sm:$0xff]
        %v2701 = vld [vmem:[#allocation2 + $0xa8] sm:$0xff]
        %v2702 = vld [vmem:[#allocation2 + $0xb0] sm:$0xff]
        %v2703 = vld [vmem:[#allocation2 + $0xb8] sm:$0xff]
        %v2704 = vld [vmem:[#allocation2 + $0xc0] sm:$0xff]
        %v2705 = vld [vmem:[#allocation2 + $0xc8] sm:$0xff]
        %v2706 = vld [vmem:[#allocation2 + $0xd0] sm:$0xff]
        %v2707 = vld [vmem:[#allocation2 + $0xd8] sm:$0xff]
        %v2708 = vld [vmem:[#allocation2 + $0xe0] sm:$0xff]
        %v2709 = vld [vmem:[#allocation2 + $0xe8] sm:$0xff]
        %v2710 = vld [vmem:[#allocation2 + $0xf0] sm:$0xff]
        %v2711 = vld [vmem:[#allocation2 + $0xf8] sm:$0xff]
        %v2712 = vld [vmem:[#allocation2 + $0x100] sm:$0xff]
        %v2713 = vld [vmem:[#allocation2 + $0x108] sm:$0xff]
        %v2714 = vld [vmem:[#allocation2 + $0x110] sm:$0xff]
        %v2715 = vld [vmem:[#allocation2 + $0x118] sm:$0xff]
        %v2716 = vld [vmem:[#allocation2 + $0x120] sm:$0xff]
        %v2717 = vld [vmem:[#allocation2 + $0x128] sm:$0xff]
        %v2718 = vld [vmem:[#allocation2 + $0x130] sm:$0xff]
        %v2719 = vld [vmem:[#allocation2 + $0x138] sm:$0xff]
        %v2720 = vld [vmem:[#allocation2 + $0x140] sm:$0xff]
        %v2721 = vld [vmem:[#allocation2 + $0x148] sm:$0xff]
        %v2722 = vld [vmem:[#allocation2 + $0x150] sm:$0xff]
        %v2723 = vld [vmem:[#allocation2 + $0x158] sm:$0xff]
        %v2724 = vld [vmem:[#allocation2 + $0x160] sm:$0xff]
        %v2725 = vld [vmem:[#allocation2 + $0x168] sm:$0xff]
        %v2726 = vld [vmem:[#allocation2 + $0x170] sm:$0xff]
        %v2727 = vld [vmem:[#allocation2 + $0x178] sm:$0xff]
        %v2728 = vld [vmem:[#allocation2 + $0x180] sm:$0xff]
        %v2729 = vld [vmem:[#allocation2 + $0x188] sm:$0xff]
        %v2730 = vld [vmem:[#allocation2 + $0x190] sm:$0xff]
        %v2731 = vld [vmem:[#allocation2 + $0x198] sm:$0xff]
        %v2732 = vld [vmem:[#allocation2 + $0x1a0] sm:$0xff]
        %v2733 = vld [vmem:[#allocation2 + $0x1a8] sm:$0xff]
        %v2734 = vld [vmem:[#allocation2 + $0x1b0] sm:$0xff]
        %v2735 = vld [vmem:[#allocation2 + $0x1b8] sm:$0xff]
        %v2736 = vld [vmem:[#allocation2 + $0x1c0] sm:$0xff]
        %v2737 = vld [vmem:[#allocation2 + $0x1c8] sm:$0xff]
        %v2738 = vld [vmem:[#allocation2 + $0x1d0] sm:$0xff]
        %v2739 = vld [vmem:[#allocation2 + $0x1d8] sm:$0xff]
        %v2740 = vld [vmem:[#allocation2 + $0x1e0] sm:$0xff]
        %v2741 = vld [vmem:[#allocation2 + $0x1e8] sm:$0xff]
        %v2742 = vld [vmem:[#allocation2 + $0x1f0] sm:$0xff]
        %v2743 = vld [vmem:[#allocation2 + $0x1f8] sm:$0xff]
        %v2744 = vld [vmem:[#allocation2 + $0x200] sm:$0xff]
        %v2745 = vld [vmem:[#allocation2 + $0x208] sm:$0xff]
        %v2746 = vld [vmem:[#allocation2 + $0x210] sm:$0xff]
        %v2747 = vld [vmem:[#allocation2 + $0x218] sm:$0xff]
        %v2748 = vld [vmem:[#allocation2 + $0x220] sm:$0xff]
        %v2749 = vld [vmem:[#allocation2 + $0x228] sm:$0xff]
        %v2750 = vld [vmem:[#allocation2 + $0x230] sm:$0xff]
        %v2751 = vld [vmem:[#allocation2 + $0x238] sm:$0xff]
        %v2752 = vld [vmem:[%s5] sm:$0xff]
        %v2753 = vld [vmem:[%s5 + $0x8] sm:$0xff]
        %2755 = vset.pattern.permute.xlu0 0
        %2756 = vperm.xlu0 %2755, %v2752
        %v2757 = vpop.permute.xlu0 %2756
        %2760 = vset.pattern.permute.xlu0 0
        %2761 = vperm.xlu0 %2760, %v2753
        %v2762 = vpop.permute.xlu0 %2761
        %v2766 = vunpack.c.l.b16 %v2678
        %v2767 = vunpack.c.h.b16 %v2678
        %v2768 = vunpack.c.l.b16 %v2679
        %v2769 = vunpack.c.h.b16 %v2679
        %v2770 = vpack.c.b16 %v2768, %v2766
        %v2771 = vpack.c.b16 %v2769, %v2767
        %v2774 = vsel %vm1478, %v2771, 0
        %2776 = vmatprep.subr.bf16.mxu0 %v2681
        %2777 = vmatpush1.bf16.msra.mxu0 %v2680
        %2778 = vmatprep.subr.bf16.mxu0 %v2689
        %2779 = vmatpush1.bf16.msra.mxu0 %v2688
        %2780 = vmatprep.subr.bf16.mxu0 %v2697
        %2781 = vmatpush1.bf16.msra.mxu0 %v2696
        %2782 = vmatprep.subr.bf16.mxu0 %v2705
        %2783 = vmatpush1.bf16.msra.mxu0 %v2704
        %2784 = vmatprep.subr.bf16.mxu0 %v2713
        %2785 = vmatpush1.bf16.msra.mxu0 %v2712
        %2786 = vmatprep.subr.bf16.mxu0 %v2721
        %2787 = vmatpush1.bf16.msra.mxu0 %v2720
        %2788 = vmatprep.subr.bf16.mxu0 %v2729
        %2789 = vmatpush1.bf16.msra.mxu0 %v2728
        %2790 = vmatprep.subr.bf16.mxu0 %v2737
        %2791 = vmatpush1.bf16.msra.mxu0 %v2736
        %2792 = vmatprep.subr.bf16.mxu0 %v2745
        %2793 = vmatpush1.bf16.msra.mxu0 %v2744
        %2794 = vmatprep.subr.bf16.mxu0 0
        %2795 = vmatpush1.bf16.msra.mxu0 0
        %2796 = vmatprep.subr.bf16.mxu0 0
        %2797 = vmatpush1.bf16.msra.mxu0 0
        %2798 = vmatprep.subr.bf16.mxu0 0
        %2799 = vmatpush1.bf16.msra.mxu0 0
        %2800 = vmatprep.subr.bf16.mxu0 0
        %2801 = vmatpush1.bf16.msra.mxu0 0
        %2802 = vmatprep.subr.bf16.mxu0 0
        %2803 = vmatpush1.bf16.msra.mxu0 0
        %2804 = vmatprep.subr.bf16.mxu0 0
        %2805 = vmatpush1.bf16.msra.mxu0 0
        %2806 = vmatprep.subr.bf16.mxu0 0
        %2807 = vmatpush1.bf16.msra.mxu0 0
        %2808 = vmatprep.mubr.bf16.mxu0 %v2774
        %2809 = vmatmul.mubr.bf16.gmra.mrb[0].mxu0 %v2770
        %v2810 = vpop.f32.mrb[0].mxu0
        %v2811 = vadd.f32 %v2757, %v2810
        %v2812 = vpop.f32.mrb[0].mxu0
        %v2813 = vadd.f32 %v2757, %v2812
        %v2814 = vpop.f32.mrb[0].mxu0
        %v2815 = vadd.f32 %v2762, %v2814
        %v2816 = vpop.f32.mrb[0].mxu0
        %v2817 = vadd.f32 %v2762, %v2816
        %2818 = vdwg.mxu0
        %2819 = vmatprep.subr.bf16.mxu0 %v2683
        %2820 = vmatpush1.bf16.msra.mxu0 %v2682
        %2821 = vmatprep.subr.bf16.mxu0 %v2691
        %2822 = vmatpush1.bf16.msra.mxu0 %v2690
        %2823 = vmatprep.subr.bf16.mxu0 %v2699
        %2824 = vmatpush1.bf16.msra.mxu0 %v2698
        %2825 = vmatprep.subr.bf16.mxu0 %v2707
        %2826 = vmatpush1.bf16.msra.mxu0 %v2706
        %2827 = vmatprep.subr.bf16.mxu0 %v2715
        %2828 = vmatpush1.bf16.msra.mxu0 %v2714
        %2829 = vmatprep.subr.bf16.mxu0 %v2723
        %2830 = vmatpush1.bf16.msra.mxu0 %v2722
        %2831 = vmatprep.subr.bf16.mxu0 %v2731
        %2832 = vmatpush1.bf16.msra.mxu0 %v2730
        %2833 = vmatprep.subr.bf16.mxu0 %v2739
        %2834 = vmatpush1.bf16.msra.mxu0 %v2738
        %2835 = vmatprep.subr.bf16.mxu0 %v2747
        %2836 = vmatpush1.bf16.msra.mxu0 %v2746
        %2837 = vmatprep.subr.bf16.mxu0 0
        %2838 = vmatpush1.bf16.msra.mxu0 0
        %2839 = vmatprep.subr.bf16.mxu0 0
        %2840 = vmatpush1.bf16.msra.mxu0 0
        %2841 = vmatprep.subr.bf16.mxu0 0
        %2842 = vmatpush1.bf16.msra.mxu0 0
        %2843 = vmatprep.subr.bf16.mxu0 0
        %2844 = vmatpush1.bf16.msra.mxu0 0
        %2845 = vmatprep.subr.bf16.mxu0 0
        %2846 = vmatpush1.bf16.msra.mxu0 0
        %2847 = vmatprep.subr.bf16.mxu0 0
        %2848 = vmatpush1.bf16.msra.mxu0 0
        %2849 = vmatprep.subr.bf16.mxu0 0
        %2850 = vmatpush1.bf16.msra.mxu0 0
        %2851 = vmatprep.mubr.bf16.mxu0 %v2774
        %2852 = vmatmul.mubr.bf16.gmra.mrb[0].mxu0 %v2770
        %v2853 = vpop.f32.mrb[0].mxu0
        %v2854 = vadd.f32 %v2757, %v2853
        %v2855 = vpop.f32.mrb[0].mxu0
        %v2856 = vadd.f32 %v2757, %v2855
        %v2857 = vpop.f32.mrb[0].mxu0
        %v2858 = vadd.f32 %v2762, %v2857
        %v2859 = vpop.f32.mrb[0].mxu0
        %v2860 = vadd.f32 %v2762, %v2859
        %2861 = vdwg.mxu0
        %2862 = vmatprep.subr.bf16.mxu0 %v2685
        %2863 = vmatpush1.bf16.msra.mxu0 %v2684
        %2864 = vmatprep.subr.bf16.mxu0 %v2693
        %2865 = vmatpush1.bf16.msra.mxu0 %v2692
        %2866 = vmatprep.subr.bf16.mxu0 %v2701
        %2867 = vmatpush1.bf16.msra.mxu0 %v2700
        %2868 = vmatprep.subr.bf16.mxu0 %v2709
        %2869 = vmatpush1.bf16.msra.mxu0 %v2708
        %2870 = vmatprep.subr.bf16.mxu0 %v2717
        %2871 = vmatpush1.bf16.msra.mxu0 %v2716
        %2872 = vmatprep.subr.bf16.mxu0 %v2725
        %2873 = vmatpush1.bf16.msra.mxu0 %v2724
        %2874 = vmatprep.subr.bf16.mxu0 %v2733
        %2875 = vmatpush1.bf16.msra.mxu0 %v2732
        %2876 = vmatprep.subr.bf16.mxu0 %v2741
        %2877 = vmatpush1.bf16.msra.mxu0 %v2740
        %2878 = vmatprep.subr.bf16.mxu0 %v2749
        %2879 = vmatpush1.bf16.msra.mxu0 %v2748
        %2880 = vmatprep.subr.bf16.mxu0 0
        %2881 = vmatpush1.bf16.msra.mxu0 0
        %2882 = vmatprep.subr.bf16.mxu0 0
        %2883 = vmatpush1.bf16.msra.mxu0 0
        %2884 = vmatprep.subr.bf16.mxu0 0
        %2885 = vmatpush1.bf16.msra.mxu0 0
        %2886 = vmatprep.subr.bf16.mxu0 0
        %2887 = vmatpush1.bf16.msra.mxu0 0
        %2888 = vmatprep.subr.bf16.mxu0 0
        %2889 = vmatpush1.bf16.msra.mxu0 0
        %2890 = vmatprep.subr.bf16.mxu0 0
        %2891 = vmatpush1.bf16.msra.mxu0 0
        %2892 = vmatprep.subr.bf16.mxu0 0
        %2893 = vmatpush1.bf16.msra.mxu0 0
        %2894 = vmatprep.mubr.bf16.mxu0 %v2774
        %2895 = vmatmul.mubr.bf16.gmra.mrb[0].mxu0 %v2770
        %v2896 = vpop.f32.mrb[0].mxu0
        %v2897 = vadd.f32 %v2757, %v2896
        %v2898 = vpop.f32.mrb[0].mxu0
        %v2899 = vadd.f32 %v2757, %v2898
        %v2900 = vpop.f32.mrb[0].mxu0
        %v2901 = vadd.f32 %v2762, %v2900
        %v2902 = vpop.f32.mrb[0].mxu0
        %v2903 = vadd.f32 %v2762, %v2902
        %2904 = vdwg.mxu0
        %2905 = vmatprep.subr.bf16.mxu0 %v2687
        %2906 = vmatpush1.bf16.msra.mxu0 %v2686
        %2907 = vmatprep.subr.bf16.mxu0 %v2695
        %2908 = vmatpush1.bf16.msra.mxu0 %v2694
        %2909 = vmatprep.subr.bf16.mxu0 %v2703
        %2910 = vmatpush1.bf16.msra.mxu0 %v2702
        %2911 = vmatprep.subr.bf16.mxu0 %v2711
        %2912 = vmatpush1.bf16.msra.mxu0 %v2710
        %2913 = vmatprep.subr.bf16.mxu0 %v2719
        %2914 = vmatpush1.bf16.msra.mxu0 %v2718
        %2915 = vmatprep.subr.bf16.mxu0 %v2727
        %2916 = vmatpush1.bf16.msra.mxu0 %v2726
        %2917 = vmatprep.subr.bf16.mxu0 %v2735
        %2918 = vmatpush1.bf16.msra.mxu0 %v2734
        %2919 = vmatprep.subr.bf16.mxu0 %v2743
        %2920 = vmatpush1.bf16.msra.mxu0 %v2742
        %2921 = vmatprep.subr.bf16.mxu0 %v2751
        %2922 = vmatpush1.bf16.msra.mxu0 %v2750
        %2923 = vmatprep.subr.bf16.mxu0 0
        %2924 = vmatpush1.bf16.msra.mxu0 0
        %2925 = vmatprep.subr.bf16.mxu0 0
        %2926 = vmatpush1.bf16.msra.mxu0 0
        %2927 = vmatprep.subr.bf16.mxu0 0
        %2928 = vmatpush1.bf16.msra.mxu0 0
        %2929 = vmatprep.subr.bf16.mxu0 0
        %2930 = vmatpush1.bf16.msra.mxu0 0
        %2931 = vmatprep.subr.bf16.mxu0 0
        %2932 = vmatpush1.bf16.msra.mxu0 0
        %2933 = vmatprep.subr.bf16.mxu0 0
        %2934 = vmatpush1.bf16.msra.mxu0 0
        %2935 = vmatprep.subr.bf16.mxu0 0
        %2936 = vmatpush1.bf16.msra.mxu0 0
        %2937 = vmatprep.mubr.bf16.mxu0 %v2774
        %2938 = vmatmul.mubr.bf16.gmra.mrb[0].mxu0 %v2770
        %v2939 = vpop.f32.mrb[0].mxu0
        %v2940 = vadd.f32 %v2757, %v2939
        %v2941 = vpop.f32.mrb[0].mxu0
        %v2942 = vadd.f32 %v2757, %v2941
        %v2943 = vpop.f32.mrb[0].mxu0
        %v2944 = vadd.f32 %v2762, %v2943
        %v2945 = vpop.f32.mrb[0].mxu0
        %v2946 = vadd.f32 %v2762, %v2945
        %2947 = vdwg.mxu0
        %v2948 = vmax.f32 %v2811, 0.0
        %v2949 = vmax.f32 %v2813, 0.0
        %v2950 = vmax.f32 %v2854, 0.0
        %v2951 = vmax.f32 %v2856, 0.0
        %v2952 = vmax.f32 %v2897, 0.0
        %v2953 = vmax.f32 %v2899, 0.0
        %v2954 = vmax.f32 %v2940, 0.0
        %v2955 = vmax.f32 %v2942, 0.0
        %v2956 = vmax.f32 %v2815, 0.0
        %v2957 = vmax.f32 %v2817, 0.0
        %v2958 = vmax.f32 %v2858, 0.0
        %v2959 = vmax.f32 %v2860, 0.0
        %v2960 = vmax.f32 %v2901, 0.0
        %v2961 = vmax.f32 %v2903, 0.0
        %v2962 = vmax.f32 %v2944, 0.0
        %v2963 = vmax.f32 %v2946, 0.0
        %v2964 = vadd.f32 %v2948, %v2949
        %2965 = vadd.xlane.f32.xlu0 %v2964
        %v2966 = vpop.xlane.xlu0 %2965
        %v2967 = vadd.f32 %v2956, %v2957
        %2968 = vadd.xlane.f32.xlu0 %v2967
        %v2969 = vpop.xlane.xlu0 %2968
        %v2970 = vrcp.pop 256.0
        %v2971 = vmul.f32 %v2966, %v2970
        %v2972 = vmul.f32 %v2969, %v2970
        %v2973 = vmax.f32 %v2948, %v2949
        %2974 = vmax.xlane.f32.xlu0 %v2973
        %v2975 = vpop.xlane.xlu0 %2974
        %v2976 = vmax.f32 %v2956, %v2957
        %2977 = vmax.xlane.f32.xlu0 %v2976
        %v2978 = vpop.xlane.xlu0 %2977
        %v2979 = vadd.f32 %v2950, %v2951
        %2980 = vadd.xlane.f32.xlu0 %v2979
        %v2981 = vpop.xlane.xlu0 %2980
        %v2982 = vadd.f32 %v2958, %v2959
        %2983 = vadd.xlane.f32.xlu0 %v2982
        %v2984 = vpop.xlane.xlu0 %2983
        %v2985 = vmul.f32 %v2981, %v2970
        %v2986 = vmul.f32 %v2984, %v2970
        %v2987 = vmax.f32 %v2950, %v2951
        %2988 = vmax.xlane.f32.xlu0 %v2987
        %v2989 = vpop.xlane.xlu0 %2988
        %v2990 = vmax.f32 %v2958, %v2959
        %2991 = vmax.xlane.f32.xlu0 %v2990
        %v2992 = vpop.xlane.xlu0 %2991
        %v2993 = vadd.f32 %v2952, %v2953
        %2994 = vadd.xlane.f32.xlu0 %v2993
        %v2995 = vpop.xlane.xlu0 %2994
        %v2996 = vadd.f32 %v2960, %v2961
        %2997 = vadd.xlane.f32.xlu0 %v2996
        %v2998 = vpop.xlane.xlu0 %2997
        %v2999 = vmul.f32 %v2995, %v2970
        %v3000 = vmul.f32 %v2998, %v2970
        %v3001 = vmax.f32 %v2952, %v2953
        %3002 = vmax.xlane.f32.xlu0 %v3001
        %v3003 = vpop.xlane.xlu0 %3002
        %v3004 = vmax.f32 %v2960, %v2961
        %3005 = vmax.xlane.f32.xlu0 %v3004
        %v3006 = vpop.xlane.xlu0 %3005
        %v3007 = vadd.f32 %v2954, %v2955
        %3008 = vadd.xlane.f32.xlu0 %v3007
        %v3009 = vpop.xlane.xlu0 %3008
        %v3010 = vadd.f32 %v2962, %v2963
        %3011 = vadd.xlane.f32.xlu0 %v3010
        %v3012 = vpop.xlane.xlu0 %3011
        %v3013 = vmul.f32 %v3009, %v2970
        %v3014 = vmul.f32 %v3012, %v2970
        %v3015 = vmax.f32 %v2954, %v2955
        %3016 = vmax.xlane.f32.xlu0 %v3015
        %v3017 = vpop.xlane.xlu0 %3016
        %v3018 = vmax.f32 %v2962, %v2963
        %3019 = vmax.xlane.f32.xlu0 %v3018
        %v3020 = vpop.xlane.xlu0 %3019
        %vm3021 = vcmask 7168
        %v3022 = vsel %vm3021, %v2971, %v2985
        %v3023 = vsel %vm3021, %v2972, %v2986
        %vm3024 = vcmask 15360
        %v3025 = vsel %vm3024, %v3022, %v2999
        %v3026 = vsel %vm3024, %v3023, %v3000
        %vm3027 = vcmask 23552
        %v3028 = vsel %vm3027, %v3025, %v3013
        %v3029 = vsel %vm3027, %v3026, %v3014
        %vm3030 = vcmask 31744
        %v3031 = vsel %vm3030, %v3028, %v2975
        %v3032 = vsel %vm3030, %v3029, %v2978
        %vm3033 = vcmask 39936
        %v3034 = vsel %vm3033, %v3031, %v2989
        %v3035 = vsel %vm3033, %v3032, %v2992
        %vm3036 = vcmask 48128
        %v3037 = vsel %vm3036, %v3034, %v3003
        %v3038 = vsel %vm3036, %v3035, %v3006
        %vm3039 = vcmask 56320
        %v3040 = vsel %vm3039, %v3037, %v3017
        %v3041 = vsel %vm3039, %v3038, %v3020
        %v3042 = vld [vmem:[%s6] sm:$0x3]
        %v3044 = vsel %vm1478, %v3042, 0
        %3046 = vmatprep.subr.mxu0 0.0
        %3047 = vmatpush1.msra.mxu0 %v3040
        %3048 = vmatprep.subr.mxu0 0.0
        %3049 = vmatpush1.msra.mxu0 %v3041
        %3050 = vmatprep.subr.mxu0 0.0
        %3051 = vmatpush1.msra.mxu0 0.0
        %3052 = vmatprep.subr.mxu0 0.0
        %3053 = vmatpush1.msra.mxu0 0.0
        %3054 = vmatprep.subr.mxu0 0.0
        %3055 = vmatpush1.msra.mxu0 0.0
        %3056 = vmatprep.subr.mxu0 0.0
        %3057 = vmatpush1.msra.mxu0 0.0
        %3058 = vmatprep.subr.mxu0 0.0
        %3059 = vmatpush1.msra.mxu0 0.0
        %3060 = vmatprep.subr.mxu0 0.0
        %3061 = vmatpush1.msra.mxu0 0.0
        %3062 = vmatprep.subr.mxu0 0.0
        %3063 = vmatpush1.msra.mxu0 0.0
        %3064 = vmatprep.subr.mxu0 0.0
        %3065 = vmatpush1.msra.mxu0 0.0
        %3066 = vmatprep.subr.mxu0 0.0
        %3067 = vmatpush1.msra.mxu0 0.0
        %3068 = vmatprep.subr.mxu0 0.0
        %3069 = vmatpush1.msra.mxu0 0.0
        %3070 = vmatprep.subr.mxu0 0.0
        %3071 = vmatpush1.msra.mxu0 0.0
        %3072 = vmatprep.subr.mxu0 0.0
        %3073 = vmatpush1.msra.mxu0 0.0
        %3074 = vmatprep.subr.mxu0 0.0
        %3075 = vmatpush1.msra.mxu0 0.0
        %3076 = vmatprep.subr.mxu0 0.0
        %3077 = vmatpush1.msra.mxu0 0.0
        %3078 = vmatprep.subr.mxu0 0.0
        %3079 = vmatpush1.msra.mxu0 0.0
        %3080 = vmatprep.subr.mxu0 0.0
        %3081 = vmatpush1.msra.mxu0 0.0
        %3082 = vmatprep.subr.mxu0 0.0
        %3083 = vmatpush1.msra.mxu0 0.0
        %3084 = vmatprep.subr.mxu0 0.0
        %3085 = vmatpush1.msra.mxu0 0.0
        %3086 = vmatprep.subr.mxu0 0.0
        %3087 = vmatpush1.msra.mxu0 0.0
        %3088 = vmatprep.subr.mxu0 0.0
        %3089 = vmatpush1.msra.mxu0 0.0
        %3090 = vmatprep.subr.mxu0 0.0
        %3091 = vmatpush1.msra.mxu0 0.0
        %3092 = vmatprep.subr.mxu0 0.0
        %3093 = vmatpush1.msra.mxu0 0.0
        %3094 = vmatprep.subr.mxu0 0.0
        %3095 = vmatpush1.msra.mxu0 0.0
        %3096 = vmatprep.subr.mxu0 0.0
        %3097 = vmatpush1.msra.mxu0 0.0
        %3098 = vmatprep.subr.mxu0 0.0
        %3099 = vmatpush1.msra.mxu0 0.0
        %3100 = vmatprep.subr.mxu0 0.0
        %3101 = vmatpush1.msra.mxu0 0.0
        %3102 = vmatprep.subr.mxu0 0.0
        %3103 = vmatpush1.msra.mxu0 0.0
        %3104 = vmatprep.subr.mxu0 0.0
        %3105 = vmatpush1.msra.mxu0 0.0
        %3106 = vmatprep.subr.mxu0 0.0
        %3107 = vmatpush1.msra.mxu0 0.0
        %3108 = vmatprep.subr.mxu0 0.0
        %3109 = vmatpush1.msra.mxu0 0.0
        %3110 = vmatprep.mubr.f32.mxu0 0.0
        %3111 = vmatmul.mubr.f32.gmra.mrb[0].mxu0 %v3044
        %v3112 = vpop.f32.mrb[0].mxu0
        %v3113 = vadd.f32 0.0, %v3112
        %v3114 = vpop.f32.mrb[0].mxu0
        %3115 = vdwg.mxu0
        %v3116 = vmax.f32 %v3113, 0.0
        %v3117 = vld [vmem:[%s7] sm:$0xff]
        %v3118 = vld [vmem:[%s7 + $0x8] sm:$0xff]
        %v3120 = vsel %vm3024, %v3117, 0
        %v3123 = vsel %vm3024, %v3118, 0
        %vm3125 = vcmask 1041408
        %v3127 = vsel %vm3125, %v3116, 0
        %3129 = vmatprep.subr.mxu0 0.0
        %3130 = vmatpush1.msra.mxu0 %v3127
        %3131 = vmatprep.subr.mxu0 0.0
        %3132 = vmatpush1.msra.mxu0 0.0
        %3133 = vmatprep.subr.mxu0 0.0
        %3134 = vmatpush1.msra.mxu0 0.0
        %3135 = vmatprep.subr.mxu0 0.0
        %3136 = vmatpush1.msra.mxu0 0.0
        %3137 = vmatprep.subr.mxu0 0.0
        %3138 = vmatpush1.msra.mxu0 0.0
        %3139 = vmatprep.subr.mxu0 0.0
        %3140 = vmatpush1.msra.mxu0 0.0
        %3141 = vmatprep.subr.mxu0 0.0
        %3142 = vmatpush1.msra.mxu0 0.0
        %3143 = vmatprep.subr.mxu0 0.0
        %3144 = vmatpush1.msra.mxu0 0.0
        %3145 = vmatprep.subr.mxu0 0.0
        %3146 = vmatpush1.msra.mxu0 0.0
        %3147 = vmatprep.subr.mxu0 0.0
        %3148 = vmatpush1.msra.mxu0 0.0
        %3149 = vmatprep.subr.mxu0 0.0
        %3150 = vmatpush1.msra.mxu0 0.0
        %3151 = vmatprep.subr.mxu0 0.0
        %3152 = vmatpush1.msra.mxu0 0.0
        %3153 = vmatprep.subr.mxu0 0.0
        %3154 = vmatpush1.msra.mxu0 0.0
        %3155 = vmatprep.subr.mxu0 0.0
        %3156 = vmatpush1.msra.mxu0 0.0
        %3157 = vmatprep.subr.mxu0 0.0
        %3158 = vmatpush1.msra.mxu0 0.0
        %3159 = vmatprep.subr.mxu0 0.0
        %3160 = vmatpush1.msra.mxu0 0.0
        %3161 = vmatprep.subr.mxu0 0.0
        %3162 = vmatpush1.msra.mxu0 0.0
        %3163 = vmatprep.subr.mxu0 0.0
        %3164 = vmatpush1.msra.mxu0 0.0
        %3165 = vmatprep.subr.mxu0 0.0
        %3166 = vmatpush1.msra.mxu0 0.0
        %3167 = vmatprep.subr.mxu0 0.0
        %3168 = vmatpush1.msra.mxu0 0.0
        %3169 = vmatprep.subr.mxu0 0.0
        %3170 = vmatpush1.msra.mxu0 0.0
        %3171 = vmatprep.subr.mxu0 0.0
        %3172 = vmatpush1.msra.mxu0 0.0
        %3173 = vmatprep.subr.mxu0 0.0
        %3174 = vmatpush1.msra.mxu0 0.0
        %3175 = vmatprep.subr.mxu0 0.0
        %3176 = vmatpush1.msra.mxu0 0.0
        %3177 = vmatprep.subr.mxu0 0.0
        %3178 = vmatpush1.msra.mxu0 0.0
        %3179 = vmatprep.subr.mxu0 0.0
        %3180 = vmatpush1.msra.mxu0 0.0
        %3181 = vmatprep.subr.mxu0 0.0
        %3182 = vmatpush1.msra.mxu0 0.0
        %3183 = vmatprep.subr.mxu0 0.0
        %3184 = vmatpush1.msra.mxu0 0.0
        %3185 = vmatprep.subr.mxu0 0.0
        %3186 = vmatpush1.msra.mxu0 0.0
        %3187 = vmatprep.subr.mxu0 0.0
        %3188 = vmatpush1.msra.mxu0 0.0
        %3189 = vmatprep.subr.mxu0 0.0
        %3190 = vmatpush1.msra.mxu0 0.0
        %3191 = vmatprep.subr.mxu0 0.0
        %3192 = vmatpush1.msra.mxu0 0.0
        %3193 = vmatprep.mubr.f32.mxu0 0.0
        %3194 = vmatmul.mubr.f32.gmra.mrb[0].mxu0 %v3120
        %v3195 = vpop.f32.mrb[0].mxu0
        %v3196 = vadd.f32 0.0, %v3195
        %v3197 = vpop.f32.mrb[0].mxu0
        %3198 = vmatprep.mubr.f32.mxu0 0.0
        %3199 = vmatmul.mubr.f32.gmra.mrb[0].mxu0 %v3123
        %v3200 = vpop.f32.mrb[0].mxu0
        %v3201 = vadd.f32 0.0, %v3200
        %v3202 = vpop.f32.mrb[0].mxu0
        %3203 = vdwg.mxu0
        %3206 = vrot.lane.b32.xlu0 %v3196, 124
        %v3207 = vpop.permute.xlu0 %3206
        %3208 = vrot.lane.b32.xlu0 %v3201, 124
        %v3209 = vpop.permute.xlu0 %3208
        %v3212 = vadd.f32 %v3196, %v3207
        %v3213 = vadd.f32 %v3201, %v3209
        %v3214 = vxor.u32 %v3212, 2147483648
        %v3215 = vxor.u32 %v3213, 2147483648
        %v3216 = vmul.f32 %v3214, 1.442695
        %v3217 = vpow.pop %v3216
        %v3218 = vmul.f32 %v3215, 1.442695
        %v3219 = vpow.pop %v3218
        %v3220 = vadd.f32 %v3217, 1.0
        %v3221 = vadd.f32 %v3219, 1.0
        %v3222 = vrcp.pop %v3220
        %v3223 = vmul.f32 1.0, %v3222
        %v3224 = vrcp.pop %v3221
        %v3225 = vmul.f32 1.0, %v3224
        %3227 = vset.pattern.permute.xlu0 0
        %3228 = vperm.xlu0 %3227, %v3223
        %v3229 = vpop.permute.xlu0 %3228
        %3232 = vset.pattern.permute.xlu0 0
        %3233 = vperm.xlu0 %3232, %v3225
        %v3234 = vpop.permute.xlu0 %3233
        %v3236 = vmul.f32 %v2948, %v3229
        %v3237 = vmul.f32 %v2949, %v3229
        %v3238 = vmul.f32 %v2956, %v3234
        %v3239 = vmul.f32 %v2957, %v3234
        %3240 = vst [vmem:[%s338] sm:$0xff] %v3236
        %3241 = vst [vmem:[%s338 + $0x8] sm:$0xff] %v3237
        %3242 = vst [vmem:[%s338 + $0x40] sm:$0xff] %v3238
        %3243 = vst [vmem:[%s338 + $0x48] sm:$0xff] %v3239
        %3244 = vset.pattern.permute.xlu0 1
        %3245 = vperm.xlu0 %3244, %v3223
        %v3246 = vpop.permute.xlu0 %3245
        %3248 = vset.pattern.permute.xlu0 1
        %3249 = vperm.xlu0 %3248, %v3225
        %v3250 = vpop.permute.xlu0 %3249
        %v3252 = vmul.f32 %v2950, %v3246
        %v3253 = vmul.f32 %v2951, %v3246
        %v3254 = vmul.f32 %v2958, %v3250
        %v3255 = vmul.f32 %v2959, %v3250
        %3256 = vst [vmem:[%s338 + $0x10] sm:$0xff] %v3252
        %3257 = vst [vmem:[%s338 + $0x18] sm:$0xff] %v3253
        %3258 = vst [vmem:[%s338 + $0x50] sm:$0xff] %v3254
        %3259 = vst [vmem:[%s338 + $0x58] sm:$0xff] %v3255
        %3260 = vset.pattern.permute.xlu0 2
        %3261 = vperm.xlu0 %3260, %v3223
        %v3262 = vpop.permute.xlu0 %3261
        %3264 = vset.pattern.permute.xlu0 2
        %3265 = vperm.xlu0 %3264, %v3225
        %v3266 = vpop.permute.xlu0 %3265
        %v3268 = vmul.f32 %v2952, %v3262
        %v3269 = vmul.f32 %v2953, %v3262
        %v3270 = vmul.f32 %v2960, %v3266
        %v3271 = vmul.f32 %v2961, %v3266
        %3272 = vst [vmem:[%s338 + $0x20] sm:$0xff] %v3268
        %3273 = vst [vmem:[%s338 + $0x28] sm:$0xff] %v3269
        %3274 = vst [vmem:[%s338 + $0x60] sm:$0xff] %v3270
        %3275 = vst [vmem:[%s338 + $0x68] sm:$0xff] %v3271
        %3276 = vset.pattern.permute.xlu0 3
        %3277 = vperm.xlu0 %3276, %v3223
        %v3278 = vpop.permute.xlu0 %3277
        %3280 = vset.pattern.permute.xlu0 3
        %3281 = vperm.xlu0 %3280, %v3225
        %v3282 = vpop.permute.xlu0 %3281
        %v3284 = vmul.f32 %v2954, %v3278
        %v3285 = vmul.f32 %v2955, %v3278
        %v3286 = vmul.f32 %v2962, %v3282
        %v3287 = vmul.f32 %v2963, %v3282
        %3288 = vst [vmem:[%s338 + $0x30] sm:$0xff] %v3284
        %3289 = vst [vmem:[%s338 + $0x38] sm:$0xff] %v3285
        %3290 = vst [vmem:[%s338 + $0x70] sm:$0xff] %v3286
        %3291 = vst [vmem:[%s338 + $0x78] sm:$0xff] %v3287
        %s3292 = sand.u32 %s207, 1
        %s3293 = scalar_lea.sflag [#allocation5], %s3292
        %s3294 = sand.u32 %s207, 1
        %s3295 = smul.addr %s3294, 128
        %s3296 = scalar_lea.vmem [#allocation8], %s3295
        // Predicated region
        $region61: #{tpu_custom_call.1} parent=51 // pred_check
          %p3297 = pneg %p217
        $region62: #{tpu_custom_call.1} parent=51 // pred_check_branch
          %3299 = sbr.rel (%p3297) target = $region64
        $region63: #{tpu_custom_call.1} parent=51 // pred_region
          %s3300 = smul.u32 8, %s26
          %s3302 = ssub.s32 2048, 2048
          %3303 = vsyncadd %s3293, %s3302
          %s3304 = smul.addr %s3300, 128
          %s3305 = scalar_lea.hbm %s8, %s3304
          %s3306 = sshll.u32 %s3296, 4
          %s3307 = int_to_ptr.vmem [resolvable:$true] %s3306
          %3312 = dma.vmem_to_hbm [thread:$0]  %s3307, 2048, %s3305, %s3293, 1024, 2048, 64
        $region64: #{tpu_custom_call.1} parent=51 // pred_fallthru
          _
      $region52: #{tpu_custom_call.1} parent=5 // pred_fallthru
        _
      %p3313 = scmp.le.s32.totalorder 2, %s21
      // Predicated region
      $region65: #{tpu_custom_call.1} parent=5 // pred_check
        %p3314 = pneg %p3313
      $region66: #{tpu_custom_call.1} parent=5 // pred_check_branch
        %3316 = sbr.rel (%p3314) target = $region68
      $region67: #{tpu_custom_call.1} parent=5 // pred_region
        %s3317 = ssub.s32 %s21, 2
        // Predicated region
        $region69: #{tpu_custom_call.1} parent=67 // pred_check
          %p3318 = pneg %p223
        $region70: #{tpu_custom_call.1} parent=67 // pred_check_branch
          %3320 = sbr.rel (%p3318) target = $region72
        $region71: #{tpu_custom_call.1} parent=67 // pred_region
          %s3321 = sand.u32 %s208, 1
          %s3322 = scalar_lea.sflag [#allocation5], %s3321
          %s3323 = sand.u32 %s208, 1
          %s3324 = smul.addr %s3323, 128
          %s3325 = scalar_lea.vmem [#allocation8], %s3324
          %3326 = dma.done %s3322, 2048
        $region72: #{tpu_custom_call.1} parent=67 // pred_fallthru
          _
      $region68: #{tpu_custom_call.1} parent=5 // pred_fallthru
        _
    $region6: #{tpu_custom_call.1} parent=1 // loop_footer
      %s25 = sadd.s32 1, %s21
    $region7: #{tpu_custom_call.1} parent=1 // loop_footer_branch
      %20 = sbr.rel target = $region3
    $region8: #{tpu_custom_call.1} parent=1 // loop_exit
      _
    %3327 = vsyncpa [#allocation4], 1
    %s3328 = scalar_lea.sflag [#allocation4], 1
    %3329 = vsyncpa %s3328, 1
    %3330 = vsyncpa [#allocation7], 1
    %3331 = vsyncpa [#allocation5], 1
    %s3332 = scalar_lea.sflag [#allocation5], 1
    %3333 = vsyncpa %s3332, 1

</llo_original>
